<compile_context>
chip_gen: v7x
topology: tpu7x:2x2x1
jax: 0.10.0
libtpu: 0.0.40
codegen_flags: <defaults>
</compile_context>

<pallas_src>
import functools

import jax
import jax.numpy as jnp
from jax import lax
from jax.experimental import pallas as pl
from jax.experimental.pallas import tpu as pltpu


# ----------------------------------------------------------------------------
# Fused kernel: conv3x3+BN+ReLU -> position attention -> conv3x3+BN+ReLU
# One batch item per grid step; everything VMEM-resident in (C, H*W) layout.
# ----------------------------------------------------------------------------
def _dahead_kernel(x_ref, w1_ref, b1_ref,
                   m_ref, cbw_ref, wdT_ref, bd_ref,
                   w2_ref, b2_ref, out_ref,
                   xbuf1, col1, xbuf2, col2, *, H, W, margin, tq):
    N = H * W
    cin = x_ref.shape[0]
    c4 = w1_ref.shape[0]
    n_tiles = N // tq

    # Column masks kill the horizontal taps that would wrap across rows in the
    # flattened (h*W + w) spatial index.
    col = lax.broadcasted_iota(jnp.int32, (1, N), 1) % W
    mask_l = col != 0          # dx = -1 taps are zero at output column 0
    mask_r = col != (W - 1)    # dx = +1 taps are zero at output column W-1

    def zero_margins(xbuf, c):
        # Only the margin strips need zeroing; the interior is fully overwritten.
        xbuf[:, :margin] = jnp.zeros((c, margin), jnp.float32)
        xbuf[:, margin + N:] = jnp.zeros((c, margin), jnp.float32)

    def build_im2col(xbuf, col_ref, c):
        # col_ref rows [k*c, (k+1)*c) = source shifted by (dy*W + dx), edge-masked,
        # so the 3x3 conv becomes ONE (Cout, 9*c) @ (9*c, N) MXU matmul.
        for dx in (-1, 0, 1):
            for dy in (-1, 0, 1):
                k = (dy + 1) * 3 + (dx + 1)
                start = margin + dy * W + dx                 # static lane offset
                patch = xbuf[:, start:start + N]             # (c, N)
                if dx == -1:
                    patch = jnp.where(mask_l, patch, 0.0)
                elif dx == 1:
                    patch = jnp.where(mask_r, patch, 0.0)
                col_ref[k * c:(k + 1) * c, :] = patch

    # ---- stage 1: conv_p1 = conv3x3 + BN + ReLU, (Cin, N) -> (C4, N) --------
    zero_margins(xbuf1, cin)
    xbuf1[:, margin:margin + N] = x_ref[...]
    build_im2col(xbuf1, col1, cin)
    h1 = jnp.maximum(
        jnp.dot(w1_ref[...], col1[...], preferred_element_type=jnp.float32)
        + b1_ref[...], 0.0)                                               # (C4, N)

    # ---- stage 2: position attention (re-associated, row-tiled) -------------
    # energy[n, m] = h1[:, n]^T (Wb Wc^T) h1[:, m] + (Wc bb)^T h1[:, m]
    # (row-constant terms cancel inside the softmax).
    g = jnp.dot(m_ref[...], h1, preferred_element_type=jnp.float32)      # (C4, N)
    cb = jnp.sum(h1 * cbw_ref[...], axis=0, keepdims=True)               # (1, N)
    fd = jnp.dot(wdT_ref[...], h1,
                 preferred_element_type=jnp.float32) + bd_ref[...]       # (C4, N) alpha-scaled

    zero_margins(xbuf2, c4)
    xbuf2[:, margin:margin + N] = h1     # interior holds h1; becomes h2 in-place below

    # Row-tiled softmax + feat: never materializes the full (N, N) energy/attn.
    # Fully unrolled static loop (n_tiles is small); all slice starts static.
    for t in range(n_tiles):
        n0 = margin + t * tq
        h1_blk = xbuf2[:, n0:n0 + tq]                                    # (C4, tq)
        e_blk = lax.dot_general(h1_blk, g, (((0,), (0,)), ((), ())),
                                preferred_element_type=jnp.float32)      # (tq, N)
        e_blk = e_blk + cb
        p_blk = jnp.exp(e_blk - jnp.max(e_blk, axis=-1, keepdims=True))  # (tq, N)
        inv_l = 1.0 / jnp.sum(p_blk, axis=-1, keepdims=True)             # (tq, 1) exact
        feat_blk = lax.dot_general(fd, p_blk, (((1,), (1,)), ((), ())),
                                   preferred_element_type=jnp.float32)   # (C4, tq)
        # h2 = alpha*feat + h1  (alpha already folded into fd), softmax norm folded here
        xbuf2[:, n0:n0 + tq] = feat_blk * jnp.transpose(inv_l) + h1_blk

    # ---- stage 3: conv_p2 = conv3x3 + BN + ReLU, (C4, N) -> (Cin, N) --------
    build_im2col(xbuf2, col2, c4)
    out_ref[...] = jnp.maximum(
        jnp.dot(w2_ref[...], col2[...], preferred_element_type=jnp.float32)
        + b2_ref[...], 0.0)


# ----------------------------------------------------------------------------
# Wrapper: parameter refactoring (one-time) + pallas_call
# ----------------------------------------------------------------------------
def dahead_position(x_nchw, params):
    B, Cin, H, W = x_nchw.shape
    N = H * W
    C4 = params["w1"].shape[0]
    margin = pl.cdiv(W + 1, 128) * 128        # lane-aligned margin, >= W + 1
    nbuf = N + 2 * margin

    tq = 64                                    # query-row tile for the softmax/feat
    while tq > 1 and N % tq:
        tq //= 2

    s1, b1 = params["bn1_scale"], params["bn1_bias"]
    s2, b2 = params["bn2_scale"], params["bn2_bias"]
    # im2col weights: (Cout, 9*Cin), K index = (ky*3 + kx)*Cin + cin, BN scale folded.
    w1_flat = params["w1"].transpose(0, 2, 3, 1).reshape(C4, 9 * Cin) * s1[:, None]
    w2_flat = params["w2"].transpose(0, 2, 3, 1).reshape(Cin, 9 * C4) * s2[:, None]
    b1c = b1.reshape(C4, 1)
    b2c = b2.reshape(Cin, 1)

    # PAM re-association: softmax(fb fc^T) == softmax(h1^T (Wb Wc^T) h1 + 1*cb^T),
    # cb = h1^T (Wc bb); row-constant terms (h1^T Wb bc, bb.bc) cancel.
    alpha = jnp.asarray(params["alpha"], jnp.float32)
    m_attn = params["wb"] @ params["wc"].T                   # (C4, C4)
    cbw = (params["wc"] @ params["bb"]).reshape(C4, 1)       # (C4, 1)
    wdT = params["wd"].T * alpha                             # alpha folded into conv_d
    bdc = (params["bd"] * alpha).reshape(C4, 1)

    x_flat = x_nchw.reshape(B, Cin, N)                       # NCHW -> (B, C, N), free
    kernel = functools.partial(_dahead_kernel, H=H, W=W, margin=margin, tq=tq)
    out_flat = pl.pallas_call(
        kernel,
        out_shape=jax.ShapeDtypeStruct((B, Cin, N), jnp.float32),
        grid=(B,),
        in_specs=[
            pl.BlockSpec((None, Cin, N), lambda b: (b, 0, 0)),       # x (one batch item)
            pl.BlockSpec((C4, 9 * Cin), lambda b: (0, 0)),           # conv1 im2col weights
            pl.BlockSpec((C4, 1), lambda b: (0, 0)),                 # conv1 BN bias
            pl.BlockSpec((C4, C4), lambda b: (0, 0)),                # M = Wb Wc^T
            pl.BlockSpec((C4, 1), lambda b: (0, 0)),                 # Wc @ bb
            pl.BlockSpec((C4, C4), lambda b: (0, 0)),                # alpha * Wd^T
            pl.BlockSpec((C4, 1), lambda b: (0, 0)),                 # alpha * bd
            pl.BlockSpec((Cin, 9 * C4), lambda b: (0, 0)),           # conv2 im2col weights
            pl.BlockSpec((Cin, 1), lambda b: (0, 0)),                # conv2 BN bias
        ],
        out_specs=pl.BlockSpec((None, Cin, N), lambda b: (b, 0, 0)),
        scratch_shapes=[pltpu.VMEM((Cin, nbuf), jnp.float32),        # margined x
                        pltpu.VMEM((9 * Cin, N), jnp.float32),       # conv1 im2col stack
                        pltpu.VMEM((C4, nbuf), jnp.float32),         # margined h1/h2
                        pltpu.VMEM((9 * C4, N), jnp.float32)],       # conv2 im2col stack
        compiler_params=pltpu.CompilerParams(
            dimension_semantics=("parallel",)),
    )(x_flat, w1_flat, b1c, m_attn, cbw, wdT, bdc, w2_flat, b2c)
    return out_flat.reshape(B, Cin, H, W)


# ----------------------------------------------------------------------------
# Pure-JAX reference (natural parameterization, validates the re-association)
# ----------------------------------------------------------------------------
def ref_forward(x_nchw, params):
    def conv_bn_relu(h, w_oihw, scale, bias):
        y = lax.conv_general_dilated(h, w_oihw, (1, 1), "SAME",
                                     dimension_numbers=("NCHW", "OIHW", "NCHW"))
        y = y * scale[None, :, None, None] + bias[None, :, None, None]
        return jnp.maximum(y, 0.0)

    h1 = conv_bn_relu(x_nchw, params["w1"], params["bn1_scale"], params["bn1_bias"])
    B, C4, H, W = h1.shape
    xf = h1.reshape(B, C4, H * W)                                     # (B, C, N)
    fb = jnp.einsum("bcn,ck->bkn", xf, params["wb"]) + params["bb"][None, :, None]
    fc = jnp.einsum("bcn,ck->bkn", xf, params["wc"]) + params["bc"][None, :, None]
    fd = jnp.einsum("bcn,cd->bdn", xf, params["wd"]) + params["bd"][None, :, None]
    energy = jnp.einsum("bkn,bkm->bnm", fb, fc)                       # B^T C
    attn = jax.nn.softmax(energy, axis=-1)
    feat = jnp.einsum("bdm,bnm->bdn", fd, attn)                       # D @ attn^T
    h2 = (params["alpha"] * feat + xf).reshape(B, C4, H, W)
    return conv_bn_relu(h2, params["w2"], params["bn2_scale"], params["bn2_bias"])


def fuse_bn(gamma, beta, mean, var, eps=1e-5):
    scale = gamma / jnp.sqrt(var + eps)
    return scale, beta - mean * scale


if __name__ == "__main__":
    B, C, H, W = 2, 64, 16, 16
    inter = C // 4        # 16
    c8 = inter // 8       # 2

    key = jax.random.PRNGKey(0)
    ks = jax.random.split(key, 24)
    rnd = lambda k, shp, s=0.1: jax.random.normal(k, shp, jnp.float32) * s

    # conv_p1: Conv2d(C, inter, 3, padding=1, bias=False) + BN(inter) + ReLU
    w1 = rnd(ks[1], (inter, C, 3, 3))                     # OIHW
    bn1_scale, bn1_bias = fuse_bn(
        jax.random.uniform(ks[2], (inter,), jnp.float32, 0.5, 1.5),
        rnd(ks[3], (inter,)), rnd(ks[4], (inter,)),
        jax.random.uniform(ks[5], (inter,), jnp.float32, 0.5, 1.5))

    # PAM: conv_b/conv_c (inter -> inter//8, 1x1), conv_d (inter -> inter, 1x1)
    wb, bb = rnd(ks[6], (inter, c8)), rnd(ks[7], (c8,))
    wc, bc = rnd(ks[8], (inter, c8)), rnd(ks[9], (c8,))
    wd, bd = rnd(ks[10], (inter, inter)), rnd(ks[11], (inter,))
    # torch inits alpha = 0; use a nonzero value so the attention path is exercised.
    alpha = jnp.float32(0.3)

    # conv_p2: Conv2d(inter, C, 3, padding=1, bias=False) + BN(C) + ReLU
    w2 = rnd(ks[12], (C, inter, 3, 3))                    # OIHW
    bn2_scale, bn2_bias = fuse_bn(
        jax.random.uniform(ks[13], (C,), jnp.float32, 0.5, 1.5),
        rnd(ks[14], (C,)), rnd(ks[15], (C,)),
        jax.random.uniform(ks[16], (C,), jnp.float32, 0.5, 1.5))

    params = dict(w1=w1, bn1_scale=bn1_scale, bn1_bias=bn1_bias,
                  wb=wb, bb=bb, wc=wc, bc=bc, wd=wd, bd=bd, alpha=alpha,
                  w2=w2, bn2_scale=bn2_scale, bn2_bias=bn2_bias)

    x = jax.random.normal(ks[0], (B, C, H, W), jnp.float32)

    out = jax.block_until_ready(dahead_position(x, params))
    ref = jax.block_until_ready(ref_forward(x, params))

    assert out.shape == (B, C, H, W), out.shape
    assert jnp.allclose(out, ref, atol=1e-3, rtol=1e-3), (
        "max abs err", float(jnp.max(jnp.abs(out - ref))))
    print("KERNEL_OK")
</pallas_src>

<mosaic_0001>
module attributes {stable_mosaic.version = 11 : i64} {
  func.func @_dahead_kernel(%arg0: i32, %arg1: memref<1x64x256xf32, #tpu.memory_space<vmem>>, %arg2: memref<16x576xf32, #tpu.memory_space<vmem>>, %arg3: memref<16x1xf32, #tpu.memory_space<vmem>>, %arg4: memref<16x16xf32, #tpu.memory_space<vmem>>, %arg5: memref<16x1xf32, #tpu.memory_space<vmem>>, %arg6: memref<16x16xf32, #tpu.memory_space<vmem>>, %arg7: memref<16x1xf32, #tpu.memory_space<vmem>>, %arg8: memref<64x144xf32, #tpu.memory_space<vmem>>, %arg9: memref<64x1xf32, #tpu.memory_space<vmem>>, %arg10: memref<1x64x256xf32, #tpu.memory_space<vmem>>, %arg11: memref<64x512xf32, #tpu.memory_space<vmem>>, %arg12: memref<576x256xf32, #tpu.memory_space<vmem>>, %arg13: memref<16x512xf32, #tpu.memory_space<vmem>>, %arg14: memref<144x256xf32, #tpu.memory_space<vmem>>) attributes {dimension_semantics = [#tpu.dimension_semantics<parallel>], iteration_bounds = array<i64: 2>, scalar_prefetch = 0 : i64, scratch_operands = 4 : i64, tpu.core_type = #tpu.core_type<tc>, window_params = [{transform_indices = @transform_0, window_bounds = array<i64: 1, 64, 256>}, {pipeline_mode = #tpu.pipeline_mode<synchronous>, transform_indices = @transform_1, window_bounds = array<i64: 16, 576>}, {pipeline_mode = #tpu.pipeline_mode<synchronous>, transform_indices = @transform_2, window_bounds = array<i64: 16, 1>}, {pipeline_mode = #tpu.pipeline_mode<synchronous>, transform_indices = @transform_3, window_bounds = array<i64: 16, 16>}, {pipeline_mode = #tpu.pipeline_mode<synchronous>, transform_indices = @transform_4, window_bounds = array<i64: 16, 1>}, {pipeline_mode = #tpu.pipeline_mode<synchronous>, transform_indices = @transform_5, window_bounds = array<i64: 16, 16>}, {pipeline_mode = #tpu.pipeline_mode<synchronous>, transform_indices = @transform_6, window_bounds = array<i64: 16, 1>}, {pipeline_mode = #tpu.pipeline_mode<synchronous>, transform_indices = @transform_7, window_bounds = array<i64: 64, 144>}, {pipeline_mode = #tpu.pipeline_mode<synchronous>, transform_indices = @transform_8, window_bounds = array<i64: 64, 1>}, {transform_indices = @transform_9, window_bounds = array<i64: 1, 64, 256>}]} {
    %0 = tpu.iota {dimensions = array<i32: 1>} : vector<1x256xi32>
    %c16_i32 = arith.constant 16 : i32
    %c0_i32 = arith.constant 0 : i32
    %1 = arith.cmpi eq, %c16_i32, %c0_i32 : i32
    %c1_i32 = arith.constant 1 : i32
    %2 = arith.select %1, %c1_i32, %c16_i32 : i32
    %3 = vector.broadcast %2 : i32 to vector<1x256xi32>
    %4 = arith.remsi %0, %3 : vector<1x256xi32>
    %c0_i32_0 = arith.constant 0 : i32
    %5 = vector.broadcast %c0_i32_0 : i32 to vector<1x256xi32>
    %6 = arith.cmpi ne, %4, %5 : vector<1x256xi32>
    %c0_i32_1 = arith.constant 0 : i32
    %7 = vector.broadcast %c0_i32_1 : i32 to vector<1x256xi32>
    %8 = arith.cmpi slt, %4, %7 : vector<1x256xi32>
    %c0_i32_2 = arith.constant 0 : i32
    %9 = arith.cmpi slt, %2, %c0_i32_2 : i32
    %10 = vector.broadcast %9 : i1 to vector<1x256xi1>
    %11 = vector.broadcast %10 : vector<1x256xi1> to vector<1x256xi1>
    %12 = arith.xori %8, %11 : vector<1x256xi1>
    %13 = arith.andi %12, %6 : vector<1x256xi1>
    %14 = vector.broadcast %2 : i32 to vector<1x256xi32>
    %15 = arith.addi %4, %14 : vector<1x256xi32>
    %16 = arith.select %13, %15, %4 : vector<1x256xi1>, vector<1x256xi32>
    %c0_i32_3 = arith.constant 0 : i32
    %17 = vector.broadcast %c0_i32_3 : i32 to vector<1x256xi32>
    %18 = arith.cmpi ne, %16, %17 : vector<1x256xi32>
    %c15_i32 = arith.constant 15 : i32
    %19 = vector.broadcast %c15_i32 : i32 to vector<1x256xi32>
    %20 = arith.cmpi ne, %16, %19 : vector<1x256xi32>
    %cst = arith.constant 0.000000e+00 : f32
    %21 = vector.broadcast %cst : f32 to vector<64x128xf32>
    %c0 = arith.constant 0 : index
    %c0_4 = arith.constant 0 : index
    %22 = vector.load %arg11[%c0, %c0_4] : memref<64x512xf32, #tpu.memory_space<vmem>>, vector<64x128xf32>
    tpu.vector_store %arg11[%c0, %c0_4], %21 {strides = array<i32>} : memref<64x512xf32, #tpu.memory_space<vmem>>, vector<64x128xf32>,
    %cst_5 = arith.constant 0.000000e+00 : f32
    %23 = vector.broadcast %cst_5 : f32 to vector<64x128xf32>
    %c0_6 = arith.constant 0 : index
    %c384 = arith.constant 384 : index
    %24 = vector.load %arg11[%c0_6, %c384] : memref<64x512xf32, #tpu.memory_space<vmem>>, vector<64x128xf32>
    tpu.vector_store %arg11[%c0_6, %c384], %23 {strides = array<i32>} : memref<64x512xf32, #tpu.memory_space<vmem>>, vector<64x128xf32>,
    %c0_7 = arith.constant 0 : index
    %c0_8 = arith.constant 0 : index
    %c0_9 = arith.constant 0 : index
    %25 = vector.load %arg1[%c0_7, %c0_8, %c0_9] : memref<1x64x256xf32, #tpu.memory_space<vmem>>, vector<1x64x256xf32>
    %26 = vector.shape_cast %25 : vector<1x64x256xf32> to vector<64x256xf32>
    %c0_10 = arith.constant 0 : index
    %c128 = arith.constant 128 : index
    %27 = vector.load %arg11[%c0_10, %c128] : memref<64x512xf32, #tpu.memory_space<vmem>>, vector<64x256xf32>
    tpu.vector_store %arg11[%c0_10, %c128], %26 {strides = array<i32>} : memref<64x512xf32, #tpu.memory_space<vmem>>, vector<64x256xf32>,
    %c0_11 = arith.constant 0 : index
    %c111 = arith.constant 111 : index
    %28 = vector.load %arg11[%c0_11, %c111] : memref<64x512xf32, #tpu.memory_space<vmem>>, vector<64x256xf32>
    %cst_12 = arith.constant 0.000000e+00 : f32
    %29 = vector.shape_cast %18 : vector<1x256xi1> to vector<1x256xi1>
    %30 = vector.broadcast %29 : vector<1x256xi1> to vector<64x256xi1>
    %31 = vector.broadcast %cst_12 : f32 to vector<64x256xf32>
    %32 = arith.select %30, %28, %31 : vector<64x256xi1>, vector<64x256xf32>
    %c0_13 = arith.constant 0 : index
    %c0_14 = arith.constant 0 : index
    %33 = vector.load %arg12[%c0_13, %c0_14] : memref<576x256xf32, #tpu.memory_space<vmem>>, vector<64x256xf32>
    tpu.vector_store %arg12[%c0_13, %c0_14], %32 {strides = array<i32>} : memref<576x256xf32, #tpu.memory_space<vmem>>, vector<64x256xf32>,
    %c0_15 = arith.constant 0 : index
    %c127 = arith.constant 127 : index
    %34 = vector.load %arg11[%c0_15, %c127] : memref<64x512xf32, #tpu.memory_space<vmem>>, vector<64x256xf32>
    %cst_16 = arith.constant 0.000000e+00 : f32
    %35 = vector.shape_cast %18 : vector<1x256xi1> to vector<1x256xi1>
    %36 = vector.broadcast %35 : vector<1x256xi1> to vector<64x256xi1>
    %37 = vector.broadcast %cst_16 : f32 to vector<64x256xf32>
    %38 = arith.select %36, %34, %37 : vector<64x256xi1>, vector<64x256xf32>
    %c192 = arith.constant 192 : index
    %c0_17 = arith.constant 0 : index
    %39 = vector.load %arg12[%c192, %c0_17] : memref<576x256xf32, #tpu.memory_space<vmem>>, vector<64x256xf32>
    tpu.vector_store %arg12[%c192, %c0_17], %38 {strides = array<i32>} : memref<576x256xf32, #tpu.memory_space<vmem>>, vector<64x256xf32>,
    %c0_18 = arith.constant 0 : index
    %c143 = arith.constant 143 : index
    %40 = vector.load %arg11[%c0_18, %c143] : memref<64x512xf32, #tpu.memory_space<vmem>>, vector<64x256xf32>
    %cst_19 = arith.constant 0.000000e+00 : f32
    %41 = vector.shape_cast %18 : vector<1x256xi1> to vector<1x256xi1>
    %42 = vector.broadcast %41 : vector<1x256xi1> to vector<64x256xi1>
    %43 = vector.broadcast %cst_19 : f32 to vector<64x256xf32>
    %44 = arith.select %42, %40, %43 : vector<64x256xi1>, vector<64x256xf32>
    %c384_20 = arith.constant 384 : index
    %c0_21 = arith.constant 0 : index
    %45 = vector.load %arg12[%c384_20, %c0_21] : memref<576x256xf32, #tpu.memory_space<vmem>>, vector<64x256xf32>
    tpu.vector_store %arg12[%c384_20, %c0_21], %44 {strides = array<i32>} : memref<576x256xf32, #tpu.memory_space<vmem>>, vector<64x256xf32>,
    %c0_22 = arith.constant 0 : index
    %c112 = arith.constant 112 : index
    %46 = vector.load %arg11[%c0_22, %c112] : memref<64x512xf32, #tpu.memory_space<vmem>>, vector<64x256xf32>
    %c64 = arith.constant 64 : index
    %c0_23 = arith.constant 0 : index
    %47 = vector.load %arg12[%c64, %c0_23] : memref<576x256xf32, #tpu.memory_space<vmem>>, vector<64x256xf32>
    tpu.vector_store %arg12[%c64, %c0_23], %46 {strides = array<i32>} : memref<576x256xf32, #tpu.memory_space<vmem>>, vector<64x256xf32>,
    %c0_24 = arith.constant 0 : index
    %c128_25 = arith.constant 128 : index
    %48 = vector.load %arg11[%c0_24, %c128_25] : memref<64x512xf32, #tpu.memory_space<vmem>>, vector<64x256xf32>
    %c256 = arith.constant 256 : index
    %c0_26 = arith.constant 0 : index
    %49 = vector.load %arg12[%c256, %c0_26] : memref<576x256xf32, #tpu.memory_space<vmem>>, vector<64x256xf32>
    tpu.vector_store %arg12[%c256, %c0_26], %48 {strides = array<i32>} : memref<576x256xf32, #tpu.memory_space<vmem>>, vector<64x256xf32>,
    %c0_27 = arith.constant 0 : index
    %c144 = arith.constant 144 : index
    %50 = vector.load %arg11[%c0_27, %c144] : memref<64x512xf32, #tpu.memory_space<vmem>>, vector<64x256xf32>
    %c448 = arith.constant 448 : index
    %c0_28 = arith.constant 0 : index
    %51 = vector.load %arg12[%c448, %c0_28] : memref<576x256xf32, #tpu.memory_space<vmem>>, vector<64x256xf32>
    tpu.vector_store %arg12[%c448, %c0_28], %50 {strides = array<i32>} : memref<576x256xf32, #tpu.memory_space<vmem>>, vector<64x256xf32>,
    %c0_29 = arith.constant 0 : index
    %c113 = arith.constant 113 : index
    %52 = vector.load %arg11[%c0_29, %c113] : memref<64x512xf32, #tpu.memory_space<vmem>>, vector<64x256xf32>
    %cst_30 = arith.constant 0.000000e+00 : f32
    %53 = vector.shape_cast %20 : vector<1x256xi1> to vector<1x256xi1>
    %54 = vector.broadcast %53 : vector<1x256xi1> to vector<64x256xi1>
    %55 = vector.broadcast %cst_30 : f32 to vector<64x256xf32>
    %56 = arith.select %54, %52, %55 : vector<64x256xi1>, vector<64x256xf32>
    %c128_31 = arith.constant 128 : index
    %c0_32 = arith.constant 0 : index
    %57 = vector.load %arg12[%c128_31, %c0_32] : memref<576x256xf32, #tpu.memory_space<vmem>>, vector<64x256xf32>
    tpu.vector_store %arg12[%c128_31, %c0_32], %56 {strides = array<i32>} : memref<576x256xf32, #tpu.memory_space<vmem>>, vector<64x256xf32>,
    %c0_33 = arith.constant 0 : index
    %c129 = arith.constant 129 : index
    %58 = vector.load %arg11[%c0_33, %c129] : memref<64x512xf32, #tpu.memory_space<vmem>>, vector<64x256xf32>
    %cst_34 = arith.constant 0.000000e+00 : f32
    %59 = vector.shape_cast %20 : vector<1x256xi1> to vector<1x256xi1>
    %60 = vector.broadcast %59 : vector<1x256xi1> to vector<64x256xi1>
    %61 = vector.broadcast %cst_34 : f32 to vector<64x256xf32>
    %62 = arith.select %60, %58, %61 : vector<64x256xi1>, vector<64x256xf32>
    %c320 = arith.constant 320 : index
    %c0_35 = arith.constant 0 : index
    %63 = vector.load %arg12[%c320, %c0_35] : memref<576x256xf32, #tpu.memory_space<vmem>>, vector<64x256xf32>
    tpu.vector_store %arg12[%c320, %c0_35], %62 {strides = array<i32>} : memref<576x256xf32, #tpu.memory_space<vmem>>, vector<64x256xf32>,
    %c0_36 = arith.constant 0 : index
    %c145 = arith.constant 145 : index
    %64 = vector.load %arg11[%c0_36, %c145] : memref<64x512xf32, #tpu.memory_space<vmem>>, vector<64x256xf32>
    %cst_37 = arith.constant 0.000000e+00 : f32
    %65 = vector.shape_cast %20 : vector<1x256xi1> to vector<1x256xi1>
    %66 = vector.broadcast %65 : vector<1x256xi1> to vector<64x256xi1>
    %67 = vector.broadcast %cst_37 : f32 to vector<64x256xf32>
    %68 = arith.select %66, %64, %67 : vector<64x256xi1>, vector<64x256xf32>
    %c512 = arith.constant 512 : index
    %c0_38 = arith.constant 0 : index
    %69 = vector.load %arg12[%c512, %c0_38] : memref<576x256xf32, #tpu.memory_space<vmem>>, vector<64x256xf32>
    tpu.vector_store %arg12[%c512, %c0_38], %68 {strides = array<i32>} : memref<576x256xf32, #tpu.memory_space<vmem>>, vector<64x256xf32>,
    %c0_39 = arith.constant 0 : index
    %c0_40 = arith.constant 0 : index
    %70 = vector.load %arg2[%c0_39, %c0_40] : memref<16x576xf32, #tpu.memory_space<vmem>>, vector<16x576xf32>
    %c0_41 = arith.constant 0 : index
    %c0_42 = arith.constant 0 : index
    %71 = vector.load %arg12[%c0_41, %c0_42] : memref<576x256xf32, #tpu.memory_space<vmem>>, vector<576x256xf32>
    %cst_43 = arith.constant dense<0.000000e+00> : vector<16x256xf32>
    %72 = tpu.matmul %70, %71, %cst_43 {dimension_numbers = #tpu.dot_dimension_numbers<[1], [0], [0], [1], [0, 0, 1, 1], [], []>} : vector<16x576xf32>, vector<576x256xf32>, vector<16x256xf32> -> vector<16x256xf32>
    %c0_44 = arith.constant 0 : index
    %c0_45 = arith.constant 0 : index
    %73 = vector.load %arg3[%c0_44, %c0_45] : memref<16x1xf32, #tpu.memory_space<vmem>>, vector<16x1xf32>
    %74 = vector.broadcast %73 : vector<16x1xf32> to vector<16x256xf32>
    %75 = arith.addf %72, %74 : vector<16x256xf32>
    %cst_46 = arith.constant 0.000000e+00 : f32
    %76 = vector.broadcast %cst_46 : f32 to vector<16x256xf32>
    %77 = arith.maximumf %75, %76 : vector<16x256xf32>
    %c0_47 = arith.constant 0 : index
    %c0_48 = arith.constant 0 : index
    %78 = vector.load %arg4[%c0_47, %c0_48] : memref<16x16xf32, #tpu.memory_space<vmem>>, vector<16x16xf32>
    %cst_49 = arith.constant dense<0.000000e+00> : vector<16x256xf32>
    %79 = tpu.matmul %78, %77, %cst_49 {dimension_numbers = #tpu.dot_dimension_numbers<[1], [0], [0], [1], [0, 0, 1, 1], [], []>} : vector<16x16xf32>, vector<16x256xf32>, vector<16x256xf32> -> vector<16x256xf32>
    %c0_50 = arith.constant 0 : index
    %c0_51 = arith.constant 0 : index
    %80 = vector.load %arg5[%c0_50, %c0_51] : memref<16x1xf32, #tpu.memory_space<vmem>>, vector<16x1xf32>
    %81 = vector.broadcast %80 : vector<16x1xf32> to vector<16x256xf32>
    %82 = arith.mulf %77, %81 : vector<16x256xf32>
    %cst_52 = arith.constant dense<0.000000e+00> : vector<256xf32>
    %83 = vector.multi_reduction <add>, %82, %cst_52 [0] : vector<16x256xf32> to vector<256xf32>
    %84 = vector.shape_cast %83 : vector<256xf32> to vector<1x256xf32>
    %c0_53 = arith.constant 0 : index
    %c0_54 = arith.constant 0 : index
    %85 = vector.load %arg6[%c0_53, %c0_54] : memref<16x16xf32, #tpu.memory_space<vmem>>, vector<16x16xf32>
    %cst_55 = arith.constant dense<0.000000e+00> : vector<16x256xf32>
    %86 = tpu.matmul %85, %77, %cst_55 {dimension_numbers = #tpu.dot_dimension_numbers<[1], [0], [0], [1], [0, 0, 1, 1], [], []>} : vector<16x16xf32>, vector<16x256xf32>, vector<16x256xf32> -> vector<16x256xf32>
    %c0_56 = arith.constant 0 : index
    %c0_57 = arith.constant 0 : index
    %87 = vector.load %arg7[%c0_56, %c0_57] : memref<16x1xf32, #tpu.memory_space<vmem>>, vector<16x1xf32>
    %88 = vector.broadcast %87 : vector<16x1xf32> to vector<16x256xf32>
    %89 = arith.addf %86, %88 : vector<16x256xf32>
    %cst_58 = arith.constant 0.000000e+00 : f32
    %90 = vector.broadcast %cst_58 : f32 to vector<16x128xf32>
    %c0_59 = arith.constant 0 : index
    %c0_60 = arith.constant 0 : index
    %91 = vector.load %arg13[%c0_59, %c0_60] : memref<16x512xf32, #tpu.memory_space<vmem>>, vector<16x128xf32>
    tpu.vector_store %arg13[%c0_59, %c0_60], %90 {strides = array<i32>} : memref<16x512xf32, #tpu.memory_space<vmem>>, vector<16x128xf32>,
    %cst_61 = arith.constant 0.000000e+00 : f32
    %92 = vector.broadcast %cst_61 : f32 to vector<16x128xf32>
    %c0_62 = arith.constant 0 : index
    %c384_63 = arith.constant 384 : index
    %93 = vector.load %arg13[%c0_62, %c384_63] : memref<16x512xf32, #tpu.memory_space<vmem>>, vector<16x128xf32>
    tpu.vector_store %arg13[%c0_62, %c384_63], %92 {strides = array<i32>} : memref<16x512xf32, #tpu.memory_space<vmem>>, vector<16x128xf32>,
    %c0_64 = arith.constant 0 : index
    %c128_65 = arith.constant 128 : index
    %94 = vector.load %arg13[%c0_64, %c128_65] : memref<16x512xf32, #tpu.memory_space<vmem>>, vector<16x256xf32>
    tpu.vector_store %arg13[%c0_64, %c128_65], %77 {strides = array<i32>} : memref<16x512xf32, #tpu.memory_space<vmem>>, vector<16x256xf32>,
    %c0_66 = arith.constant 0 : index
    %c128_67 = arith.constant 128 : index
    %95 = vector.load %arg13[%c0_66, %c128_67] : memref<16x512xf32, #tpu.memory_space<vmem>>, vector<16x64xf32>
    %cst_68 = arith.constant dense<0.000000e+00> : vector<64x256xf32>
    %96 = tpu.matmul %95, %79, %cst_68 {dimension_numbers = #tpu.dot_dimension_numbers<[0], [0], [1], [1], [0, 1, 1, 1], [], []>} : vector<16x64xf32>, vector<16x256xf32>, vector<64x256xf32> -> vector<64x256xf32>
    %97 = vector.broadcast %84 : vector<1x256xf32> to vector<64x256xf32>
    %98 = arith.addf %96, %97 : vector<64x256xf32>
    %cst_69 = arith.constant dense<0xFF800000> : vector<64xf32>
    %99 = vector.multi_reduction <maximumf>, %98, %cst_69 [1] : vector<64x256xf32> to vector<64xf32>
    %100 = vector.shape_cast %99 : vector<64xf32> to vector<64x1xf32>
    %101 = vector.broadcast %100 : vector<64x1xf32> to vector<64x256xf32>
    %102 = arith.subf %98, %101 : vector<64x256xf32>
    %103 = math.exp %102 : vector<64x256xf32>
    %cst_70 = arith.constant dense<0.000000e+00> : vector<64xf32>
    %104 = vector.multi_reduction <add>, %103, %cst_70 [1] : vector<64x256xf32> to vector<64xf32>
    %105 = vector.shape_cast %104 : vector<64xf32> to vector<64x1xf32>
    %cst_71 = arith.constant 1.000000e+00 : f32
    %106 = vector.broadcast %cst_71 : f32 to vector<64x1xf32>
    %107 = arith.divf %106, %105 : vector<64x1xf32>
    %cst_72 = arith.constant dense<0.000000e+00> : vector<16x64xf32>
    %108 = tpu.matmul %89, %103, %cst_72 {dimension_numbers = #tpu.dot_dimension_numbers<[1], [1], [0], [0], [0, 0, 1, 0], [], []>} : vector<16x256xf32>, vector<64x256xf32>, vector<16x64xf32> -> vector<16x64xf32>
    %109 = tpu.transpose %107, [1, 0] : vector<64x1xf32> -> vector<1x64xf32>
    %110 = vector.broadcast %109 : vector<1x64xf32> to vector<16x64xf32>
    %111 = arith.mulf %108, %110 : vector<16x64xf32>
    %112 = arith.addf %111, %95 : vector<16x64xf32>
    %c0_73 = arith.constant 0 : index
    %c128_74 = arith.constant 128 : index
    %113 = vector.load %arg13[%c0_73, %c128_74] : memref<16x512xf32, #tpu.memory_space<vmem>>, vector<16x64xf32>
    tpu.vector_store %arg13[%c0_73, %c128_74], %112 {strides = array<i32>} : memref<16x512xf32, #tpu.memory_space<vmem>>, vector<16x64xf32>,
    %c0_75 = arith.constant 0 : index
    %c192_76 = arith.constant 192 : index
    %114 = vector.load %arg13[%c0_75, %c192_76] : memref<16x512xf32, #tpu.memory_space<vmem>>, vector<16x64xf32>
    %cst_77 = arith.constant dense<0.000000e+00> : vector<64x256xf32>
    %115 = tpu.matmul %114, %79, %cst_77 {dimension_numbers = #tpu.dot_dimension_numbers<[0], [0], [1], [1], [0, 1, 1, 1], [], []>} : vector<16x64xf32>, vector<16x256xf32>, vector<64x256xf32> -> vector<64x256xf32>
    %116 = vector.broadcast %84 : vector<1x256xf32> to vector<64x256xf32>
    %117 = arith.addf %115, %116 : vector<64x256xf32>
    %cst_78 = arith.constant dense<0xFF800000> : vector<64xf32>
    %118 = vector.multi_reduction <maximumf>, %117, %cst_78 [1] : vector<64x256xf32> to vector<64xf32>
    %119 = vector.shape_cast %118 : vector<64xf32> to vector<64x1xf32>
    %120 = vector.broadcast %119 : vector<64x1xf32> to vector<64x256xf32>
    %121 = arith.subf %117, %120 : vector<64x256xf32>
    %122 = math.exp %121 : vector<64x256xf32>
    %cst_79 = arith.constant dense<0.000000e+00> : vector<64xf32>
    %123 = vector.multi_reduction <add>, %122, %cst_79 [1] : vector<64x256xf32> to vector<64xf32>
    %124 = vector.shape_cast %123 : vector<64xf32> to vector<64x1xf32>
    %cst_80 = arith.constant 1.000000e+00 : f32
    %125 = vector.broadcast %cst_80 : f32 to vector<64x1xf32>
    %126 = arith.divf %125, %124 : vector<64x1xf32>
    %cst_81 = arith.constant dense<0.000000e+00> : vector<16x64xf32>
    %127 = tpu.matmul %89, %122, %cst_81 {dimension_numbers = #tpu.dot_dimension_numbers<[1], [1], [0], [0], [0, 0, 1, 0], [], []>} : vector<16x256xf32>, vector<64x256xf32>, vector<16x64xf32> -> vector<16x64xf32>
    %128 = tpu.transpose %126, [1, 0] : vector<64x1xf32> -> vector<1x64xf32>
    %129 = vector.broadcast %128 : vector<1x64xf32> to vector<16x64xf32>
    %130 = arith.mulf %127, %129 : vector<16x64xf32>
    %131 = arith.addf %130, %114 : vector<16x64xf32>
    %c0_82 = arith.constant 0 : index
    %c192_83 = arith.constant 192 : index
    %132 = vector.load %arg13[%c0_82, %c192_83] : memref<16x512xf32, #tpu.memory_space<vmem>>, vector<16x64xf32>
    tpu.vector_store %arg13[%c0_82, %c192_83], %131 {strides = array<i32>} : memref<16x512xf32, #tpu.memory_space<vmem>>, vector<16x64xf32>,
    %c0_84 = arith.constant 0 : index
    %c256_85 = arith.constant 256 : index
    %133 = vector.load %arg13[%c0_84, %c256_85] : memref<16x512xf32, #tpu.memory_space<vmem>>, vector<16x64xf32>
    %cst_86 = arith.constant dense<0.000000e+00> : vector<64x256xf32>
    %134 = tpu.matmul %133, %79, %cst_86 {dimension_numbers = #tpu.dot_dimension_numbers<[0], [0], [1], [1], [0, 1, 1, 1], [], []>} : vector<16x64xf32>, vector<16x256xf32>, vector<64x256xf32> -> vector<64x256xf32>
    %135 = vector.broadcast %84 : vector<1x256xf32> to vector<64x256xf32>
    %136 = arith.addf %134, %135 : vector<64x256xf32>
    %cst_87 = arith.constant dense<0xFF800000> : vector<64xf32>
    %137 = vector.multi_reduction <maximumf>, %136, %cst_87 [1] : vector<64x256xf32> to vector<64xf32>
    %138 = vector.shape_cast %137 : vector<64xf32> to vector<64x1xf32>
    %139 = vector.broadcast %138 : vector<64x1xf32> to vector<64x256xf32>
    %140 = arith.subf %136, %139 : vector<64x256xf32>
    %141 = math.exp %140 : vector<64x256xf32>
    %cst_88 = arith.constant dense<0.000000e+00> : vector<64xf32>
    %142 = vector.multi_reduction <add>, %141, %cst_88 [1] : vector<64x256xf32> to vector<64xf32>
    %143 = vector.shape_cast %142 : vector<64xf32> to vector<64x1xf32>
    %cst_89 = arith.constant 1.000000e+00 : f32
    %144 = vector.broadcast %cst_89 : f32 to vector<64x1xf32>
    %145 = arith.divf %144, %143 : vector<64x1xf32>
    %cst_90 = arith.constant dense<0.000000e+00> : vector<16x64xf32>
    %146 = tpu.matmul %89, %141, %cst_90 {dimension_numbers = #tpu.dot_dimension_numbers<[1], [1], [0], [0], [0, 0, 1, 0], [], []>} : vector<16x256xf32>, vector<64x256xf32>, vector<16x64xf32> -> vector<16x64xf32>
    %147 = tpu.transpose %145, [1, 0] : vector<64x1xf32> -> vector<1x64xf32>
    %148 = vector.broadcast %147 : vector<1x64xf32> to vector<16x64xf32>
    %149 = arith.mulf %146, %148 : vector<16x64xf32>
    %150 = arith.addf %149, %133 : vector<16x64xf32>
    %c0_91 = arith.constant 0 : index
    %c256_92 = arith.constant 256 : index
    %151 = vector.load %arg13[%c0_91, %c256_92] : memref<16x512xf32, #tpu.memory_space<vmem>>, vector<16x64xf32>
    tpu.vector_store %arg13[%c0_91, %c256_92], %150 {strides = array<i32>} : memref<16x512xf32, #tpu.memory_space<vmem>>, vector<16x64xf32>,
    %c0_93 = arith.constant 0 : index
    %c320_94 = arith.constant 320 : index
    %152 = vector.load %arg13[%c0_93, %c320_94] : memref<16x512xf32, #tpu.memory_space<vmem>>, vector<16x64xf32>
    %cst_95 = arith.constant dense<0.000000e+00> : vector<64x256xf32>
    %153 = tpu.matmul %152, %79, %cst_95 {dimension_numbers = #tpu.dot_dimension_numbers<[0], [0], [1], [1], [0, 1, 1, 1], [], []>} : vector<16x64xf32>, vector<16x256xf32>, vector<64x256xf32> -> vector<64x256xf32>
    %154 = vector.broadcast %84 : vector<1x256xf32> to vector<64x256xf32>
    %155 = arith.addf %153, %154 : vector<64x256xf32>
    %cst_96 = arith.constant dense<0xFF800000> : vector<64xf32>
    %156 = vector.multi_reduction <maximumf>, %155, %cst_96 [1] : vector<64x256xf32> to vector<64xf32>
    %157 = vector.shape_cast %156 : vector<64xf32> to vector<64x1xf32>
    %158 = vector.broadcast %157 : vector<64x1xf32> to vector<64x256xf32>
    %159 = arith.subf %155, %158 : vector<64x256xf32>
    %160 = math.exp %159 : vector<64x256xf32>
    %cst_97 = arith.constant dense<0.000000e+00> : vector<64xf32>
    %161 = vector.multi_reduction <add>, %160, %cst_97 [1] : vector<64x256xf32> to vector<64xf32>
    %162 = vector.shape_cast %161 : vector<64xf32> to vector<64x1xf32>
    %cst_98 = arith.constant 1.000000e+00 : f32
    %163 = vector.broadcast %cst_98 : f32 to vector<64x1xf32>
    %164 = arith.divf %163, %162 : vector<64x1xf32>
    %cst_99 = arith.constant dense<0.000000e+00> : vector<16x64xf32>
    %165 = tpu.matmul %89, %160, %cst_99 {dimension_numbers = #tpu.dot_dimension_numbers<[1], [1], [0], [0], [0, 0, 1, 0], [], []>} : vector<16x256xf32>, vector<64x256xf32>, vector<16x64xf32> -> vector<16x64xf32>
    %166 = tpu.transpose %164, [1, 0] : vector<64x1xf32> -> vector<1x64xf32>
    %167 = vector.broadcast %166 : vector<1x64xf32> to vector<16x64xf32>
    %168 = arith.mulf %165, %167 : vector<16x64xf32>
    %169 = arith.addf %168, %152 : vector<16x64xf32>
    %c0_100 = arith.constant 0 : index
    %c320_101 = arith.constant 320 : index
    %170 = vector.load %arg13[%c0_100, %c320_101] : memref<16x512xf32, #tpu.memory_space<vmem>>, vector<16x64xf32>
    tpu.vector_store %arg13[%c0_100, %c320_101], %169 {strides = array<i32>} : memref<16x512xf32, #tpu.memory_space<vmem>>, vector<16x64xf32>,
    %c0_102 = arith.constant 0 : index
    %c111_103 = arith.constant 111 : index
    %171 = vector.load %arg13[%c0_102, %c111_103] : memref<16x512xf32, #tpu.memory_space<vmem>>, vector<16x256xf32>
    %cst_104 = arith.constant 0.000000e+00 : f32
    %172 = vector.shape_cast %18 : vector<1x256xi1> to vector<1x256xi1>
    %173 = vector.broadcast %172 : vector<1x256xi1> to vector<16x256xi1>
    %174 = vector.broadcast %cst_104 : f32 to vector<16x256xf32>
    %175 = arith.select %173, %171, %174 : vector<16x256xi1>, vector<16x256xf32>
    %c0_105 = arith.constant 0 : index
    %c0_106 = arith.constant 0 : index
    %176 = vector.load %arg14[%c0_105, %c0_106] : memref<144x256xf32, #tpu.memory_space<vmem>>, vector<16x256xf32>
    tpu.vector_store %arg14[%c0_105, %c0_106], %175 {strides = array<i32>} : memref<144x256xf32, #tpu.memory_space<vmem>>, vector<16x256xf32>,
    %c0_107 = arith.constant 0 : index
    %c127_108 = arith.constant 127 : index
    %177 = vector.load %arg13[%c0_107, %c127_108] : memref<16x512xf32, #tpu.memory_space<vmem>>, vector<16x256xf32>
    %cst_109 = arith.constant 0.000000e+00 : f32
    %178 = vector.shape_cast %18 : vector<1x256xi1> to vector<1x256xi1>
    %179 = vector.broadcast %178 : vector<1x256xi1> to vector<16x256xi1>
    %180 = vector.broadcast %cst_109 : f32 to vector<16x256xf32>
    %181 = arith.select %179, %177, %180 : vector<16x256xi1>, vector<16x256xf32>
    %c48 = arith.constant 48 : index
    %c0_110 = arith.constant 0 : index
    %182 = vector.load %arg14[%c48, %c0_110] : memref<144x256xf32, #tpu.memory_space<vmem>>, vector<16x256xf32>
    tpu.vector_store %arg14[%c48, %c0_110], %181 {strides = array<i32>} : memref<144x256xf32, #tpu.memory_space<vmem>>, vector<16x256xf32>,
    %c0_111 = arith.constant 0 : index
    %c143_112 = arith.constant 143 : index
    %183 = vector.load %arg13[%c0_111, %c143_112] : memref<16x512xf32, #tpu.memory_space<vmem>>, vector<16x256xf32>
    %cst_113 = arith.constant 0.000000e+00 : f32
    %184 = vector.shape_cast %18 : vector<1x256xi1> to vector<1x256xi1>
    %185 = vector.broadcast %184 : vector<1x256xi1> to vector<16x256xi1>
    %186 = vector.broadcast %cst_113 : f32 to vector<16x256xf32>
    %187 = arith.select %185, %183, %186 : vector<16x256xi1>, vector<16x256xf32>
    %c96 = arith.constant 96 : index
    %c0_114 = arith.constant 0 : index
    %188 = vector.load %arg14[%c96, %c0_114] : memref<144x256xf32, #tpu.memory_space<vmem>>, vector<16x256xf32>
    tpu.vector_store %arg14[%c96, %c0_114], %187 {strides = array<i32>} : memref<144x256xf32, #tpu.memory_space<vmem>>, vector<16x256xf32>,
    %c0_115 = arith.constant 0 : index
    %c112_116 = arith.constant 112 : index
    %189 = vector.load %arg13[%c0_115, %c112_116] : memref<16x512xf32, #tpu.memory_space<vmem>>, vector<16x256xf32>
    %c16 = arith.constant 16 : index
    %c0_117 = arith.constant 0 : index
    %190 = vector.load %arg14[%c16, %c0_117] : memref<144x256xf32, #tpu.memory_space<vmem>>, vector<16x256xf32>
    tpu.vector_store %arg14[%c16, %c0_117], %189 {strides = array<i32>} : memref<144x256xf32, #tpu.memory_space<vmem>>, vector<16x256xf32>,
    %c0_118 = arith.constant 0 : index
    %c128_119 = arith.constant 128 : index
    %191 = vector.load %arg13[%c0_118, %c128_119] : memref<16x512xf32, #tpu.memory_space<vmem>>, vector<16x256xf32>
    %c64_120 = arith.constant 64 : index
    %c0_121 = arith.constant 0 : index
    %192 = vector.load %arg14[%c64_120, %c0_121] : memref<144x256xf32, #tpu.memory_space<vmem>>, vector<16x256xf32>
    tpu.vector_store %arg14[%c64_120, %c0_121], %191 {strides = array<i32>} : memref<144x256xf32, #tpu.memory_space<vmem>>, vector<16x256xf32>,
    %c0_122 = arith.constant 0 : index
    %c144_123 = arith.constant 144 : index
    %193 = vector.load %arg13[%c0_122, %c144_123] : memref<16x512xf32, #tpu.memory_space<vmem>>, vector<16x256xf32>
    %c112_124 = arith.constant 112 : index
    %c0_125 = arith.constant 0 : index
    %194 = vector.load %arg14[%c112_124, %c0_125] : memref<144x256xf32, #tpu.memory_space<vmem>>, vector<16x256xf32>
    tpu.vector_store %arg14[%c112_124, %c0_125], %193 {strides = array<i32>} : memref<144x256xf32, #tpu.memory_space<vmem>>, vector<16x256xf32>,
    %c0_126 = arith.constant 0 : index
    %c113_127 = arith.constant 113 : index
    %195 = vector.load %arg13[%c0_126, %c113_127] : memref<16x512xf32, #tpu.memory_space<vmem>>, vector<16x256xf32>
    %cst_128 = arith.constant 0.000000e+00 : f32
    %196 = vector.shape_cast %20 : vector<1x256xi1> to vector<1x256xi1>
    %197 = vector.broadcast %196 : vector<1x256xi1> to vector<16x256xi1>
    %198 = vector.broadcast %cst_128 : f32 to vector<16x256xf32>
    %199 = arith.select %197, %195, %198 : vector<16x256xi1>, vector<16x256xf32>
    %c32 = arith.constant 32 : index
    %c0_129 = arith.constant 0 : index
    %200 = vector.load %arg14[%c32, %c0_129] : memref<144x256xf32, #tpu.memory_space<vmem>>, vector<16x256xf32>
    tpu.vector_store %arg14[%c32, %c0_129], %199 {strides = array<i32>} : memref<144x256xf32, #tpu.memory_space<vmem>>, vector<16x256xf32>,
    %c0_130 = arith.constant 0 : index
    %c129_131 = arith.constant 129 : index
    %201 = vector.load %arg13[%c0_130, %c129_131] : memref<16x512xf32, #tpu.memory_space<vmem>>, vector<16x256xf32>
    %cst_132 = arith.constant 0.000000e+00 : f32
    %202 = vector.shape_cast %20 : vector<1x256xi1> to vector<1x256xi1>
    %203 = vector.broadcast %202 : vector<1x256xi1> to vector<16x256xi1>
    %204 = vector.broadcast %cst_132 : f32 to vector<16x256xf32>
    %205 = arith.select %203, %201, %204 : vector<16x256xi1>, vector<16x256xf32>
    %c80 = arith.constant 80 : index
    %c0_133 = arith.constant 0 : index
    %206 = vector.load %arg14[%c80, %c0_133] : memref<144x256xf32, #tpu.memory_space<vmem>>, vector<16x256xf32>
    tpu.vector_store %arg14[%c80, %c0_133], %205 {strides = array<i32>} : memref<144x256xf32, #tpu.memory_space<vmem>>, vector<16x256xf32>,
    %c0_134 = arith.constant 0 : index
    %c145_135 = arith.constant 145 : index
    %207 = vector.load %arg13[%c0_134, %c145_135] : memref<16x512xf32, #tpu.memory_space<vmem>>, vector<16x256xf32>
    %cst_136 = arith.constant 0.000000e+00 : f32
    %208 = vector.shape_cast %20 : vector<1x256xi1> to vector<1x256xi1>
    %209 = vector.broadcast %208 : vector<1x256xi1> to vector<16x256xi1>
    %210 = vector.broadcast %cst_136 : f32 to vector<16x256xf32>
    %211 = arith.select %209, %207, %210 : vector<16x256xi1>, vector<16x256xf32>
    %c128_137 = arith.constant 128 : index
    %c0_138 = arith.constant 0 : index
    %212 = vector.load %arg14[%c128_137, %c0_138] : memref<144x256xf32, #tpu.memory_space<vmem>>, vector<16x256xf32>
    tpu.vector_store %arg14[%c128_137, %c0_138], %211 {strides = array<i32>} : memref<144x256xf32, #tpu.memory_space<vmem>>, vector<16x256xf32>,
    %c0_139 = arith.constant 0 : index
    %c0_140 = arith.constant 0 : index
    %213 = vector.load %arg8[%c0_139, %c0_140] : memref<64x144xf32, #tpu.memory_space<vmem>>, vector<64x144xf32>
    %c0_141 = arith.constant 0 : index
    %c0_142 = arith.constant 0 : index
    %214 = vector.load %arg14[%c0_141, %c0_142] : memref<144x256xf32, #tpu.memory_space<vmem>>, vector<144x256xf32>
    %cst_143 = arith.constant dense<0.000000e+00> : vector<64x256xf32>
    %215 = tpu.matmul %213, %214, %cst_143 {dimension_numbers = #tpu.dot_dimension_numbers<[1], [0], [0], [1], [0, 0, 1, 1], [], []>} : vector<64x144xf32>, vector<144x256xf32>, vector<64x256xf32> -> vector<64x256xf32>
    %c0_144 = arith.constant 0 : index
    %c0_145 = arith.constant 0 : index
    %216 = vector.load %arg9[%c0_144, %c0_145] : memref<64x1xf32, #tpu.memory_space<vmem>>, vector<64x1xf32>
    %217 = vector.broadcast %216 : vector<64x1xf32> to vector<64x256xf32>
    %218 = arith.addf %215, %217 : vector<64x256xf32>
    %cst_146 = arith.constant 0.000000e+00 : f32
    %219 = vector.broadcast %cst_146 : f32 to vector<64x256xf32>
    %220 = arith.maximumf %218, %219 : vector<64x256xf32>
    %c0_147 = arith.constant 0 : index
    %c0_148 = arith.constant 0 : index
    %c0_149 = arith.constant 0 : index
    %221 = vector.load %arg10[%c0_147, %c0_148, %c0_149] : memref<1x64x256xf32, #tpu.memory_space<vmem>>, vector<1x64x256xf32>
    %222 = vector.shape_cast %221 : vector<1x64x256xf32> to vector<64x256xf32>
    %223 = vector.shape_cast %220 : vector<64x256xf32> to vector<1x64x256xf32>
    tpu.vector_store %arg10[%c0_147, %c0_148, %c0_149], %223 {strides = array<i32>} : memref<1x64x256xf32, #tpu.memory_space<vmem>>, vector<1x64x256xf32>,
    return
  }
  func.func @transform_0(%arg0: i32) -> (i32, i32, i32) {
    %c0_i32 = arith.constant 0 : i32
    %c0_i32_0 = arith.constant 0 : i32
    %c0_i32_1 = arith.constant 0 : i32
    return %arg0, %c0_i32, %c0_i32_0 : i32, i32, i32
  }
  func.func @transform_1(%arg0: i32) -> (i32, i32) {
    %c0_i32 = arith.constant 0 : i32
    %c0_i32_0 = arith.constant 0 : i32
    %c0_i32_1 = arith.constant 0 : i32
    return %c0_i32, %c0_i32_0 : i32, i32
  }
  func.func @transform_2(%arg0: i32) -> (i32, i32) {
    %c0_i32 = arith.constant 0 : i32
    %c0_i32_0 = arith.constant 0 : i32
    %c0_i32_1 = arith.constant 0 : i32
    return %c0_i32, %c0_i32_0 : i32, i32
  }
  func.func @transform_3(%arg0: i32) -> (i32, i32) {
    %c0_i32 = arith.constant 0 : i32
    %c0_i32_0 = arith.constant 0 : i32
    %c0_i32_1 = arith.constant 0 : i32
    return %c0_i32, %c0_i32_0 : i32, i32
  }
  func.func @transform_4(%arg0: i32) -> (i32, i32) {
    %c0_i32 = arith.constant 0 : i32
    %c0_i32_0 = arith.constant 0 : i32
    %c0_i32_1 = arith.constant 0 : i32
    return %c0_i32, %c0_i32_0 : i32, i32
  }
  func.func @transform_5(%arg0: i32) -> (i32, i32) {
    %c0_i32 = arith.constant 0 : i32
    %c0_i32_0 = arith.constant 0 : i32
    %c0_i32_1 = arith.constant 0 : i32
    return %c0_i32, %c0_i32_0 : i32, i32
  }
  func.func @transform_6(%arg0: i32) -> (i32, i32) {
    %c0_i32 = arith.constant 0 : i32
    %c0_i32_0 = arith.constant 0 : i32
    %c0_i32_1 = arith.constant 0 : i32
    return %c0_i32, %c0_i32_0 : i32, i32
  }
  func.func @transform_7(%arg0: i32) -> (i32, i32) {
    %c0_i32 = arith.constant 0 : i32
    %c0_i32_0 = arith.constant 0 : i32
    %c0_i32_1 = arith.constant 0 : i32
    return %c0_i32, %c0_i32_0 : i32, i32
  }
  func.func @transform_8(%arg0: i32) -> (i32, i32) {
    %c0_i32 = arith.constant 0 : i32
    %c0_i32_0 = arith.constant 0 : i32
    %c0_i32_1 = arith.constant 0 : i32
    return %c0_i32, %c0_i32_0 : i32, i32
  }
  func.func @transform_9(%arg0: i32) -> (i32, i32, i32) {
    %c0_i32 = arith.constant 0 : i32
    %c0_i32_0 = arith.constant 0 : i32
    %c0_i32_1 = arith.constant 0 : i32
    return %arg0, %c0_i32, %c0_i32_0 : i32, i32, i32
  }
}

</mosaic_0001>

<llo_original>
// kernel: tpu_custom_call.1
$region0: #{tpu_custom_call.1}
  #allocation0 [shape = 'u32[]', space=smem, size = 0x4, offset = 0x4, fixed_abs, tag = 'smem constant byte address 0x4 - core index']
  #allocation1 [shape = 'u32[144,128]{1,0:T(1,128)}', space=vmem, size = 0x12000, scoped, tag = 'internal scratch']
  #allocation2 [shape = 'f32[64,512]{1,0:T(8,128)}', space=vmem, size = 0x20000, scoped, tag = 'scratch operand']
  #allocation3 [shape = 'f32[576,256]{1,0:T(8,128)}', space=vmem, size = 0x90000, scoped, tag = 'scratch operand']
  #allocation4 [shape = 'f32[16,512]{1,0:T(8,128)}', space=vmem, size = 0x8000, scoped, tag = 'scratch operand']
  #allocation5 [shape = 'f32[144,256]{1,0:T(8,128)}', space=vmem, size = 0x24000, scoped, tag = 'scratch operand']
  %s0 = inlined_call_operand.hbm [shape: f32[2,64,256], index: 0, kind: input, shape index: {}]
  %s1 = inlined_call_operand.hbm [shape: f32[16,576], index: 1, kind: input, shape index: {}]
  %s2 = inlined_call_operand.vmem [shape: f32[16,1], index: 2, kind: input, shape index: {}]
  %s3 = inlined_call_operand.hbm [shape: f32[16,16], index: 3, kind: input, shape index: {}]
  %s4 = inlined_call_operand.vmem [shape: f32[16,1], index: 4, kind: input, shape index: {}]
  %s5 = inlined_call_operand.hbm [shape: f32[16,16], index: 5, kind: input, shape index: {}]
  %s6 = inlined_call_operand.vmem [shape: f32[16,1], index: 6, kind: input, shape index: {}]
  %s7 = inlined_call_operand.vmem [shape: f32[64,144], index: 7, kind: input, shape index: {}]
  %s8 = inlined_call_operand.vmem [shape: f32[64,1], index: 8, kind: input, shape index: {}]
  %s9 = inlined_call_operand.hbm [shape: f32[2,64,256], index: 9, kind: output, shape index: {}]
  %s10 = sld [smem:[#allocation0]]
  $region85: #{tpu_custom_call.1} parent=0
    _
  %s12 = ssub.s32 1, %s10
  %s13 = scalar_select 0, %s12, %s10
  $region1: #{tpu_custom_call.1} parent=0
    #allocation6 [shape = 'u8[131072]{0}', space=vmem, size = 0x20000, scoped, tag = 'input window, operand 0']
    #allocation7 [shape = 's32[2]{0}', space=sflag, size = 0x8, scoped, tag = 'scoped memory for tpu_custom_call.1']
    #allocation8 [shape = 's32[2]{0}', space=sflag, size = 0x8, scoped, tag = 'scoped memory for tpu_custom_call.1']
    #allocation9 [shape = 'u8[40960]{0}', space=vmem, size = 0xa000, scoped, tag = 'input window, operand 1, single buffered']
    #allocation10 [shape = 's32[1]{0}', space=sflag, size = 0x4, scoped, tag = 'scoped memory for tpu_custom_call.1']
    #allocation11 [shape = 'u8[8192]{0}', space=vmem, size = 0x2000, scoped, tag = 'input window, operand 3, single buffered']
    #allocation12 [shape = 'u8[8192]{0}', space=vmem, size = 0x2000, scoped, tag = 'input window, operand 5, single buffered']
    #allocation13 [shape = 's32[1]{0}', space=sflag, size = 0x4, scoped, tag = 'scoped memory for tpu_custom_call.1']
    #allocation14 [shape = 'u8[131072]{0}', space=vmem, size = 0x20000, scoped, tag = 'output window, operand 0']
    %14 = vsyncpa [#allocation7], 0
    %s15 = scalar_lea.sflag [#allocation7], 1
    %16 = vsyncpa %s15, 0
    %17 = vsyncpa [#allocation10], 0
    %18 = vsyncpa [#allocation13], 0
    %19 = vsyncpa [#allocation8], 0
    %s20 = scalar_lea.sflag [#allocation8], 1
    %21 = vsyncpa %s20, 0
    loop: start=0, step=1, limit=4
    $region2: #{tpu_custom_call.1} parent=1 // loop_pre_header
      _
    $region3: #{tpu_custom_call.1} parent=1 // loop_header
      %s23 = sphi 0, %s27
      %p24 = scmp.ge.s32.totalorder %s23, 4
      %s33 = sphi 0, %s35
      %s36 = sphi 0, %s33
      %s37 = sphi 0, %s36
      %s53 = sphi 0, %s37
      %s57 = sphi 0, %s57
      %s59 = sphi 0, %s57
      %s60 = sphi 0, %s59
      %s74 = sphi 0, %s60
      %s78 = sphi 0, %s78
      %s80 = sphi 0, %s78
      %s81 = sphi 0, %s80
      %s95 = sphi 0, %s81
      %s99 = sphi 0, %s99
      %s101 = sphi 0, %s99
      %s102 = sphi 0, %s101
      %s116 = sphi 0, %s102
      %s120 = sphi 0, %s120
      %s122 = sphi 0, %s120
      %s123 = sphi 0, %s122
      %s137 = sphi 0, %s123
      %s141 = sphi 0, %s141
      %s143 = sphi 0, %s141
      %s144 = sphi 0, %s143
      %s158 = sphi 0, %s144
      %s162 = sphi 0, %s162
      %s164 = sphi 0, %s162
      %s165 = sphi 0, %s164
      %s179 = sphi 0, %s165
      %s183 = sphi 0, %s183
      %s185 = sphi 0, %s183
      %s186 = sphi 0, %s185
      %s200 = sphi 0, %s186
      %s204 = sphi 0, %s204
      %s206 = sphi 0, %s204
      %s207 = sphi 0, %s206
      %s221 = sphi 0, %s207
      %s227 = sphi 0, %s229
      %s230 = sphi 0, %s227
      %s231 = sphi 0, %s230
      %s247 = sphi 0, %s231
    $region4: #{tpu_custom_call.1} parent=1 // loop_header_branch
      %26 = sbr.rel (%p24) target = $region8
    $region5: #{tpu_custom_call.1} parent=1 // loop_body
      %s28 = ssub.s32 %s23, 1
      %s29 = ssub.s32 %s23, 2
      %s30 = sadd.s32 %s23, 1
      %s31 = ssub.s32 %s23, %s30
      %p32 = scmp.eq.s32.totalorder %s31, 0
      %s34 = sadd.s32 %s33, 1
      %s35 = scalar_select %p32, %s33, %s34
      %p38 = pneg %p32
      %p39 = scmp.eq.s32.totalorder %s23, 1
      %p40 = por %p38, %p39
      %p41 = scmp.ne.s32.totalorder %s33, %s36
      %p42 = scmp.eq.s32.totalorder %s23, 0
      %p43 = por %p41, %p42
      %p44 = scmp.ne.s32.totalorder %s33, %s36
      %p45 = scmp.eq.s32.totalorder %s28, 1
      %p46 = por %p44, %p45
      %p47 = scmp.ne.s32.totalorder %s36, %s37
      %p48 = scmp.eq.s32.totalorder %s28, 0
      %p49 = por %p47, %p48
      %p50 = scmp.ne.s32.totalorder %s36, %s37
      %p51 = scmp.eq.s32.totalorder %s29, 1
      %p52 = por %p50, %p51
      %p54 = scmp.ne.s32.totalorder %s37, %s53
      %p55 = scmp.eq.s32.totalorder %s29, 0
      %p56 = por %p54, %p55
      %s58 = sadd.s32 %s57, 1
      %p61 = scmp.eq.s32.totalorder %s23, 1
      %p62 = scmp.ne.s32.totalorder %s57, %s59
      %p63 = scmp.eq.s32.totalorder %s23, 0
      %p64 = por %p62, %p63
      %p65 = scmp.ne.s32.totalorder %s57, %s59
      %p66 = scmp.eq.s32.totalorder %s28, 1
      %p67 = por %p65, %p66
      %p68 = scmp.ne.s32.totalorder %s59, %s60
      %p69 = scmp.eq.s32.totalorder %s28, 0
      %p70 = por %p68, %p69
      %p71 = scmp.ne.s32.totalorder %s59, %s60
      %p72 = scmp.eq.s32.totalorder %s29, 1
      %p73 = por %p71, %p72
      %p75 = scmp.ne.s32.totalorder %s60, %s74
      %p76 = scmp.eq.s32.totalorder %s29, 0
      %p77 = por %p75, %p76
      %s79 = sadd.s32 %s78, 1
      %p82 = scmp.eq.s32.totalorder %s23, 1
      %p83 = scmp.ne.s32.totalorder %s78, %s80
      %p84 = scmp.eq.s32.totalorder %s23, 0
      %p85 = por %p83, %p84
      %p86 = scmp.ne.s32.totalorder %s78, %s80
      %p87 = scmp.eq.s32.totalorder %s28, 1
      %p88 = por %p86, %p87
      %p89 = scmp.ne.s32.totalorder %s80, %s81
      %p90 = scmp.eq.s32.totalorder %s28, 0
      %p91 = por %p89, %p90
      %p92 = scmp.ne.s32.totalorder %s80, %s81
      %p93 = scmp.eq.s32.totalorder %s29, 1
      %p94 = por %p92, %p93
      %p96 = scmp.ne.s32.totalorder %s81, %s95
      %p97 = scmp.eq.s32.totalorder %s29, 0
      %p98 = por %p96, %p97
      %s100 = sadd.s32 %s99, 1
      %p103 = scmp.eq.s32.totalorder %s23, 1
      %p104 = scmp.ne.s32.totalorder %s99, %s101
      %p105 = scmp.eq.s32.totalorder %s23, 0
      %p106 = por %p104, %p105
      %p107 = scmp.ne.s32.totalorder %s99, %s101
      %p108 = scmp.eq.s32.totalorder %s28, 1
      %p109 = por %p107, %p108
      %p110 = scmp.ne.s32.totalorder %s101, %s102
      %p111 = scmp.eq.s32.totalorder %s28, 0
      %p112 = por %p110, %p111
      %p113 = scmp.ne.s32.totalorder %s101, %s102
      %p114 = scmp.eq.s32.totalorder %s29, 1
      %p115 = por %p113, %p114
      %p117 = scmp.ne.s32.totalorder %s102, %s116
      %p118 = scmp.eq.s32.totalorder %s29, 0
      %p119 = por %p117, %p118
      %s121 = sadd.s32 %s120, 1
      %p124 = scmp.eq.s32.totalorder %s23, 1
      %p125 = scmp.ne.s32.totalorder %s120, %s122
      %p126 = scmp.eq.s32.totalorder %s23, 0
      %p127 = por %p125, %p126
      %p128 = scmp.ne.s32.totalorder %s120, %s122
      %p129 = scmp.eq.s32.totalorder %s28, 1
      %p130 = por %p128, %p129
      %p131 = scmp.ne.s32.totalorder %s122, %s123
      %p132 = scmp.eq.s32.totalorder %s28, 0
      %p133 = por %p131, %p132
      %p134 = scmp.ne.s32.totalorder %s122, %s123
      %p135 = scmp.eq.s32.totalorder %s29, 1
      %p136 = por %p134, %p135
      %p138 = scmp.ne.s32.totalorder %s123, %s137
      %p139 = scmp.eq.s32.totalorder %s29, 0
      %p140 = por %p138, %p139
      %s142 = sadd.s32 %s141, 1
      %p145 = scmp.eq.s32.totalorder %s23, 1
      %p146 = scmp.ne.s32.totalorder %s141, %s143
      %p147 = scmp.eq.s32.totalorder %s23, 0
      %p148 = por %p146, %p147
      %p149 = scmp.ne.s32.totalorder %s141, %s143
      %p150 = scmp.eq.s32.totalorder %s28, 1
      %p151 = por %p149, %p150
      %p152 = scmp.ne.s32.totalorder %s143, %s144
      %p153 = scmp.eq.s32.totalorder %s28, 0
      %p154 = por %p152, %p153
      %p155 = scmp.ne.s32.totalorder %s143, %s144
      %p156 = scmp.eq.s32.totalorder %s29, 1
      %p157 = por %p155, %p156
      %p159 = scmp.ne.s32.totalorder %s144, %s158
      %p160 = scmp.eq.s32.totalorder %s29, 0
      %p161 = por %p159, %p160
      %s163 = sadd.s32 %s162, 1
      %p166 = scmp.eq.s32.totalorder %s23, 1
      %p167 = scmp.ne.s32.totalorder %s162, %s164
      %p168 = scmp.eq.s32.totalorder %s23, 0
      %p169 = por %p167, %p168
      %p170 = scmp.ne.s32.totalorder %s162, %s164
      %p171 = scmp.eq.s32.totalorder %s28, 1
      %p172 = por %p170, %p171
      %p173 = scmp.ne.s32.totalorder %s164, %s165
      %p174 = scmp.eq.s32.totalorder %s28, 0
      %p175 = por %p173, %p174
      %p176 = scmp.ne.s32.totalorder %s164, %s165
      %p177 = scmp.eq.s32.totalorder %s29, 1
      %p178 = por %p176, %p177
      %p180 = scmp.ne.s32.totalorder %s165, %s179
      %p181 = scmp.eq.s32.totalorder %s29, 0
      %p182 = por %p180, %p181
      %s184 = sadd.s32 %s183, 1
      %p187 = scmp.eq.s32.totalorder %s23, 1
      %p188 = scmp.ne.s32.totalorder %s183, %s185
      %p189 = scmp.eq.s32.totalorder %s23, 0
      %p190 = por %p188, %p189
      %p191 = scmp.ne.s32.totalorder %s183, %s185
      %p192 = scmp.eq.s32.totalorder %s28, 1
      %p193 = por %p191, %p192
      %p194 = scmp.ne.s32.totalorder %s185, %s186
      %p195 = scmp.eq.s32.totalorder %s28, 0
      %p196 = por %p194, %p195
      %p197 = scmp.ne.s32.totalorder %s185, %s186
      %p198 = scmp.eq.s32.totalorder %s29, 1
      %p199 = por %p197, %p198
      %p201 = scmp.ne.s32.totalorder %s186, %s200
      %p202 = scmp.eq.s32.totalorder %s29, 0
      %p203 = por %p201, %p202
      %s205 = sadd.s32 %s204, 1
      %p208 = scmp.eq.s32.totalorder %s23, 1
      %p209 = scmp.ne.s32.totalorder %s204, %s206
      %p210 = scmp.eq.s32.totalorder %s23, 0
      %p211 = por %p209, %p210
      %p212 = scmp.ne.s32.totalorder %s204, %s206
      %p213 = scmp.eq.s32.totalorder %s28, 1
      %p214 = por %p212, %p213
      %p215 = scmp.ne.s32.totalorder %s206, %s207
      %p216 = scmp.eq.s32.totalorder %s28, 0
      %p217 = por %p215, %p216
      %p218 = scmp.ne.s32.totalorder %s206, %s207
      %p219 = scmp.eq.s32.totalorder %s29, 1
      %p220 = por %p218, %p219
      %p222 = scmp.ne.s32.totalorder %s207, %s221
      %p223 = scmp.eq.s32.totalorder %s29, 0
      %p224 = por %p222, %p223
      %s225 = ssub.s32 %s23, %s30
      %p226 = scmp.eq.s32.totalorder %s225, 0
      %s228 = sadd.s32 %s227, 1
      %s229 = scalar_select %p226, %s227, %s228
      %p232 = pneg %p226
      %p233 = scmp.eq.s32.totalorder %s23, 1
      %p234 = por %p232, %p233
      %p235 = scmp.ne.s32.totalorder %s227, %s230
      %p236 = scmp.eq.s32.totalorder %s23, 0
      %p237 = por %p235, %p236
      %p238 = scmp.ne.s32.totalorder %s227, %s230
      %p239 = scmp.eq.s32.totalorder %s28, 1
      %p240 = por %p238, %p239
      %p241 = scmp.ne.s32.totalorder %s230, %s231
      %p242 = scmp.eq.s32.totalorder %s28, 0
      %p243 = por %p241, %p242
      %p244 = scmp.ne.s32.totalorder %s230, %s231
      %p245 = scmp.eq.s32.totalorder %s29, 1
      %p246 = por %p244, %p245
      %p248 = scmp.ne.s32.totalorder %s231, %s247
      %p249 = scmp.eq.s32.totalorder %s29, 0
      %p250 = por %p248, %p249
      %p251 = scmp.le.s32.totalorder 1, %s23
      %p252 = scmp.lt.s32.totalorder %s23, 3
      %p253 = pnand %p251, %p252
      %p254 = pneg %p253
      // Predicated region
      $region9: #{tpu_custom_call.1} parent=5 // pred_check
        _
      $region10: #{tpu_custom_call.1} parent=5 // pred_check_branch
        %256 = sbr.rel (%p253) target = $region12
      $region11: #{tpu_custom_call.1} parent=5 // pred_region
        %s257 = ssub.s32 %s23, 1
        // Predicated region
        $region13: #{tpu_custom_call.1} parent=11 // pred_check
          %p258 = pneg %p70
        $region14: #{tpu_custom_call.1} parent=11 // pred_check_branch
          %260 = sbr.rel (%p258) target = $region16
        $region15: #{tpu_custom_call.1} parent=11 // pred_region
          %s262 = ssub.s32 1280, 1280
          %263 = vsyncadd [#allocation10], %s262
          %s264 = sshll.u32 [#allocation9], 4
          %s265 = int_to_ptr.vmem [resolvable:$true] %s264
          %270 = dma.hbm_to_vmem [thread:$0]  %s1, 1280, %s265, [#allocation10], 640, 640, 40
        $region16: #{tpu_custom_call.1} parent=11 // pred_fallthru
          _
        // Predicated region
        $region17: #{tpu_custom_call.1} parent=11 // pred_check
          %p271 = pneg %p91
        $region18: #{tpu_custom_call.1} parent=11 // pred_check_branch
          %273 = sbr.rel (%p271) target = $region20
        $region19: #{tpu_custom_call.1} parent=11 // pred_region
          _
        $region20: #{tpu_custom_call.1} parent=11 // pred_fallthru
          _
        // Predicated region
        $region21: #{tpu_custom_call.1} parent=11 // pred_check
          %p274 = pneg %p112
        $region22: #{tpu_custom_call.1} parent=11 // pred_check_branch
          %276 = sbr.rel (%p274) target = $region24
        $region23: #{tpu_custom_call.1} parent=11 // pred_region
          %s278 = ssub.s32 256, 256
          %279 = vsyncadd [#allocation10], %s278
          %s280 = sshll.u32 [#allocation11], 4
          %s281 = int_to_ptr.vmem [resolvable:$true] %s280
          %286 = dma.hbm_to_vmem [thread:$0]  %s3, 256, %s281, [#allocation10], 128, 128, 8
        $region24: #{tpu_custom_call.1} parent=11 // pred_fallthru
          _
        // Predicated region
        $region25: #{tpu_custom_call.1} parent=11 // pred_check
          %p287 = pneg %p133
        $region26: #{tpu_custom_call.1} parent=11 // pred_check_branch
          %289 = sbr.rel (%p287) target = $region28
        $region27: #{tpu_custom_call.1} parent=11 // pred_region
          _
        $region28: #{tpu_custom_call.1} parent=11 // pred_fallthru
          _
        // Predicated region
        $region29: #{tpu_custom_call.1} parent=11 // pred_check
          %p290 = pneg %p154
        $region30: #{tpu_custom_call.1} parent=11 // pred_check_branch
          %292 = sbr.rel (%p290) target = $region32
        $region31: #{tpu_custom_call.1} parent=11 // pred_region
          %s294 = ssub.s32 256, 256
          %295 = vsyncadd [#allocation13], %s294
          %s296 = sshll.u32 [#allocation12], 4
          %s297 = int_to_ptr.vmem [resolvable:$true] %s296
          %302 = dma.hbm_to_vmem [thread:$0]  %s5, 256, %s297, [#allocation13], 128, 128, 8
        $region32: #{tpu_custom_call.1} parent=11 // pred_fallthru
          _
        // Predicated region
        $region33: #{tpu_custom_call.1} parent=11 // pred_check
          %p303 = pneg %p175
        $region34: #{tpu_custom_call.1} parent=11 // pred_check_branch
          %305 = sbr.rel (%p303) target = $region36
        $region35: #{tpu_custom_call.1} parent=11 // pred_region
          _
        $region36: #{tpu_custom_call.1} parent=11 // pred_fallthru
          _
        // Predicated region
        $region37: #{tpu_custom_call.1} parent=11 // pred_check
          %p306 = pneg %p196
        $region38: #{tpu_custom_call.1} parent=11 // pred_check_branch
          %308 = sbr.rel (%p306) target = $region40
        $region39: #{tpu_custom_call.1} parent=11 // pred_region
          _
        $region40: #{tpu_custom_call.1} parent=11 // pred_fallthru
          _
        // Predicated region
        $region41: #{tpu_custom_call.1} parent=11 // pred_check
          %p309 = pneg %p217
        $region42: #{tpu_custom_call.1} parent=11 // pred_check_branch
          %311 = sbr.rel (%p309) target = $region44
        $region43: #{tpu_custom_call.1} parent=11 // pred_region
          _
        $region44: #{tpu_custom_call.1} parent=11 // pred_fallthru
          _
      $region12: #{tpu_custom_call.1} parent=5 // pred_fallthru
        _
      %p312 = scmp.lt.s32.totalorder %s23, 2
      // Predicated region
      $region45: #{tpu_custom_call.1} parent=5 // pred_check
        %p313 = pneg %p312
      $region46: #{tpu_custom_call.1} parent=5 // pred_check_branch
        %315 = sbr.rel (%p313) target = $region48
      $region47: #{tpu_custom_call.1} parent=5 // pred_region
        // Predicated region
        $region49: #{tpu_custom_call.1} parent=47 // pred_check
          %p316 = pneg %p43
        $region50: #{tpu_custom_call.1} parent=47 // pred_check_branch
          %318 = sbr.rel (%p316) target = $region52
        $region51: #{tpu_custom_call.1} parent=47 // pred_region
          %s319 = sand.u32 %s33, 1
          %s320 = scalar_lea.sflag [#allocation7], %s319
          %s321 = sand.u32 %s33, 1
          %s322 = smul.addr %s321, 128
          %s323 = scalar_lea.vmem [#allocation6], %s322
          %s325 = ssub.s32 2048, 2048
          %326 = vsyncadd %s320, %s325
          %s327 = smul.addr %s23, 16
          %s328 = smul.addr %s327, 128
          %s329 = scalar_lea.hbm %s0, %s328
          %s330 = sshll.u32 %s323, 4
          %s331 = int_to_ptr.vmem [resolvable:$true] %s330
          %336 = dma.hbm_to_vmem [thread:$0]  %s329, 2048, %s331, %s320, 256, 256, 16
        $region52: #{tpu_custom_call.1} parent=47 // pred_fallthru
          _
      $region48: #{tpu_custom_call.1} parent=5 // pred_fallthru
        _
      %p337 = scmp.le.s32.totalorder 1, %s23
      %p338 = scmp.lt.s32.totalorder %s23, 3
      %p339 = pnand %p337, %p338
      %p340 = pneg %p339
      // Predicated region
      $region53: #{tpu_custom_call.1} parent=5 // pred_check
        _
      $region54: #{tpu_custom_call.1} parent=5 // pred_check_branch
        %342 = sbr.rel (%p339) target = $region56
      $region55: #{tpu_custom_call.1} parent=5 // pred_region
        %s343 = ssub.s32 %s23, 1
        %s344 = sand.u32 %s36, 1
        %s345 = scalar_lea.sflag [#allocation7], %s344
        %s346 = sand.u32 %s36, 1
        %s347 = smul.addr %s346, 128
        %s348 = scalar_lea.vmem [#allocation6], %s347
        // Predicated region
        $region57: #{tpu_custom_call.1} parent=55 // pred_check
          %p349 = pneg %p49
        $region58: #{tpu_custom_call.1} parent=55 // pred_check_branch
          %351 = sbr.rel (%p349) target = $region60
        $region59: #{tpu_custom_call.1} parent=55 // pred_region
          %352 = dma.done %s345, 2048
        $region60: #{tpu_custom_call.1} parent=55 // pred_fallthru
          _
        // Predicated region
        $region61: #{tpu_custom_call.1} parent=55 // pred_check
          %p353 = pneg %p70
        $region62: #{tpu_custom_call.1} parent=55 // pred_check_branch
          %355 = sbr.rel (%p353) target = $region64
        $region63: #{tpu_custom_call.1} parent=55 // pred_region
          %356 = dma.done [#allocation10], 1280
        $region64: #{tpu_custom_call.1} parent=55 // pred_fallthru
          _
        // Predicated region
        $region65: #{tpu_custom_call.1} parent=55 // pred_check
          %p357 = pneg %p112
        $region66: #{tpu_custom_call.1} parent=55 // pred_check_branch
          %359 = sbr.rel (%p357) target = $region68
        $region67: #{tpu_custom_call.1} parent=55 // pred_region
          %360 = dma.done [#allocation10], 256
        $region68: #{tpu_custom_call.1} parent=55 // pred_fallthru
          _
        // Predicated region
        $region69: #{tpu_custom_call.1} parent=55 // pred_check
          %p361 = pneg %p154
        $region70: #{tpu_custom_call.1} parent=55 // pred_check_branch
          %363 = sbr.rel (%p361) target = $region72
        $region71: #{tpu_custom_call.1} parent=55 // pred_region
          %364 = dma.done [#allocation13], 256
        $region72: #{tpu_custom_call.1} parent=55 // pred_fallthru
          _
        %s365 = sand.u32 %s36, 1
        %s366 = scalar_lea.sflag [#allocation7], %s365
        %s367 = sand.u32 %s36, 1
        %s368 = smul.addr %s367, 128
        %s369 = scalar_lea.vmem [#allocation6], %s368
        %p370 = pneg %p49
        %p371 = pneg %p46
        %p372 = pneg %p70
        %p373 = pneg %p67
        %p374 = pneg %p91
        %p375 = pneg %p88
        %p376 = pneg %p112
        %p377 = pneg %p109
        %p378 = pneg %p133
        %p379 = pneg %p130
        %p380 = pneg %p154
        %p381 = pneg %p151
        %p382 = pneg %p175
        %p383 = pneg %p172
        %p384 = pneg %p196
        %p385 = pneg %p193
        %p386 = pneg %p217
        %p387 = pneg %p214
        %p388 = pneg %p243
        %p389 = pneg %p240
        %s390 = sand.u32 %s230, 1
        %s391 = scalar_lea.sflag [#allocation8], %s390
        %s392 = sand.u32 %s230, 1
        %s393 = smul.addr %s392, 128
        %s394 = scalar_lea.vmem [#allocation14], %s393
        %v395 = vlaneseq
        %v396 = vand.u32 %v395, 127
        %v397 = vadd.s32 %v396, 128
        %vm398 = vcmp.lt.s32.totalorder %v396, 0
        %v399 = vsub.s32 0, %v396
        %v400 = vsel %vm398, %v399, %v396
        %v401 = vshrl.u32 %v400, 4
        %v402 = vand.u32 %v400, 15
        %v403 = vsub.s32 0, %v402
        %v404 = vsel %vm398, %v403, %v402
        %vm405 = vcmp.lt.s32.totalorder %v397, 0
        %v406 = vsub.s32 0, %v397
        %v407 = vsel %vm405, %v406, %v397
        %v408 = vshrl.u32 %v407, 4
        %v409 = vand.u32 %v407, 15
        %v410 = vsub.s32 0, %v409
        %v411 = vsel %vm405, %v410, %v409
        %vm412 = vcmp.ne.s32.totalorder %v404, 0
        %vm413 = vcmp.ne.s32.totalorder %v411, 0
        %vm414 = vcmp.lt.s32.totalorder %v404, 0
        %vm415 = vcmp.lt.s32.totalorder %v411, 0
        %vm416 = vmand %vm414, %vm412
        %vm417 = vmand %vm415, %vm413
        %v418 = vadd.s32 %v404, 16
        %v419 = vadd.s32 %v411, 16
        %v420 = vsel %vm416, %v418, %v404
        %v421 = vsel %vm417, %v419, %v411
        %vm422 = vcmp.ne.s32.totalorder %v420, 0
        %vm423 = vcmp.ne.s32.totalorder %v421, 0
        %vm424 = vcmp.ne.s32.totalorder %v420, 15
        %vm425 = vcmp.ne.s32.totalorder %v421, 15
        %426 = vst [vmem:[#allocation2] sm:$0xff] 0.0
        %427 = vst [vmem:[#allocation2 + $0x20] sm:$0xff] 0.0
        %428 = vst [vmem:[#allocation2 + $0x40] sm:$0xff] 0.0
        %429 = vst [vmem:[#allocation2 + $0x60] sm:$0xff] 0.0
        %430 = vst [vmem:[#allocation2 + $0x80] sm:$0xff] 0.0
        %431 = vst [vmem:[#allocation2 + $0xa0] sm:$0xff] 0.0
        %432 = vst [vmem:[#allocation2 + $0xc0] sm:$0xff] 0.0
        %433 = vst [vmem:[#allocation2 + $0xe0] sm:$0xff] 0.0
        %434 = vst [vmem:[#allocation2 + $0x18] sm:$0xff] 0.0
        %435 = vst [vmem:[#allocation2 + $0x38] sm:$0xff] 0.0
        %436 = vst [vmem:[#allocation2 + $0x58] sm:$0xff] 0.0
        %437 = vst [vmem:[#allocation2 + $0x78] sm:$0xff] 0.0
        %438 = vst [vmem:[#allocation2 + $0x98] sm:$0xff] 0.0
        %439 = vst [vmem:[#allocation2 + $0xb8] sm:$0xff] 0.0
        %440 = vst [vmem:[#allocation2 + $0xd8] sm:$0xff] 0.0
        %441 = vst [vmem:[#allocation2 + $0xf8] sm:$0xff] 0.0
        %v442 = vld [vmem:[%s348] sm:$0xff]
        %v443 = vld [vmem:[%s348 + $0x8] sm:$0xff]
        %v444 = vld [vmem:[%s348 + $0x10] sm:$0xff]
        %v445 = vld [vmem:[%s348 + $0x18] sm:$0xff]
        %v446 = vld [vmem:[%s348 + $0x20] sm:$0xff]
        %v447 = vld [vmem:[%s348 + $0x28] sm:$0xff]
        %v448 = vld [vmem:[%s348 + $0x30] sm:$0xff]
        %v449 = vld [vmem:[%s348 + $0x38] sm:$0xff]
        %v450 = vld [vmem:[%s348 + $0x40] sm:$0xff]
        %v451 = vld [vmem:[%s348 + $0x48] sm:$0xff]
        %v452 = vld [vmem:[%s348 + $0x50] sm:$0xff]
        %v453 = vld [vmem:[%s348 + $0x58] sm:$0xff]
        %v454 = vld [vmem:[%s348 + $0x60] sm:$0xff]
        %v455 = vld [vmem:[%s348 + $0x68] sm:$0xff]
        %v456 = vld [vmem:[%s348 + $0x70] sm:$0xff]
        %v457 = vld [vmem:[%s348 + $0x78] sm:$0xff]
        %458 = vst [vmem:[#allocation2 + $0x8] sm:$0xff] %v442
        %459 = vst [vmem:[#allocation2 + $0x10] sm:$0xff] %v443
        %460 = vst [vmem:[#allocation2 + $0x28] sm:$0xff] %v444
        %461 = vst [vmem:[#allocation2 + $0x30] sm:$0xff] %v445
        %462 = vst [vmem:[#allocation2 + $0x48] sm:$0xff] %v446
        %463 = vst [vmem:[#allocation2 + $0x50] sm:$0xff] %v447
        %464 = vst [vmem:[#allocation2 + $0x68] sm:$0xff] %v448
        %465 = vst [vmem:[#allocation2 + $0x70] sm:$0xff] %v449
        %466 = vst [vmem:[#allocation2 + $0x88] sm:$0xff] %v450
        %467 = vst [vmem:[#allocation2 + $0x90] sm:$0xff] %v451
        %468 = vst [vmem:[#allocation2 + $0xa8] sm:$0xff] %v452
        %469 = vst [vmem:[#allocation2 + $0xb0] sm:$0xff] %v453
        %470 = vst [vmem:[#allocation2 + $0xc8] sm:$0xff] %v454
        %471 = vst [vmem:[#allocation2 + $0xd0] sm:$0xff] %v455
        %472 = vst [vmem:[#allocation2 + $0xe8] sm:$0xff] %v456
        %473 = vst [vmem:[#allocation2 + $0xf0] sm:$0xff] %v457
        %v474 = vld [vmem:[#allocation2] sm:$0xff]
        %v475 = vld [vmem:[#allocation2 + $0x8] sm:$0xff]
        %v476 = vld [vmem:[#allocation2 + $0x10] sm:$0xff]
        %v477 = vld [vmem:[#allocation2 + $0x20] sm:$0xff]
        %v478 = vld [vmem:[#allocation2 + $0x28] sm:$0xff]
        %v479 = vld [vmem:[#allocation2 + $0x30] sm:$0xff]
        %v480 = vld [vmem:[#allocation2 + $0x40] sm:$0xff]
        %v481 = vld [vmem:[#allocation2 + $0x48] sm:$0xff]
        %v482 = vld [vmem:[#allocation2 + $0x50] sm:$0xff]
        %v483 = vld [vmem:[#allocation2 + $0x60] sm:$0xff]
        %v484 = vld [vmem:[#allocation2 + $0x68] sm:$0xff]
        %v485 = vld [vmem:[#allocation2 + $0x70] sm:$0xff]
        %v486 = vld [vmem:[#allocation2 + $0x80] sm:$0xff]
        %v487 = vld [vmem:[#allocation2 + $0x88] sm:$0xff]
        %v488 = vld [vmem:[#allocation2 + $0x90] sm:$0xff]
        %v489 = vld [vmem:[#allocation2 + $0xa0] sm:$0xff]
        %v490 = vld [vmem:[#allocation2 + $0xa8] sm:$0xff]
        %v491 = vld [vmem:[#allocation2 + $0xb0] sm:$0xff]
        %v492 = vld [vmem:[#allocation2 + $0xc0] sm:$0xff]
        %v493 = vld [vmem:[#allocation2 + $0xc8] sm:$0xff]
        %v494 = vld [vmem:[#allocation2 + $0xd0] sm:$0xff]
        %v495 = vld [vmem:[#allocation2 + $0xe0] sm:$0xff]
        %v496 = vld [vmem:[#allocation2 + $0xe8] sm:$0xff]
        %v497 = vld [vmem:[#allocation2 + $0xf0] sm:$0xff]
        %v498 = vsel %vm422, 1, 0
        %v499 = vsel %vm423, 1, 0
        %vm500 = vcmp.eq.s32.totalorder %v498, 1
        %vm501 = vcmp.eq.s32.totalorder %v499, 1
        %526 = vrot.lane.b32.xlu0 %v474, 17
        %v527 = vpop.permute.xlu0 %526
        %528 = vrot.lane.b32.xlu0 %v475, 17
        %v529 = vpop.permute.xlu0 %528
        %530 = vrot.lane.b32.xlu0 %v476, 17
        %v531 = vpop.permute.xlu0 %530
        %532 = vrot.lane.b32.xlu0 %v477, 17
        %v533 = vpop.permute.xlu0 %532
        %534 = vrot.lane.b32.xlu0 %v478, 17
        %v535 = vpop.permute.xlu0 %534
        %536 = vrot.lane.b32.xlu0 %v479, 17
        %v537 = vpop.permute.xlu0 %536
        %538 = vrot.lane.b32.xlu0 %v480, 17
        %v539 = vpop.permute.xlu0 %538
        %540 = vrot.lane.b32.xlu0 %v481, 17
        %v541 = vpop.permute.xlu0 %540
        %542 = vrot.lane.b32.xlu0 %v482, 17
        %v543 = vpop.permute.xlu0 %542
        %544 = vrot.lane.b32.xlu0 %v483, 17
        %v545 = vpop.permute.xlu0 %544
        %546 = vrot.lane.b32.xlu0 %v484, 17
        %v547 = vpop.permute.xlu0 %546
        %548 = vrot.lane.b32.xlu0 %v485, 17
        %v549 = vpop.permute.xlu0 %548
        %550 = vrot.lane.b32.xlu0 %v486, 17
        %v551 = vpop.permute.xlu0 %550
        %552 = vrot.lane.b32.xlu0 %v487, 17
        %v553 = vpop.permute.xlu0 %552
        %554 = vrot.lane.b32.xlu0 %v488, 17
        %v555 = vpop.permute.xlu0 %554
        %556 = vrot.lane.b32.xlu0 %v489, 17
        %v557 = vpop.permute.xlu0 %556
        %558 = vrot.lane.b32.xlu0 %v490, 17
        %v559 = vpop.permute.xlu0 %558
        %560 = vrot.lane.b32.xlu0 %v491, 17
        %v561 = vpop.permute.xlu0 %560
        %562 = vrot.lane.b32.xlu0 %v492, 17
        %v563 = vpop.permute.xlu0 %562
        %564 = vrot.lane.b32.xlu0 %v493, 17
        %v565 = vpop.permute.xlu0 %564
        %566 = vrot.lane.b32.xlu0 %v494, 17
        %v567 = vpop.permute.xlu0 %566
        %568 = vrot.lane.b32.xlu0 %v495, 17
        %v569 = vpop.permute.xlu0 %568
        %570 = vrot.lane.b32.xlu0 %v496, 17
        %v571 = vpop.permute.xlu0 %570
        %572 = vrot.lane.b32.xlu0 %v497, 17
        %v573 = vpop.permute.xlu0 %572
        %vm574 = vcmask 138240
        %v575 = vsel %vm574, %v527, %v529
        %v576 = vsel %vm574, %v529, %v531
        %v577 = vsel %vm574, %v533, %v535
        %v578 = vsel %vm574, %v535, %v537
        %v579 = vsel %vm574, %v539, %v541
        %v580 = vsel %vm574, %v541, %v543
        %v581 = vsel %vm574, %v545, %v547
        %v582 = vsel %vm574, %v547, %v549
        %v583 = vsel %vm574, %v551, %v553
        %v584 = vsel %vm574, %v553, %v555
        %v585 = vsel %vm574, %v557, %v559
        %v586 = vsel %vm574, %v559, %v561
        %v587 = vsel %vm574, %v563, %v565
        %v588 = vsel %vm574, %v565, %v567
        %v589 = vsel %vm574, %v569, %v571
        %v590 = vsel %vm574, %v571, %v573
        %v607 = vsel %vm500, %v575, 0.0
        %v608 = vsel %vm501, %v576, 0.0
        %v609 = vsel %vm500, %v577, 0.0
        %v610 = vsel %vm501, %v578, 0.0
        %v611 = vsel %vm500, %v579, 0.0
        %v612 = vsel %vm501, %v580, 0.0
        %v613 = vsel %vm500, %v581, 0.0
        %v614 = vsel %vm501, %v582, 0.0
        %v615 = vsel %vm500, %v583, 0.0
        %v616 = vsel %vm501, %v584, 0.0
        %v617 = vsel %vm500, %v585, 0.0
        %v618 = vsel %vm501, %v586, 0.0
        %v619 = vsel %vm500, %v587, 0.0
        %v620 = vsel %vm501, %v588, 0.0
        %v621 = vsel %vm500, %v589, 0.0
        %v622 = vsel %vm501, %v590, 0.0
        %623 = vst [vmem:[#allocation3] sm:$0xff] %v607
        %624 = vst [vmem:[#allocation3 + $0x8] sm:$0xff] %v608
        %625 = vst [vmem:[#allocation3 + $0x10] sm:$0xff] %v609
        %626 = vst [vmem:[#allocation3 + $0x18] sm:$0xff] %v610
        %627 = vst [vmem:[#allocation3 + $0x20] sm:$0xff] %v611
        %628 = vst [vmem:[#allocation3 + $0x28] sm:$0xff] %v612
        %629 = vst [vmem:[#allocation3 + $0x30] sm:$0xff] %v613
        %630 = vst [vmem:[#allocation3 + $0x38] sm:$0xff] %v614
        %631 = vst [vmem:[#allocation3 + $0x40] sm:$0xff] %v615
        %632 = vst [vmem:[#allocation3 + $0x48] sm:$0xff] %v616
        %633 = vst [vmem:[#allocation3 + $0x50] sm:$0xff] %v617
        %634 = vst [vmem:[#allocation3 + $0x58] sm:$0xff] %v618
        %635 = vst [vmem:[#allocation3 + $0x60] sm:$0xff] %v619
        %636 = vst [vmem:[#allocation3 + $0x68] sm:$0xff] %v620
        %637 = vst [vmem:[#allocation3 + $0x70] sm:$0xff] %v621
        %638 = vst [vmem:[#allocation3 + $0x78] sm:$0xff] %v622
        %v639 = vld [vmem:[#allocation2] sm:$0xff]
        %v640 = vld [vmem:[#allocation2 + $0x8] sm:$0xff]
        %v641 = vld [vmem:[#allocation2 + $0x10] sm:$0xff]
        %v642 = vld [vmem:[#allocation2 + $0x20] sm:$0xff]
        %v643 = vld [vmem:[#allocation2 + $0x28] sm:$0xff]
        %v644 = vld [vmem:[#allocation2 + $0x30] sm:$0xff]
        %v645 = vld [vmem:[#allocation2 + $0x40] sm:$0xff]
        %v646 = vld [vmem:[#allocation2 + $0x48] sm:$0xff]
        %v647 = vld [vmem:[#allocation2 + $0x50] sm:$0xff]
        %v648 = vld [vmem:[#allocation2 + $0x60] sm:$0xff]
        %v649 = vld [vmem:[#allocation2 + $0x68] sm:$0xff]
        %v650 = vld [vmem:[#allocation2 + $0x70] sm:$0xff]
        %v651 = vld [vmem:[#allocation2 + $0x80] sm:$0xff]
        %v652 = vld [vmem:[#allocation2 + $0x88] sm:$0xff]
        %v653 = vld [vmem:[#allocation2 + $0x90] sm:$0xff]
        %v654 = vld [vmem:[#allocation2 + $0xa0] sm:$0xff]
        %v655 = vld [vmem:[#allocation2 + $0xa8] sm:$0xff]
        %v656 = vld [vmem:[#allocation2 + $0xb0] sm:$0xff]
        %v657 = vld [vmem:[#allocation2 + $0xc0] sm:$0xff]
        %v658 = vld [vmem:[#allocation2 + $0xc8] sm:$0xff]
        %v659 = vld [vmem:[#allocation2 + $0xd0] sm:$0xff]
        %v660 = vld [vmem:[#allocation2 + $0xe0] sm:$0xff]
        %v661 = vld [vmem:[#allocation2 + $0xe8] sm:$0xff]
        %v662 = vld [vmem:[#allocation2 + $0xf0] sm:$0xff]
        %687 = vrot.lane.b32.xlu0 %v639, 1
        %v688 = vpop.permute.xlu0 %687
        %689 = vrot.lane.b32.xlu0 %v640, 1
        %v690 = vpop.permute.xlu0 %689
        %691 = vrot.lane.b32.xlu0 %v641, 1
        %v692 = vpop.permute.xlu0 %691
        %693 = vrot.lane.b32.xlu0 %v642, 1
        %v694 = vpop.permute.xlu0 %693
        %695 = vrot.lane.b32.xlu0 %v643, 1
        %v696 = vpop.permute.xlu0 %695
        %697 = vrot.lane.b32.xlu0 %v644, 1
        %v698 = vpop.permute.xlu0 %697
        %699 = vrot.lane.b32.xlu0 %v645, 1
        %v700 = vpop.permute.xlu0 %699
        %701 = vrot.lane.b32.xlu0 %v646, 1
        %v702 = vpop.permute.xlu0 %701
        %703 = vrot.lane.b32.xlu0 %v647, 1
        %v704 = vpop.permute.xlu0 %703
        %705 = vrot.lane.b32.xlu0 %v648, 1
        %v706 = vpop.permute.xlu0 %705
        %707 = vrot.lane.b32.xlu0 %v649, 1
        %v708 = vpop.permute.xlu0 %707
        %709 = vrot.lane.b32.xlu0 %v650, 1
        %v710 = vpop.permute.xlu0 %709
        %711 = vrot.lane.b32.xlu0 %v651, 1
        %v712 = vpop.permute.xlu0 %711
        %713 = vrot.lane.b32.xlu0 %v652, 1
        %v714 = vpop.permute.xlu0 %713
        %715 = vrot.lane.b32.xlu0 %v653, 1
        %v716 = vpop.permute.xlu0 %715
        %717 = vrot.lane.b32.xlu0 %v654, 1
        %v718 = vpop.permute.xlu0 %717
        %719 = vrot.lane.b32.xlu0 %v655, 1
        %v720 = vpop.permute.xlu0 %719
        %721 = vrot.lane.b32.xlu0 %v656, 1
        %v722 = vpop.permute.xlu0 %721
        %723 = vrot.lane.b32.xlu0 %v657, 1
        %v724 = vpop.permute.xlu0 %723
        %725 = vrot.lane.b32.xlu0 %v658, 1
        %v726 = vpop.permute.xlu0 %725
        %727 = vrot.lane.b32.xlu0 %v659, 1
        %v728 = vpop.permute.xlu0 %727
        %729 = vrot.lane.b32.xlu0 %v660, 1
        %v730 = vpop.permute.xlu0 %729
        %731 = vrot.lane.b32.xlu0 %v661, 1
        %v732 = vpop.permute.xlu0 %731
        %733 = vrot.lane.b32.xlu0 %v662, 1
        %v734 = vpop.permute.xlu0 %733
        %vm735 = vcmask 7168
        %v736 = vsel %vm735, %v688, %v690
        %v737 = vsel %vm735, %v690, %v692
        %v738 = vsel %vm735, %v694, %v696
        %v739 = vsel %vm735, %v696, %v698
        %v740 = vsel %vm735, %v700, %v702
        %v741 = vsel %vm735, %v702, %v704
        %v742 = vsel %vm735, %v706, %v708
        %v743 = vsel %vm735, %v708, %v710
        %v744 = vsel %vm735, %v712, %v714
        %v745 = vsel %vm735, %v714, %v716
        %v746 = vsel %vm735, %v718, %v720
        %v747 = vsel %vm735, %v720, %v722
        %v748 = vsel %vm735, %v724, %v726
        %v749 = vsel %vm735, %v726, %v728
        %v750 = vsel %vm735, %v730, %v732
        %v751 = vsel %vm735, %v732, %v734
        %v768 = vsel %vm500, %v736, 0.0
        %v769 = vsel %vm501, %v737, 0.0
        %v770 = vsel %vm500, %v738, 0.0
        %v771 = vsel %vm501, %v739, 0.0
        %v772 = vsel %vm500, %v740, 0.0
        %v773 = vsel %vm501, %v741, 0.0
        %v774 = vsel %vm500, %v742, 0.0
        %v775 = vsel %vm501, %v743, 0.0
        %v776 = vsel %vm500, %v744, 0.0
        %v777 = vsel %vm501, %v745, 0.0
        %v778 = vsel %vm500, %v746, 0.0
        %v779 = vsel %vm501, %v747, 0.0
        %v780 = vsel %vm500, %v748, 0.0
        %v781 = vsel %vm501, %v749, 0.0
        %v782 = vsel %vm500, %v750, 0.0
        %v783 = vsel %vm501, %v751, 0.0
        %784 = vst [vmem:[#allocation3 + $0x180] sm:$0xff] %v768
        %785 = vst [vmem:[#allocation3 + $0x188] sm:$0xff] %v769
        %786 = vst [vmem:[#allocation3 + $0x190] sm:$0xff] %v770
        %787 = vst [vmem:[#allocation3 + $0x198] sm:$0xff] %v771
        %788 = vst [vmem:[#allocation3 + $0x1a0] sm:$0xff] %v772
        %789 = vst [vmem:[#allocation3 + $0x1a8] sm:$0xff] %v773
        %790 = vst [vmem:[#allocation3 + $0x1b0] sm:$0xff] %v774
        %791 = vst [vmem:[#allocation3 + $0x1b8] sm:$0xff] %v775
        %792 = vst [vmem:[#allocation3 + $0x1c0] sm:$0xff] %v776
        %793 = vst [vmem:[#allocation3 + $0x1c8] sm:$0xff] %v777
        %794 = vst [vmem:[#allocation3 + $0x1d0] sm:$0xff] %v778
        %795 = vst [vmem:[#allocation3 + $0x1d8] sm:$0xff] %v779
        %796 = vst [vmem:[#allocation3 + $0x1e0] sm:$0xff] %v780
        %797 = vst [vmem:[#allocation3 + $0x1e8] sm:$0xff] %v781
        %798 = vst [vmem:[#allocation3 + $0x1f0] sm:$0xff] %v782
        %799 = vst [vmem:[#allocation3 + $0x1f8] sm:$0xff] %v783
        %v800 = vld [vmem:[#allocation2 + $0x8] sm:$0xff]
        %v801 = vld [vmem:[#allocation2 + $0x10] sm:$0xff]
        %v802 = vld [vmem:[#allocation2 + $0x18] sm:$0xff]
        %v803 = vld [vmem:[#allocation2 + $0x28] sm:$0xff]
        %v804 = vld [vmem:[#allocation2 + $0x30] sm:$0xff]
        %v805 = vld [vmem:[#allocation2 + $0x38] sm:$0xff]
        %v806 = vld [vmem:[#allocation2 + $0x48] sm:$0xff]
        %v807 = vld [vmem:[#allocation2 + $0x50] sm:$0xff]
        %v808 = vld [vmem:[#allocation2 + $0x58] sm:$0xff]
        %v809 = vld [vmem:[#allocation2 + $0x68] sm:$0xff]
        %v810 = vld [vmem:[#allocation2 + $0x70] sm:$0xff]
        %v811 = vld [vmem:[#allocation2 + $0x78] sm:$0xff]
        %v812 = vld [vmem:[#allocation2 + $0x88] sm:$0xff]
        %v813 = vld [vmem:[#allocation2 + $0x90] sm:$0xff]
        %v814 = vld [vmem:[#allocation2 + $0x98] sm:$0xff]
        %v815 = vld [vmem:[#allocation2 + $0xa8] sm:$0xff]
        %v816 = vld [vmem:[#allocation2 + $0xb0] sm:$0xff]
        %v817 = vld [vmem:[#allocation2 + $0xb8] sm:$0xff]
        %v818 = vld [vmem:[#allocation2 + $0xc8] sm:$0xff]
        %v819 = vld [vmem:[#allocation2 + $0xd0] sm:$0xff]
        %v820 = vld [vmem:[#allocation2 + $0xd8] sm:$0xff]
        %v821 = vld [vmem:[#allocation2 + $0xe8] sm:$0xff]
        %v822 = vld [vmem:[#allocation2 + $0xf0] sm:$0xff]
        %v823 = vld [vmem:[#allocation2 + $0xf8] sm:$0xff]
        %848 = vrot.lane.b32.xlu0 %v800, 113
        %v849 = vpop.permute.xlu0 %848
        %850 = vrot.lane.b32.xlu0 %v801, 113
        %v851 = vpop.permute.xlu0 %850
        %852 = vrot.lane.b32.xlu0 %v802, 113
        %v853 = vpop.permute.xlu0 %852
        %854 = vrot.lane.b32.xlu0 %v803, 113
        %v855 = vpop.permute.xlu0 %854
        %856 = vrot.lane.b32.xlu0 %v804, 113
        %v857 = vpop.permute.xlu0 %856
        %858 = vrot.lane.b32.xlu0 %v805, 113
        %v859 = vpop.permute.xlu0 %858
        %860 = vrot.lane.b32.xlu0 %v806, 113
        %v861 = vpop.permute.xlu0 %860
        %862 = vrot.lane.b32.xlu0 %v807, 113
        %v863 = vpop.permute.xlu0 %862
        %864 = vrot.lane.b32.xlu0 %v808, 113
        %v865 = vpop.permute.xlu0 %864
        %866 = vrot.lane.b32.xlu0 %v809, 113
        %v867 = vpop.permute.xlu0 %866
        %868 = vrot.lane.b32.xlu0 %v810, 113
        %v869 = vpop.permute.xlu0 %868
        %870 = vrot.lane.b32.xlu0 %v811, 113
        %v871 = vpop.permute.xlu0 %870
        %872 = vrot.lane.b32.xlu0 %v812, 113
        %v873 = vpop.permute.xlu0 %872
        %874 = vrot.lane.b32.xlu0 %v813, 113
        %v875 = vpop.permute.xlu0 %874
        %876 = vrot.lane.b32.xlu0 %v814, 113
        %v877 = vpop.permute.xlu0 %876
        %878 = vrot.lane.b32.xlu0 %v815, 113
        %v879 = vpop.permute.xlu0 %878
        %880 = vrot.lane.b32.xlu0 %v816, 113
        %v881 = vpop.permute.xlu0 %880
        %882 = vrot.lane.b32.xlu0 %v817, 113
        %v883 = vpop.permute.xlu0 %882
        %884 = vrot.lane.b32.xlu0 %v818, 113
        %v885 = vpop.permute.xlu0 %884
        %886 = vrot.lane.b32.xlu0 %v819, 113
        %v887 = vpop.permute.xlu0 %886
        %888 = vrot.lane.b32.xlu0 %v820, 113
        %v889 = vpop.permute.xlu0 %888
        %890 = vrot.lane.b32.xlu0 %v821, 113
        %v891 = vpop.permute.xlu0 %890
        %892 = vrot.lane.b32.xlu0 %v822, 113
        %v893 = vpop.permute.xlu0 %892
        %894 = vrot.lane.b32.xlu0 %v823, 113
        %v895 = vpop.permute.xlu0 %894
        %vm896 = vcmask 924672
        %v897 = vsel %vm896, %v849, %v851
        %v898 = vsel %vm896, %v851, %v853
        %v899 = vsel %vm896, %v855, %v857
        %v900 = vsel %vm896, %v857, %v859
        %v901 = vsel %vm896, %v861, %v863
        %v902 = vsel %vm896, %v863, %v865
        %v903 = vsel %vm896, %v867, %v869
        %v904 = vsel %vm896, %v869, %v871
        %v905 = vsel %vm896, %v873, %v875
        %v906 = vsel %vm896, %v875, %v877
        %v907 = vsel %vm896, %v879, %v881
        %v908 = vsel %vm896, %v881, %v883
        %v909 = vsel %vm896, %v885, %v887
        %v910 = vsel %vm896, %v887, %v889
        %v911 = vsel %vm896, %v891, %v893
        %v912 = vsel %vm896, %v893, %v895
        %v929 = vsel %vm500, %v897, 0.0
        %v930 = vsel %vm501, %v898, 0.0
        %v931 = vsel %vm500, %v899, 0.0
        %v932 = vsel %vm501, %v900, 0.0
        %v933 = vsel %vm500, %v901, 0.0
        %v934 = vsel %vm501, %v902, 0.0
        %v935 = vsel %vm500, %v903, 0.0
        %v936 = vsel %vm501, %v904, 0.0
        %v937 = vsel %vm500, %v905, 0.0
        %v938 = vsel %vm501, %v906, 0.0
        %v939 = vsel %vm500, %v907, 0.0
        %v940 = vsel %vm501, %v908, 0.0
        %v941 = vsel %vm500, %v909, 0.0
        %v942 = vsel %vm501, %v910, 0.0
        %v943 = vsel %vm500, %v911, 0.0
        %v944 = vsel %vm501, %v912, 0.0
        %945 = vst [vmem:[#allocation3 + $0x300] sm:$0xff] %v929
        %946 = vst [vmem:[#allocation3 + $0x308] sm:$0xff] %v930
        %947 = vst [vmem:[#allocation3 + $0x310] sm:$0xff] %v931
        %948 = vst [vmem:[#allocation3 + $0x318] sm:$0xff] %v932
        %949 = vst [vmem:[#allocation3 + $0x320] sm:$0xff] %v933
        %950 = vst [vmem:[#allocation3 + $0x328] sm:$0xff] %v934
        %951 = vst [vmem:[#allocation3 + $0x330] sm:$0xff] %v935
        %952 = vst [vmem:[#allocation3 + $0x338] sm:$0xff] %v936
        %953 = vst [vmem:[#allocation3 + $0x340] sm:$0xff] %v937
        %954 = vst [vmem:[#allocation3 + $0x348] sm:$0xff] %v938
        %955 = vst [vmem:[#allocation3 + $0x350] sm:$0xff] %v939
        %956 = vst [vmem:[#allocation3 + $0x358] sm:$0xff] %v940
        %957 = vst [vmem:[#allocation3 + $0x360] sm:$0xff] %v941
        %958 = vst [vmem:[#allocation3 + $0x368] sm:$0xff] %v942
        %959 = vst [vmem:[#allocation3 + $0x370] sm:$0xff] %v943
        %960 = vst [vmem:[#allocation3 + $0x378] sm:$0xff] %v944
        %v961 = vld [vmem:[#allocation2] sm:$0xff]
        %v962 = vld [vmem:[#allocation2 + $0x8] sm:$0xff]
        %v963 = vld [vmem:[#allocation2 + $0x10] sm:$0xff]
        %v964 = vld [vmem:[#allocation2 + $0x20] sm:$0xff]
        %v965 = vld [vmem:[#allocation2 + $0x28] sm:$0xff]
        %v966 = vld [vmem:[#allocation2 + $0x30] sm:$0xff]
        %v967 = vld [vmem:[#allocation2 + $0x40] sm:$0xff]
        %v968 = vld [vmem:[#allocation2 + $0x48] sm:$0xff]
        %v969 = vld [vmem:[#allocation2 + $0x50] sm:$0xff]
        %v970 = vld [vmem:[#allocation2 + $0x60] sm:$0xff]
        %v971 = vld [vmem:[#allocation2 + $0x68] sm:$0xff]
        %v972 = vld [vmem:[#allocation2 + $0x70] sm:$0xff]
        %v973 = vld [vmem:[#allocation2 + $0x80] sm:$0xff]
        %v974 = vld [vmem:[#allocation2 + $0x88] sm:$0xff]
        %v975 = vld [vmem:[#allocation2 + $0x90] sm:$0xff]
        %v976 = vld [vmem:[#allocation2 + $0xa0] sm:$0xff]
        %v977 = vld [vmem:[#allocation2 + $0xa8] sm:$0xff]
        %v978 = vld [vmem:[#allocation2 + $0xb0] sm:$0xff]
        %v979 = vld [vmem:[#allocation2 + $0xc0] sm:$0xff]
        %v980 = vld [vmem:[#allocation2 + $0xc8] sm:$0xff]
        %v981 = vld [vmem:[#allocation2 + $0xd0] sm:$0xff]
        %v982 = vld [vmem:[#allocation2 + $0xe0] sm:$0xff]
        %v983 = vld [vmem:[#allocation2 + $0xe8] sm:$0xff]
        %v984 = vld [vmem:[#allocation2 + $0xf0] sm:$0xff]
        %1009 = vrot.lane.b32.xlu0 %v961, 16
        %v1010 = vpop.permute.xlu0 %1009
        %1011 = vrot.lane.b32.xlu0 %v962, 16
        %v1012 = vpop.permute.xlu0 %1011
        %1013 = vrot.lane.b32.xlu0 %v963, 16
        %v1014 = vpop.permute.xlu0 %1013
        %1015 = vrot.lane.b32.xlu0 %v964, 16
        %v1016 = vpop.permute.xlu0 %1015
        %1017 = vrot.lane.b32.xlu0 %v965, 16
        %v1018 = vpop.permute.xlu0 %1017
        %1019 = vrot.lane.b32.xlu0 %v966, 16
        %v1020 = vpop.permute.xlu0 %1019
        %1021 = vrot.lane.b32.xlu0 %v967, 16
        %v1022 = vpop.permute.xlu0 %1021
        %1023 = vrot.lane.b32.xlu0 %v968, 16
        %v1024 = vpop.permute.xlu0 %1023
        %1025 = vrot.lane.b32.xlu0 %v969, 16
        %v1026 = vpop.permute.xlu0 %1025
        %1027 = vrot.lane.b32.xlu0 %v970, 16
        %v1028 = vpop.permute.xlu0 %1027
        %1029 = vrot.lane.b32.xlu0 %v971, 16
        %v1030 = vpop.permute.xlu0 %1029
        %1031 = vrot.lane.b32.xlu0 %v972, 16
        %v1032 = vpop.permute.xlu0 %1031
        %1033 = vrot.lane.b32.xlu0 %v973, 16
        %v1034 = vpop.permute.xlu0 %1033
        %1035 = vrot.lane.b32.xlu0 %v974, 16
        %v1036 = vpop.permute.xlu0 %1035
        %1037 = vrot.lane.b32.xlu0 %v975, 16
        %v1038 = vpop.permute.xlu0 %1037
        %1039 = vrot.lane.b32.xlu0 %v976, 16
        %v1040 = vpop.permute.xlu0 %1039
        %1041 = vrot.lane.b32.xlu0 %v977, 16
        %v1042 = vpop.permute.xlu0 %1041
        %1043 = vrot.lane.b32.xlu0 %v978, 16
        %v1044 = vpop.permute.xlu0 %1043
        %1045 = vrot.lane.b32.xlu0 %v979, 16
        %v1046 = vpop.permute.xlu0 %1045
        %1047 = vrot.lane.b32.xlu0 %v980, 16
        %v1048 = vpop.permute.xlu0 %1047
        %1049 = vrot.lane.b32.xlu0 %v981, 16
        %v1050 = vpop.permute.xlu0 %1049
        %1051 = vrot.lane.b32.xlu0 %v982, 16
        %v1052 = vpop.permute.xlu0 %1051
        %1053 = vrot.lane.b32.xlu0 %v983, 16
        %v1054 = vpop.permute.xlu0 %1053
        %1055 = vrot.lane.b32.xlu0 %v984, 16
        %v1056 = vpop.permute.xlu0 %1055
        %vm1057 = vcmask 130048
        %v1058 = vsel %vm1057, %v1010, %v1012
        %v1059 = vsel %vm1057, %v1012, %v1014
        %v1060 = vsel %vm1057, %v1016, %v1018
        %v1061 = vsel %vm1057, %v1018, %v1020
        %v1062 = vsel %vm1057, %v1022, %v1024
        %v1063 = vsel %vm1057, %v1024, %v1026
        %v1064 = vsel %vm1057, %v1028, %v1030
        %v1065 = vsel %vm1057, %v1030, %v1032
        %v1066 = vsel %vm1057, %v1034, %v1036
        %v1067 = vsel %vm1057, %v1036, %v1038
        %v1068 = vsel %vm1057, %v1040, %v1042
        %v1069 = vsel %vm1057, %v1042, %v1044
        %v1070 = vsel %vm1057, %v1046, %v1048
        %v1071 = vsel %vm1057, %v1048, %v1050
        %v1072 = vsel %vm1057, %v1052, %v1054
        %v1073 = vsel %vm1057, %v1054, %v1056
        %1090 = vst [vmem:[#allocation3 + $0x80] sm:$0xff] %v1058
        %1091 = vst [vmem:[#allocation3 + $0x88] sm:$0xff] %v1059
        %1092 = vst [vmem:[#allocation3 + $0x90] sm:$0xff] %v1060
        %1093 = vst [vmem:[#allocation3 + $0x98] sm:$0xff] %v1061
        %1094 = vst [vmem:[#allocation3 + $0xa0] sm:$0xff] %v1062
        %1095 = vst [vmem:[#allocation3 + $0xa8] sm:$0xff] %v1063
        %1096 = vst [vmem:[#allocation3 + $0xb0] sm:$0xff] %v1064
        %1097 = vst [vmem:[#allocation3 + $0xb8] sm:$0xff] %v1065
        %1098 = vst [vmem:[#allocation3 + $0xc0] sm:$0xff] %v1066
        %1099 = vst [vmem:[#allocation3 + $0xc8] sm:$0xff] %v1067
        %1100 = vst [vmem:[#allocation3 + $0xd0] sm:$0xff] %v1068
        %1101 = vst [vmem:[#allocation3 + $0xd8] sm:$0xff] %v1069
        %1102 = vst [vmem:[#allocation3 + $0xe0] sm:$0xff] %v1070
        %1103 = vst [vmem:[#allocation3 + $0xe8] sm:$0xff] %v1071
        %1104 = vst [vmem:[#allocation3 + $0xf0] sm:$0xff] %v1072
        %1105 = vst [vmem:[#allocation3 + $0xf8] sm:$0xff] %v1073
        %v1106 = vld [vmem:[#allocation2 + $0x8] sm:$0xff]
        %v1107 = vld [vmem:[#allocation2 + $0x10] sm:$0xff]
        %v1108 = vld [vmem:[#allocation2 + $0x28] sm:$0xff]
        %v1109 = vld [vmem:[#allocation2 + $0x30] sm:$0xff]
        %v1110 = vld [vmem:[#allocation2 + $0x48] sm:$0xff]
        %v1111 = vld [vmem:[#allocation2 + $0x50] sm:$0xff]
        %v1112 = vld [vmem:[#allocation2 + $0x68] sm:$0xff]
        %v1113 = vld [vmem:[#allocation2 + $0x70] sm:$0xff]
        %v1114 = vld [vmem:[#allocation2 + $0x88] sm:$0xff]
        %v1115 = vld [vmem:[#allocation2 + $0x90] sm:$0xff]
        %v1116 = vld [vmem:[#allocation2 + $0xa8] sm:$0xff]
        %v1117 = vld [vmem:[#allocation2 + $0xb0] sm:$0xff]
        %v1118 = vld [vmem:[#allocation2 + $0xc8] sm:$0xff]
        %v1119 = vld [vmem:[#allocation2 + $0xd0] sm:$0xff]
        %v1120 = vld [vmem:[#allocation2 + $0xe8] sm:$0xff]
        %v1121 = vld [vmem:[#allocation2 + $0xf0] sm:$0xff]
        %1122 = vst [vmem:[#allocation3 + $0x200] sm:$0xff] %v1106
        %1123 = vst [vmem:[#allocation3 + $0x208] sm:$0xff] %v1107
        %1124 = vst [vmem:[#allocation3 + $0x210] sm:$0xff] %v1108
        %1125 = vst [vmem:[#allocation3 + $0x218] sm:$0xff] %v1109
        %1126 = vst [vmem:[#allocation3 + $0x220] sm:$0xff] %v1110
        %1127 = vst [vmem:[#allocation3 + $0x228] sm:$0xff] %v1111
        %1128 = vst [vmem:[#allocation3 + $0x230] sm:$0xff] %v1112
        %1129 = vst [vmem:[#allocation3 + $0x238] sm:$0xff] %v1113
        %1130 = vst [vmem:[#allocation3 + $0x240] sm:$0xff] %v1114
        %1131 = vst [vmem:[#allocation3 + $0x248] sm:$0xff] %v1115
        %1132 = vst [vmem:[#allocation3 + $0x250] sm:$0xff] %v1116
        %1133 = vst [vmem:[#allocation3 + $0x258] sm:$0xff] %v1117
        %1134 = vst [vmem:[#allocation3 + $0x260] sm:$0xff] %v1118
        %1135 = vst [vmem:[#allocation3 + $0x268] sm:$0xff] %v1119
        %1136 = vst [vmem:[#allocation3 + $0x270] sm:$0xff] %v1120
        %1137 = vst [vmem:[#allocation3 + $0x278] sm:$0xff] %v1121
        %v1138 = vld [vmem:[#allocation2 + $0x8] sm:$0xff]
        %v1139 = vld [vmem:[#allocation2 + $0x10] sm:$0xff]
        %v1140 = vld [vmem:[#allocation2 + $0x18] sm:$0xff]
        %v1141 = vld [vmem:[#allocation2 + $0x28] sm:$0xff]
        %v1142 = vld [vmem:[#allocation2 + $0x30] sm:$0xff]
        %v1143 = vld [vmem:[#allocation2 + $0x38] sm:$0xff]
        %v1144 = vld [vmem:[#allocation2 + $0x48] sm:$0xff]
        %v1145 = vld [vmem:[#allocation2 + $0x50] sm:$0xff]
        %v1146 = vld [vmem:[#allocation2 + $0x58] sm:$0xff]
        %v1147 = vld [vmem:[#allocation2 + $0x68] sm:$0xff]
        %v1148 = vld [vmem:[#allocation2 + $0x70] sm:$0xff]
        %v1149 = vld [vmem:[#allocation2 + $0x78] sm:$0xff]
        %v1150 = vld [vmem:[#allocation2 + $0x88] sm:$0xff]
        %v1151 = vld [vmem:[#allocation2 + $0x90] sm:$0xff]
        %v1152 = vld [vmem:[#allocation2 + $0x98] sm:$0xff]
        %v1153 = vld [vmem:[#allocation2 + $0xa8] sm:$0xff]
        %v1154 = vld [vmem:[#allocation2 + $0xb0] sm:$0xff]
        %v1155 = vld [vmem:[#allocation2 + $0xb8] sm:$0xff]
        %v1156 = vld [vmem:[#allocation2 + $0xc8] sm:$0xff]
        %v1157 = vld [vmem:[#allocation2 + $0xd0] sm:$0xff]
        %v1158 = vld [vmem:[#allocation2 + $0xd8] sm:$0xff]
        %v1159 = vld [vmem:[#allocation2 + $0xe8] sm:$0xff]
        %v1160 = vld [vmem:[#allocation2 + $0xf0] sm:$0xff]
        %v1161 = vld [vmem:[#allocation2 + $0xf8] sm:$0xff]
        %1186 = vrot.lane.b32.xlu0 %v1138, 112
        %v1187 = vpop.permute.xlu0 %1186
        %1188 = vrot.lane.b32.xlu0 %v1139, 112
        %v1189 = vpop.permute.xlu0 %1188
        %1190 = vrot.lane.b32.xlu0 %v1140, 112
        %v1191 = vpop.permute.xlu0 %1190
        %1192 = vrot.lane.b32.xlu0 %v1141, 112
        %v1193 = vpop.permute.xlu0 %1192
        %1194 = vrot.lane.b32.xlu0 %v1142, 112
        %v1195 = vpop.permute.xlu0 %1194
        %1196 = vrot.lane.b32.xlu0 %v1143, 112
        %v1197 = vpop.permute.xlu0 %1196
        %1198 = vrot.lane.b32.xlu0 %v1144, 112
        %v1199 = vpop.permute.xlu0 %1198
        %1200 = vrot.lane.b32.xlu0 %v1145, 112
        %v1201 = vpop.permute.xlu0 %1200
        %1202 = vrot.lane.b32.xlu0 %v1146, 112
        %v1203 = vpop.permute.xlu0 %1202
        %1204 = vrot.lane.b32.xlu0 %v1147, 112
        %v1205 = vpop.permute.xlu0 %1204
        %1206 = vrot.lane.b32.xlu0 %v1148, 112
        %v1207 = vpop.permute.xlu0 %1206
        %1208 = vrot.lane.b32.xlu0 %v1149, 112
        %v1209 = vpop.permute.xlu0 %1208
        %1210 = vrot.lane.b32.xlu0 %v1150, 112
        %v1211 = vpop.permute.xlu0 %1210
        %1212 = vrot.lane.b32.xlu0 %v1151, 112
        %v1213 = vpop.permute.xlu0 %1212
        %1214 = vrot.lane.b32.xlu0 %v1152, 112
        %v1215 = vpop.permute.xlu0 %1214
        %1216 = vrot.lane.b32.xlu0 %v1153, 112
        %v1217 = vpop.permute.xlu0 %1216
        %1218 = vrot.lane.b32.xlu0 %v1154, 112
        %v1219 = vpop.permute.xlu0 %1218
        %1220 = vrot.lane.b32.xlu0 %v1155, 112
        %v1221 = vpop.permute.xlu0 %1220
        %1222 = vrot.lane.b32.xlu0 %v1156, 112
        %v1223 = vpop.permute.xlu0 %1222
        %1224 = vrot.lane.b32.xlu0 %v1157, 112
        %v1225 = vpop.permute.xlu0 %1224
        %1226 = vrot.lane.b32.xlu0 %v1158, 112
        %v1227 = vpop.permute.xlu0 %1226
        %1228 = vrot.lane.b32.xlu0 %v1159, 112
        %v1229 = vpop.permute.xlu0 %1228
        %1230 = vrot.lane.b32.xlu0 %v1160, 112
        %v1231 = vpop.permute.xlu0 %1230
        %1232 = vrot.lane.b32.xlu0 %v1161, 112
        %v1233 = vpop.permute.xlu0 %1232
        %vm1234 = vcmask 916480
        %v1235 = vsel %vm1234, %v1187, %v1189
        %v1236 = vsel %vm1234, %v1189, %v1191
        %v1237 = vsel %vm1234, %v1193, %v1195
        %v1238 = vsel %vm1234, %v1195, %v1197
        %v1239 = vsel %vm1234, %v1199, %v1201
        %v1240 = vsel %vm1234, %v1201, %v1203
        %v1241 = vsel %vm1234, %v1205, %v1207
        %v1242 = vsel %vm1234, %v1207, %v1209
        %v1243 = vsel %vm1234, %v1211, %v1213
        %v1244 = vsel %vm1234, %v1213, %v1215
        %v1245 = vsel %vm1234, %v1217, %v1219
        %v1246 = vsel %vm1234, %v1219, %v1221
        %v1247 = vsel %vm1234, %v1223, %v1225
        %v1248 = vsel %vm1234, %v1225, %v1227
        %v1249 = vsel %vm1234, %v1229, %v1231
        %v1250 = vsel %vm1234, %v1231, %v1233
        %1267 = vst [vmem:[#allocation3 + $0x380] sm:$0xff] %v1235
        %1268 = vst [vmem:[#allocation3 + $0x388] sm:$0xff] %v1236
        %1269 = vst [vmem:[#allocation3 + $0x390] sm:$0xff] %v1237
        %1270 = vst [vmem:[#allocation3 + $0x398] sm:$0xff] %v1238
        %1271 = vst [vmem:[#allocation3 + $0x3a0] sm:$0xff] %v1239
        %1272 = vst [vmem:[#allocation3 + $0x3a8] sm:$0xff] %v1240
        %1273 = vst [vmem:[#allocation3 + $0x3b0] sm:$0xff] %v1241
        %1274 = vst [vmem:[#allocation3 + $0x3b8] sm:$0xff] %v1242
        %1275 = vst [vmem:[#allocation3 + $0x3c0] sm:$0xff] %v1243
        %1276 = vst [vmem:[#allocation3 + $0x3c8] sm:$0xff] %v1244
        %1277 = vst [vmem:[#allocation3 + $0x3d0] sm:$0xff] %v1245
        %1278 = vst [vmem:[#allocation3 + $0x3d8] sm:$0xff] %v1246
        %1279 = vst [vmem:[#allocation3 + $0x3e0] sm:$0xff] %v1247
        %1280 = vst [vmem:[#allocation3 + $0x3e8] sm:$0xff] %v1248
        %1281 = vst [vmem:[#allocation3 + $0x3f0] sm:$0xff] %v1249
        %1282 = vst [vmem:[#allocation3 + $0x3f8] sm:$0xff] %v1250
        %v1283 = vld [vmem:[#allocation2] sm:$0xff]
        %v1284 = vld [vmem:[#allocation2 + $0x8] sm:$0xff]
        %v1285 = vld [vmem:[#allocation2 + $0x10] sm:$0xff]
        %v1286 = vld [vmem:[#allocation2 + $0x20] sm:$0xff]
        %v1287 = vld [vmem:[#allocation2 + $0x28] sm:$0xff]
        %v1288 = vld [vmem:[#allocation2 + $0x30] sm:$0xff]
        %v1289 = vld [vmem:[#allocation2 + $0x40] sm:$0xff]
        %v1290 = vld [vmem:[#allocation2 + $0x48] sm:$0xff]
        %v1291 = vld [vmem:[#allocation2 + $0x50] sm:$0xff]
        %v1292 = vld [vmem:[#allocation2 + $0x60] sm:$0xff]
        %v1293 = vld [vmem:[#allocation2 + $0x68] sm:$0xff]
        %v1294 = vld [vmem:[#allocation2 + $0x70] sm:$0xff]
        %v1295 = vld [vmem:[#allocation2 + $0x80] sm:$0xff]
        %v1296 = vld [vmem:[#allocation2 + $0x88] sm:$0xff]
        %v1297 = vld [vmem:[#allocation2 + $0x90] sm:$0xff]
        %v1298 = vld [vmem:[#allocation2 + $0xa0] sm:$0xff]
        %v1299 = vld [vmem:[#allocation2 + $0xa8] sm:$0xff]
        %v1300 = vld [vmem:[#allocation2 + $0xb0] sm:$0xff]
        %v1301 = vld [vmem:[#allocation2 + $0xc0] sm:$0xff]
        %v1302 = vld [vmem:[#allocation2 + $0xc8] sm:$0xff]
        %v1303 = vld [vmem:[#allocation2 + $0xd0] sm:$0xff]
        %v1304 = vld [vmem:[#allocation2 + $0xe0] sm:$0xff]
        %v1305 = vld [vmem:[#allocation2 + $0xe8] sm:$0xff]
        %v1306 = vld [vmem:[#allocation2 + $0xf0] sm:$0xff]
        %v1307 = vsel %vm424, 1, 0
        %v1308 = vsel %vm425, 1, 0
        %vm1309 = vcmp.eq.s32.totalorder %v1307, 1
        %vm1310 = vcmp.eq.s32.totalorder %v1308, 1
        %1335 = vrot.lane.b32.xlu0 %v1283, 15
        %v1336 = vpop.permute.xlu0 %1335
        %1337 = vrot.lane.b32.xlu0 %v1284, 15
        %v1338 = vpop.permute.xlu0 %1337
        %1339 = vrot.lane.b32.xlu0 %v1285, 15
        %v1340 = vpop.permute.xlu0 %1339
        %1341 = vrot.lane.b32.xlu0 %v1286, 15
        %v1342 = vpop.permute.xlu0 %1341
        %1343 = vrot.lane.b32.xlu0 %v1287, 15
        %v1344 = vpop.permute.xlu0 %1343
        %1345 = vrot.lane.b32.xlu0 %v1288, 15
        %v1346 = vpop.permute.xlu0 %1345
        %1347 = vrot.lane.b32.xlu0 %v1289, 15
        %v1348 = vpop.permute.xlu0 %1347
        %1349 = vrot.lane.b32.xlu0 %v1290, 15
        %v1350 = vpop.permute.xlu0 %1349
        %1351 = vrot.lane.b32.xlu0 %v1291, 15
        %v1352 = vpop.permute.xlu0 %1351
        %1353 = vrot.lane.b32.xlu0 %v1292, 15
        %v1354 = vpop.permute.xlu0 %1353
        %1355 = vrot.lane.b32.xlu0 %v1293, 15
        %v1356 = vpop.permute.xlu0 %1355
        %1357 = vrot.lane.b32.xlu0 %v1294, 15
        %v1358 = vpop.permute.xlu0 %1357
        %1359 = vrot.lane.b32.xlu0 %v1295, 15
        %v1360 = vpop.permute.xlu0 %1359
        %1361 = vrot.lane.b32.xlu0 %v1296, 15
        %v1362 = vpop.permute.xlu0 %1361
        %1363 = vrot.lane.b32.xlu0 %v1297, 15
        %v1364 = vpop.permute.xlu0 %1363
        %1365 = vrot.lane.b32.xlu0 %v1298, 15
        %v1366 = vpop.permute.xlu0 %1365
        %1367 = vrot.lane.b32.xlu0 %v1299, 15
        %v1368 = vpop.permute.xlu0 %1367
        %1369 = vrot.lane.b32.xlu0 %v1300, 15
        %v1370 = vpop.permute.xlu0 %1369
        %1371 = vrot.lane.b32.xlu0 %v1301, 15
        %v1372 = vpop.permute.xlu0 %1371
        %1373 = vrot.lane.b32.xlu0 %v1302, 15
        %v1374 = vpop.permute.xlu0 %1373
        %1375 = vrot.lane.b32.xlu0 %v1303, 15
        %v1376 = vpop.permute.xlu0 %1375
        %1377 = vrot.lane.b32.xlu0 %v1304, 15
        %v1378 = vpop.permute.xlu0 %1377
        %1379 = vrot.lane.b32.xlu0 %v1305, 15
        %v1380 = vpop.permute.xlu0 %1379
        %1381 = vrot.lane.b32.xlu0 %v1306, 15
        %v1382 = vpop.permute.xlu0 %1381
        %vm1383 = vcmask 121856
        %v1384 = vsel %vm1383, %v1336, %v1338
        %v1385 = vsel %vm1383, %v1338, %v1340
        %v1386 = vsel %vm1383, %v1342, %v1344
        %v1387 = vsel %vm1383, %v1344, %v1346
        %v1388 = vsel %vm1383, %v1348, %v1350
        %v1389 = vsel %vm1383, %v1350, %v1352
        %v1390 = vsel %vm1383, %v1354, %v1356
        %v1391 = vsel %vm1383, %v1356, %v1358
        %v1392 = vsel %vm1383, %v1360, %v1362
        %v1393 = vsel %vm1383, %v1362, %v1364
        %v1394 = vsel %vm1383, %v1366, %v1368
        %v1395 = vsel %vm1383, %v1368, %v1370
        %v1396 = vsel %vm1383, %v1372, %v1374
        %v1397 = vsel %vm1383, %v1374, %v1376
        %v1398 = vsel %vm1383, %v1378, %v1380
        %v1399 = vsel %vm1383, %v1380, %v1382
        %v1416 = vsel %vm1309, %v1384, 0.0
        %v1417 = vsel %vm1310, %v1385, 0.0
        %v1418 = vsel %vm1309, %v1386, 0.0
        %v1419 = vsel %vm1310, %v1387, 0.0
        %v1420 = vsel %vm1309, %v1388, 0.0
        %v1421 = vsel %vm1310, %v1389, 0.0
        %v1422 = vsel %vm1309, %v1390, 0.0
        %v1423 = vsel %vm1310, %v1391, 0.0
        %v1424 = vsel %vm1309, %v1392, 0.0
        %v1425 = vsel %vm1310, %v1393, 0.0
        %v1426 = vsel %vm1309, %v1394, 0.0
        %v1427 = vsel %vm1310, %v1395, 0.0
        %v1428 = vsel %vm1309, %v1396, 0.0
        %v1429 = vsel %vm1310, %v1397, 0.0
        %v1430 = vsel %vm1309, %v1398, 0.0
        %v1431 = vsel %vm1310, %v1399, 0.0
        %1432 = vst [vmem:[#allocation3 + $0x100] sm:$0xff] %v1416
        %1433 = vst [vmem:[#allocation3 + $0x108] sm:$0xff] %v1417
        %1434 = vst [vmem:[#allocation3 + $0x110] sm:$0xff] %v1418
        %1435 = vst [vmem:[#allocation3 + $0x118] sm:$0xff] %v1419
        %1436 = vst [vmem:[#allocation3 + $0x120] sm:$0xff] %v1420
        %1437 = vst [vmem:[#allocation3 + $0x128] sm:$0xff] %v1421
        %1438 = vst [vmem:[#allocation3 + $0x130] sm:$0xff] %v1422
        %1439 = vst [vmem:[#allocation3 + $0x138] sm:$0xff] %v1423
        %1440 = vst [vmem:[#allocation3 + $0x140] sm:$0xff] %v1424
        %1441 = vst [vmem:[#allocation3 + $0x148] sm:$0xff] %v1425
        %1442 = vst [vmem:[#allocation3 + $0x150] sm:$0xff] %v1426
        %1443 = vst [vmem:[#allocation3 + $0x158] sm:$0xff] %v1427
        %1444 = vst [vmem:[#allocation3 + $0x160] sm:$0xff] %v1428
        %1445 = vst [vmem:[#allocation3 + $0x168] sm:$0xff] %v1429
        %1446 = vst [vmem:[#allocation3 + $0x170] sm:$0xff] %v1430
        %1447 = vst [vmem:[#allocation3 + $0x178] sm:$0xff] %v1431
        %v1448 = vld [vmem:[#allocation2 + $0x8] sm:$0xff]
        %v1449 = vld [vmem:[#allocation2 + $0x10] sm:$0xff]
        %v1450 = vld [vmem:[#allocation2 + $0x18] sm:$0xff]
        %v1451 = vld [vmem:[#allocation2 + $0x28] sm:$0xff]
        %v1452 = vld [vmem:[#allocation2 + $0x30] sm:$0xff]
        %v1453 = vld [vmem:[#allocation2 + $0x38] sm:$0xff]
        %v1454 = vld [vmem:[#allocation2 + $0x48] sm:$0xff]
        %v1455 = vld [vmem:[#allocation2 + $0x50] sm:$0xff]
        %v1456 = vld [vmem:[#allocation2 + $0x58] sm:$0xff]
        %v1457 = vld [vmem:[#allocation2 + $0x68] sm:$0xff]
        %v1458 = vld [vmem:[#allocation2 + $0x70] sm:$0xff]
        %v1459 = vld [vmem:[#allocation2 + $0x78] sm:$0xff]
        %v1460 = vld [vmem:[#allocation2 + $0x88] sm:$0xff]
        %v1461 = vld [vmem:[#allocation2 + $0x90] sm:$0xff]
        %v1462 = vld [vmem:[#allocation2 + $0x98] sm:$0xff]
        %v1463 = vld [vmem:[#allocation2 + $0xa8] sm:$0xff]
        %v1464 = vld [vmem:[#allocation2 + $0xb0] sm:$0xff]
        %v1465 = vld [vmem:[#allocation2 + $0xb8] sm:$0xff]
        %v1466 = vld [vmem:[#allocation2 + $0xc8] sm:$0xff]
        %v1467 = vld [vmem:[#allocation2 + $0xd0] sm:$0xff]
        %v1468 = vld [vmem:[#allocation2 + $0xd8] sm:$0xff]
        %v1469 = vld [vmem:[#allocation2 + $0xe8] sm:$0xff]
        %v1470 = vld [vmem:[#allocation2 + $0xf0] sm:$0xff]
        %v1471 = vld [vmem:[#allocation2 + $0xf8] sm:$0xff]
        %1496 = vrot.lane.b32.xlu0 %v1448, 127
        %v1497 = vpop.permute.xlu0 %1496
        %1498 = vrot.lane.b32.xlu0 %v1449, 127
        %v1499 = vpop.permute.xlu0 %1498
        %1500 = vrot.lane.b32.xlu0 %v1450, 127
        %v1501 = vpop.permute.xlu0 %1500
        %1502 = vrot.lane.b32.xlu0 %v1451, 127
        %v1503 = vpop.permute.xlu0 %1502
        %1504 = vrot.lane.b32.xlu0 %v1452, 127
        %v1505 = vpop.permute.xlu0 %1504
        %1506 = vrot.lane.b32.xlu0 %v1453, 127
        %v1507 = vpop.permute.xlu0 %1506
        %1508 = vrot.lane.b32.xlu0 %v1454, 127
        %v1509 = vpop.permute.xlu0 %1508
        %1510 = vrot.lane.b32.xlu0 %v1455, 127
        %v1511 = vpop.permute.xlu0 %1510
        %1512 = vrot.lane.b32.xlu0 %v1456, 127
        %v1513 = vpop.permute.xlu0 %1512
        %1514 = vrot.lane.b32.xlu0 %v1457, 127
        %v1515 = vpop.permute.xlu0 %1514
        %1516 = vrot.lane.b32.xlu0 %v1458, 127
        %v1517 = vpop.permute.xlu0 %1516
        %1518 = vrot.lane.b32.xlu0 %v1459, 127
        %v1519 = vpop.permute.xlu0 %1518
        %1520 = vrot.lane.b32.xlu0 %v1460, 127
        %v1521 = vpop.permute.xlu0 %1520
        %1522 = vrot.lane.b32.xlu0 %v1461, 127
        %v1523 = vpop.permute.xlu0 %1522
        %1524 = vrot.lane.b32.xlu0 %v1462, 127
        %v1525 = vpop.permute.xlu0 %1524
        %1526 = vrot.lane.b32.xlu0 %v1463, 127
        %v1527 = vpop.permute.xlu0 %1526
        %1528 = vrot.lane.b32.xlu0 %v1464, 127
        %v1529 = vpop.permute.xlu0 %1528
        %1530 = vrot.lane.b32.xlu0 %v1465, 127
        %v1531 = vpop.permute.xlu0 %1530
        %1532 = vrot.lane.b32.xlu0 %v1466, 127
        %v1533 = vpop.permute.xlu0 %1532
        %1534 = vrot.lane.b32.xlu0 %v1467, 127
        %v1535 = vpop.permute.xlu0 %1534
        %1536 = vrot.lane.b32.xlu0 %v1468, 127
        %v1537 = vpop.permute.xlu0 %1536
        %1538 = vrot.lane.b32.xlu0 %v1469, 127
        %v1539 = vpop.permute.xlu0 %1538
        %1540 = vrot.lane.b32.xlu0 %v1470, 127
        %v1541 = vpop.permute.xlu0 %1540
        %1542 = vrot.lane.b32.xlu0 %v1471, 127
        %v1543 = vpop.permute.xlu0 %1542
        %vm1544 = vcmask 1039360
        %v1545 = vsel %vm1544, %v1497, %v1499
        %v1546 = vsel %vm1544, %v1499, %v1501
        %v1547 = vsel %vm1544, %v1503, %v1505
        %v1548 = vsel %vm1544, %v1505, %v1507
        %v1549 = vsel %vm1544, %v1509, %v1511
        %v1550 = vsel %vm1544, %v1511, %v1513
        %v1551 = vsel %vm1544, %v1515, %v1517
        %v1552 = vsel %vm1544, %v1517, %v1519
        %v1553 = vsel %vm1544, %v1521, %v1523
        %v1554 = vsel %vm1544, %v1523, %v1525
        %v1555 = vsel %vm1544, %v1527, %v1529
        %v1556 = vsel %vm1544, %v1529, %v1531
        %v1557 = vsel %vm1544, %v1533, %v1535
        %v1558 = vsel %vm1544, %v1535, %v1537
        %v1559 = vsel %vm1544, %v1539, %v1541
        %v1560 = vsel %vm1544, %v1541, %v1543
        %v1577 = vsel %vm1309, %v1545, 0.0
        %v1578 = vsel %vm1310, %v1546, 0.0
        %v1579 = vsel %vm1309, %v1547, 0.0
        %v1580 = vsel %vm1310, %v1548, 0.0
        %v1581 = vsel %vm1309, %v1549, 0.0
        %v1582 = vsel %vm1310, %v1550, 0.0
        %v1583 = vsel %vm1309, %v1551, 0.0
        %v1584 = vsel %vm1310, %v1552, 0.0
        %v1585 = vsel %vm1309, %v1553, 0.0
        %v1586 = vsel %vm1310, %v1554, 0.0
        %v1587 = vsel %vm1309, %v1555, 0.0
        %v1588 = vsel %vm1310, %v1556, 0.0
        %v1589 = vsel %vm1309, %v1557, 0.0
        %v1590 = vsel %vm1310, %v1558, 0.0
        %v1591 = vsel %vm1309, %v1559, 0.0
        %v1592 = vsel %vm1310, %v1560, 0.0
        %1593 = vst [vmem:[#allocation3 + $0x280] sm:$0xff] %v1577
        %1594 = vst [vmem:[#allocation3 + $0x288] sm:$0xff] %v1578
        %1595 = vst [vmem:[#allocation3 + $0x290] sm:$0xff] %v1579
        %1596 = vst [vmem:[#allocation3 + $0x298] sm:$0xff] %v1580
        %1597 = vst [vmem:[#allocation3 + $0x2a0] sm:$0xff] %v1581
        %1598 = vst [vmem:[#allocation3 + $0x2a8] sm:$0xff] %v1582
        %1599 = vst [vmem:[#allocation3 + $0x2b0] sm:$0xff] %v1583
        %1600 = vst [vmem:[#allocation3 + $0x2b8] sm:$0xff] %v1584
        %1601 = vst [vmem:[#allocation3 + $0x2c0] sm:$0xff] %v1585
        %1602 = vst [vmem:[#allocation3 + $0x2c8] sm:$0xff] %v1586
        %1603 = vst [vmem:[#allocation3 + $0x2d0] sm:$0xff] %v1587
        %1604 = vst [vmem:[#allocation3 + $0x2d8] sm:$0xff] %v1588
        %1605 = vst [vmem:[#allocation3 + $0x2e0] sm:$0xff] %v1589
        %1606 = vst [vmem:[#allocation3 + $0x2e8] sm:$0xff] %v1590
        %1607 = vst [vmem:[#allocation3 + $0x2f0] sm:$0xff] %v1591
        %1608 = vst [vmem:[#allocation3 + $0x2f8] sm:$0xff] %v1592
        %v1609 = vld [vmem:[#allocation2 + $0x8] sm:$0xff]
        %v1610 = vld [vmem:[#allocation2 + $0x10] sm:$0xff]
        %v1611 = vld [vmem:[#allocation2 + $0x18] sm:$0xff]
        %v1612 = vld [vmem:[#allocation2 + $0x28] sm:$0xff]
        %v1613 = vld [vmem:[#allocation2 + $0x30] sm:$0xff]
        %v1614 = vld [vmem:[#allocation2 + $0x38] sm:$0xff]
        %v1615 = vld [vmem:[#allocation2 + $0x48] sm:$0xff]
        %v1616 = vld [vmem:[#allocation2 + $0x50] sm:$0xff]
        %v1617 = vld [vmem:[#allocation2 + $0x58] sm:$0xff]
        %v1618 = vld [vmem:[#allocation2 + $0x68] sm:$0xff]
        %v1619 = vld [vmem:[#allocation2 + $0x70] sm:$0xff]
        %v1620 = vld [vmem:[#allocation2 + $0x78] sm:$0xff]
        %v1621 = vld [vmem:[#allocation2 + $0x88] sm:$0xff]
        %v1622 = vld [vmem:[#allocation2 + $0x90] sm:$0xff]
        %v1623 = vld [vmem:[#allocation2 + $0x98] sm:$0xff]
        %v1624 = vld [vmem:[#allocation2 + $0xa8] sm:$0xff]
        %v1625 = vld [vmem:[#allocation2 + $0xb0] sm:$0xff]
        %v1626 = vld [vmem:[#allocation2 + $0xb8] sm:$0xff]
        %v1627 = vld [vmem:[#allocation2 + $0xc8] sm:$0xff]
        %v1628 = vld [vmem:[#allocation2 + $0xd0] sm:$0xff]
        %v1629 = vld [vmem:[#allocation2 + $0xd8] sm:$0xff]
        %v1630 = vld [vmem:[#allocation2 + $0xe8] sm:$0xff]
        %v1631 = vld [vmem:[#allocation2 + $0xf0] sm:$0xff]
        %v1632 = vld [vmem:[#allocation2 + $0xf8] sm:$0xff]
        %1657 = vrot.lane.b32.xlu0 %v1609, 111
        %v1658 = vpop.permute.xlu0 %1657
        %1659 = vrot.lane.b32.xlu0 %v1610, 111
        %v1660 = vpop.permute.xlu0 %1659
        %1661 = vrot.lane.b32.xlu0 %v1611, 111
        %v1662 = vpop.permute.xlu0 %1661
        %1663 = vrot.lane.b32.xlu0 %v1612, 111
        %v1664 = vpop.permute.xlu0 %1663
        %1665 = vrot.lane.b32.xlu0 %v1613, 111
        %v1666 = vpop.permute.xlu0 %1665
        %1667 = vrot.lane.b32.xlu0 %v1614, 111
        %v1668 = vpop.permute.xlu0 %1667
        %1669 = vrot.lane.b32.xlu0 %v1615, 111
        %v1670 = vpop.permute.xlu0 %1669
        %1671 = vrot.lane.b32.xlu0 %v1616, 111
        %v1672 = vpop.permute.xlu0 %1671
        %1673 = vrot.lane.b32.xlu0 %v1617, 111
        %v1674 = vpop.permute.xlu0 %1673
        %1675 = vrot.lane.b32.xlu0 %v1618, 111
        %v1676 = vpop.permute.xlu0 %1675
        %1677 = vrot.lane.b32.xlu0 %v1619, 111
        %v1678 = vpop.permute.xlu0 %1677
        %1679 = vrot.lane.b32.xlu0 %v1620, 111
        %v1680 = vpop.permute.xlu0 %1679
        %1681 = vrot.lane.b32.xlu0 %v1621, 111
        %v1682 = vpop.permute.xlu0 %1681
        %1683 = vrot.lane.b32.xlu0 %v1622, 111
        %v1684 = vpop.permute.xlu0 %1683
        %1685 = vrot.lane.b32.xlu0 %v1623, 111
        %v1686 = vpop.permute.xlu0 %1685
        %1687 = vrot.lane.b32.xlu0 %v1624, 111
        %v1688 = vpop.permute.xlu0 %1687
        %1689 = vrot.lane.b32.xlu0 %v1625, 111
        %v1690 = vpop.permute.xlu0 %1689
        %1691 = vrot.lane.b32.xlu0 %v1626, 111
        %v1692 = vpop.permute.xlu0 %1691
        %1693 = vrot.lane.b32.xlu0 %v1627, 111
        %v1694 = vpop.permute.xlu0 %1693
        %1695 = vrot.lane.b32.xlu0 %v1628, 111
        %v1696 = vpop.permute.xlu0 %1695
        %1697 = vrot.lane.b32.xlu0 %v1629, 111
        %v1698 = vpop.permute.xlu0 %1697
        %1699 = vrot.lane.b32.xlu0 %v1630, 111
        %v1700 = vpop.permute.xlu0 %1699
        %1701 = vrot.lane.b32.xlu0 %v1631, 111
        %v1702 = vpop.permute.xlu0 %1701
        %1703 = vrot.lane.b32.xlu0 %v1632, 111
        %v1704 = vpop.permute.xlu0 %1703
        %vm1705 = vcmask 908288
        %v1706 = vsel %vm1705, %v1658, %v1660
        %v1707 = vsel %vm1705, %v1660, %v1662
        %v1708 = vsel %vm1705, %v1664, %v1666
        %v1709 = vsel %vm1705, %v1666, %v1668
        %v1710 = vsel %vm1705, %v1670, %v1672
        %v1711 = vsel %vm1705, %v1672, %v1674
        %v1712 = vsel %vm1705, %v1676, %v1678
        %v1713 = vsel %vm1705, %v1678, %v1680
        %v1714 = vsel %vm1705, %v1682, %v1684
        %v1715 = vsel %vm1705, %v1684, %v1686
        %v1716 = vsel %vm1705, %v1688, %v1690
        %v1717 = vsel %vm1705, %v1690, %v1692
        %v1718 = vsel %vm1705, %v1694, %v1696
        %v1719 = vsel %vm1705, %v1696, %v1698
        %v1720 = vsel %vm1705, %v1700, %v1702
        %v1721 = vsel %vm1705, %v1702, %v1704
        %v1738 = vsel %vm1309, %v1706, 0.0
        %v1739 = vsel %vm1310, %v1707, 0.0
        %v1740 = vsel %vm1309, %v1708, 0.0
        %v1741 = vsel %vm1310, %v1709, 0.0
        %v1742 = vsel %vm1309, %v1710, 0.0
        %v1743 = vsel %vm1310, %v1711, 0.0
        %v1744 = vsel %vm1309, %v1712, 0.0
        %v1745 = vsel %vm1310, %v1713, 0.0
        %v1746 = vsel %vm1309, %v1714, 0.0
        %v1747 = vsel %vm1310, %v1715, 0.0
        %v1748 = vsel %vm1309, %v1716, 0.0
        %v1749 = vsel %vm1310, %v1717, 0.0
        %v1750 = vsel %vm1309, %v1718, 0.0
        %v1751 = vsel %vm1310, %v1719, 0.0
        %v1752 = vsel %vm1309, %v1720, 0.0
        %v1753 = vsel %vm1310, %v1721, 0.0
        %1754 = vst [vmem:[#allocation3 + $0x400] sm:$0xff] %v1738
        %1755 = vst [vmem:[#allocation3 + $0x408] sm:$0xff] %v1739
        %1756 = vst [vmem:[#allocation3 + $0x410] sm:$0xff] %v1740
        %1757 = vst [vmem:[#allocation3 + $0x418] sm:$0xff] %v1741
        %1758 = vst [vmem:[#allocation3 + $0x420] sm:$0xff] %v1742
        %1759 = vst [vmem:[#allocation3 + $0x428] sm:$0xff] %v1743
        %1760 = vst [vmem:[#allocation3 + $0x430] sm:$0xff] %v1744
        %1761 = vst [vmem:[#allocation3 + $0x438] sm:$0xff] %v1745
        %1762 = vst [vmem:[#allocation3 + $0x440] sm:$0xff] %v1746
        %1763 = vst [vmem:[#allocation3 + $0x448] sm:$0xff] %v1747
        %1764 = vst [vmem:[#allocation3 + $0x450] sm:$0xff] %v1748
        %1765 = vst [vmem:[#allocation3 + $0x458] sm:$0xff] %v1749
        %1766 = vst [vmem:[#allocation3 + $0x460] sm:$0xff] %v1750
        %1767 = vst [vmem:[#allocation3 + $0x468] sm:$0xff] %v1751
        %1768 = vst [vmem:[#allocation3 + $0x470] sm:$0xff] %v1752
        %1769 = vst [vmem:[#allocation3 + $0x478] sm:$0xff] %v1753
        %v1770 = vld [vmem:[#allocation9] sm:$0xff]
        %v1771 = vld [vmem:[#allocation9 + $0x8] sm:$0xff]
        %v1772 = vld [vmem:[#allocation9 + $0x10] sm:$0xff]
        %v1773 = vld [vmem:[#allocation9 + $0x18] sm:$0xff]
        %v1774 = vld [vmem:[#allocation9 + $0x20] sm:$0xff]
        %v1775 = vld [vmem:[#allocation9 + $0x28] sm:$0xff]
        %v1776 = vld [vmem:[#allocation9 + $0x30] sm:$0xff]
        %v1777 = vld [vmem:[#allocation9 + $0x38] sm:$0xff]
        %v1778 = vld [vmem:[#allocation9 + $0x40] sm:$0xff]
        %v1779 = vld [vmem:[#allocation9 + $0x48] sm:$0xff]
        %v1780 = vld [vmem:[#allocation3] sm:$0xff]
        %v1781 = vld [vmem:[#allocation3 + $0x8] sm:$0xff]
        %v1782 = vld [vmem:[#allocation3 + $0x10] sm:$0xff]
        %v1783 = vld [vmem:[#allocation3 + $0x18] sm:$0xff]
        %v1784 = vld [vmem:[#allocation3 + $0x20] sm:$0xff]
        %v1785 = vld [vmem:[#allocation3 + $0x28] sm:$0xff]
        %v1786 = vld [vmem:[#allocation3 + $0x30] sm:$0xff]
        %v1787 = vld [vmem:[#allocation3 + $0x38] sm:$0xff]
        %v1788 = vld [vmem:[#allocation3 + $0x40] sm:$0xff]
        %v1789 = vld [vmem:[#allocation3 + $0x48] sm:$0xff]
        %v1790 = vld [vmem:[#allocation3 + $0x50] sm:$0xff]
        %v1791 = vld [vmem:[#allocation3 + $0x58] sm:$0xff]
        %v1792 = vld [vmem:[#allocation3 + $0x60] sm:$0xff]
        %v1793 = vld [vmem:[#allocation3 + $0x68] sm:$0xff]
        %v1794 = vld [vmem:[#allocation3 + $0x70] sm:$0xff]
        %v1795 = vld [vmem:[#allocation3 + $0x78] sm:$0xff]
        %v1796 = vld [vmem:[#allocation3 + $0x80] sm:$0xff]
        %v1797 = vld [vmem:[#allocation3 + $0x88] sm:$0xff]
        %v1798 = vld [vmem:[#allocation3 + $0x90] sm:$0xff]
        %v1799 = vld [vmem:[#allocation3 + $0x98] sm:$0xff]
        %v1800 = vld [vmem:[#allocation3 + $0xa0] sm:$0xff]
        %v1801 = vld [vmem:[#allocation3 + $0xa8] sm:$0xff]
        %v1802 = vld [vmem:[#allocation3 + $0xb0] sm:$0xff]
        %v1803 = vld [vmem:[#allocation3 + $0xb8] sm:$0xff]
        %v1804 = vld [vmem:[#allocation3 + $0xc0] sm:$0xff]
        %v1805 = vld [vmem:[#allocation3 + $0xc8] sm:$0xff]
        %v1806 = vld [vmem:[#allocation3 + $0xd0] sm:$0xff]
        %v1807 = vld [vmem:[#allocation3 + $0xd8] sm:$0xff]
        %v1808 = vld [vmem:[#allocation3 + $0xe0] sm:$0xff]
        %v1809 = vld [vmem:[#allocation3 + $0xe8] sm:$0xff]
        %v1810 = vld [vmem:[#allocation3 + $0xf0] sm:$0xff]
        %v1811 = vld [vmem:[#allocation3 + $0xf8] sm:$0xff]
        %v1812 = vld [vmem:[#allocation3 + $0x100] sm:$0xff]
        %v1813 = vld [vmem:[#allocation3 + $0x108] sm:$0xff]
        %v1814 = vld [vmem:[#allocation3 + $0x110] sm:$0xff]
        %v1815 = vld [vmem:[#allocation3 + $0x118] sm:$0xff]
        %v1816 = vld [vmem:[#allocation3 + $0x120] sm:$0xff]
        %v1817 = vld [vmem:[#allocation3 + $0x128] sm:$0xff]
        %v1818 = vld [vmem:[#allocation3 + $0x130] sm:$0xff]
        %v1819 = vld [vmem:[#allocation3 + $0x138] sm:$0xff]
        %v1820 = vld [vmem:[#allocation3 + $0x140] sm:$0xff]
        %v1821 = vld [vmem:[#allocation3 + $0x148] sm:$0xff]
        %v1822 = vld [vmem:[#allocation3 + $0x150] sm:$0xff]
        %v1823 = vld [vmem:[#allocation3 + $0x158] sm:$0xff]
        %v1824 = vld [vmem:[#allocation3 + $0x160] sm:$0xff]
        %v1825 = vld [vmem:[#allocation3 + $0x168] sm:$0xff]
        %v1826 = vld [vmem:[#allocation3 + $0x170] sm:$0xff]
        %v1827 = vld [vmem:[#allocation3 + $0x178] sm:$0xff]
        %v1828 = vld [vmem:[#allocation3 + $0x180] sm:$0xff]
        %v1829 = vld [vmem:[#allocation3 + $0x188] sm:$0xff]
        %v1830 = vld [vmem:[#allocation3 + $0x190] sm:$0xff]
        %v1831 = vld [vmem:[#allocation3 + $0x198] sm:$0xff]
        %v1832 = vld [vmem:[#allocation3 + $0x1a0] sm:$0xff]
        %v1833 = vld [vmem:[#allocation3 + $0x1a8] sm:$0xff]
        %v1834 = vld [vmem:[#allocation3 + $0x1b0] sm:$0xff]
        %v1835 = vld [vmem:[#allocation3 + $0x1b8] sm:$0xff]
        %v1836 = vld [vmem:[#allocation3 + $0x1c0] sm:$0xff]
        %v1837 = vld [vmem:[#allocation3 + $0x1c8] sm:$0xff]
        %v1838 = vld [vmem:[#allocation3 + $0x1d0] sm:$0xff]
        %v1839 = vld [vmem:[#allocation3 + $0x1d8] sm:$0xff]
        %v1840 = vld [vmem:[#allocation3 + $0x1e0] sm:$0xff]
        %v1841 = vld [vmem:[#allocation3 + $0x1e8] sm:$0xff]
        %v1842 = vld [vmem:[#allocation3 + $0x1f0] sm:$0xff]
        %v1843 = vld [vmem:[#allocation3 + $0x1f8] sm:$0xff]
        %v1844 = vld [vmem:[#allocation3 + $0x200] sm:$0xff]
        %v1845 = vld [vmem:[#allocation3 + $0x208] sm:$0xff]
        %v1846 = vld [vmem:[#allocation3 + $0x210] sm:$0xff]
        %v1847 = vld [vmem:[#allocation3 + $0x218] sm:$0xff]
        %v1848 = vld [vmem:[#allocation3 + $0x220] sm:$0xff]
        %v1849 = vld [vmem:[#allocation3 + $0x228] sm:$0xff]
        %v1850 = vld [vmem:[#allocation3 + $0x230] sm:$0xff]
        %v1851 = vld [vmem:[#allocation3 + $0x238] sm:$0xff]
        %v1852 = vld [vmem:[#allocation3 + $0x240] sm:$0xff]
        %v1853 = vld [vmem:[#allocation3 + $0x248] sm:$0xff]
        %v1854 = vld [vmem:[#allocation3 + $0x250] sm:$0xff]
        %v1855 = vld [vmem:[#allocation3 + $0x258] sm:$0xff]
        %v1856 = vld [vmem:[#allocation3 + $0x260] sm:$0xff]
        %v1857 = vld [vmem:[#allocation3 + $0x268] sm:$0xff]
        %v1858 = vld [vmem:[#allocation3 + $0x270] sm:$0xff]
        %v1859 = vld [vmem:[#allocation3 + $0x278] sm:$0xff]
        %v1860 = vld [vmem:[#allocation3 + $0x280] sm:$0xff]
        %v1861 = vld [vmem:[#allocation3 + $0x288] sm:$0xff]
        %v1862 = vld [vmem:[#allocation3 + $0x290] sm:$0xff]
        %v1863 = vld [vmem:[#allocation3 + $0x298] sm:$0xff]
        %v1864 = vld [vmem:[#allocation3 + $0x2a0] sm:$0xff]
        %v1865 = vld [vmem:[#allocation3 + $0x2a8] sm:$0xff]
        %v1866 = vld [vmem:[#allocation3 + $0x2b0] sm:$0xff]
        %v1867 = vld [vmem:[#allocation3 + $0x2b8] sm:$0xff]
        %v1868 = vld [vmem:[#allocation3 + $0x2c0] sm:$0xff]
        %v1869 = vld [vmem:[#allocation3 + $0x2c8] sm:$0xff]
        %v1870 = vld [vmem:[#allocation3 + $0x2d0] sm:$0xff]
        %v1871 = vld [vmem:[#allocation3 + $0x2d8] sm:$0xff]
        %v1872 = vld [vmem:[#allocation3 + $0x2e0] sm:$0xff]
        %v1873 = vld [vmem:[#allocation3 + $0x2e8] sm:$0xff]
        %v1874 = vld [vmem:[#allocation3 + $0x2f0] sm:$0xff]
        %v1875 = vld [vmem:[#allocation3 + $0x2f8] sm:$0xff]
        %v1876 = vld [vmem:[#allocation3 + $0x300] sm:$0xff]
        %v1877 = vld [vmem:[#allocation3 + $0x308] sm:$0xff]
        %v1878 = vld [vmem:[#allocation3 + $0x310] sm:$0xff]
        %v1879 = vld [vmem:[#allocation3 + $0x318] sm:$0xff]
        %v1880 = vld [vmem:[#allocation3 + $0x320] sm:$0xff]
        %v1881 = vld [vmem:[#allocation3 + $0x328] sm:$0xff]
        %v1882 = vld [vmem:[#allocation3 + $0x330] sm:$0xff]
        %v1883 = vld [vmem:[#allocation3 + $0x338] sm:$0xff]
        %v1884 = vld [vmem:[#allocation3 + $0x340] sm:$0xff]
        %v1885 = vld [vmem:[#allocation3 + $0x348] sm:$0xff]
        %v1886 = vld [vmem:[#allocation3 + $0x350] sm:$0xff]
        %v1887 = vld [vmem:[#allocation3 + $0x358] sm:$0xff]
        %v1888 = vld [vmem:[#allocation3 + $0x360] sm:$0xff]
        %v1889 = vld [vmem:[#allocation3 + $0x368] sm:$0xff]
        %v1890 = vld [vmem:[#allocation3 + $0x370] sm:$0xff]
        %v1891 = vld [vmem:[#allocation3 + $0x378] sm:$0xff]
        %v1892 = vld [vmem:[#allocation3 + $0x380] sm:$0xff]
        %v1893 = vld [vmem:[#allocation3 + $0x388] sm:$0xff]
        %v1894 = vld [vmem:[#allocation3 + $0x390] sm:$0xff]
        %v1895 = vld [vmem:[#allocation3 + $0x398] sm:$0xff]
        %v1896 = vld [vmem:[#allocation3 + $0x3a0] sm:$0xff]
        %v1897 = vld [vmem:[#allocation3 + $0x3a8] sm:$0xff]
        %v1898 = vld [vmem:[#allocation3 + $0x3b0] sm:$0xff]
        %v1899 = vld [vmem:[#allocation3 + $0x3b8] sm:$0xff]
        %v1900 = vld [vmem:[#allocation3 + $0x3c0] sm:$0xff]
        %v1901 = vld [vmem:[#allocation3 + $0x3c8] sm:$0xff]
        %v1902 = vld [vmem:[#allocation3 + $0x3d0] sm:$0xff]
        %v1903 = vld [vmem:[#allocation3 + $0x3d8] sm:$0xff]
        %v1904 = vld [vmem:[#allocation3 + $0x3e0] sm:$0xff]
        %v1905 = vld [vmem:[#allocation3 + $0x3e8] sm:$0xff]
        %v1906 = vld [vmem:[#allocation3 + $0x3f0] sm:$0xff]
        %v1907 = vld [vmem:[#allocation3 + $0x3f8] sm:$0xff]
        %v1908 = vld [vmem:[#allocation3 + $0x400] sm:$0xff]
        %v1909 = vld [vmem:[#allocation3 + $0x408] sm:$0xff]
        %v1910 = vld [vmem:[#allocation3 + $0x410] sm:$0xff]
        %v1911 = vld [vmem:[#allocation3 + $0x418] sm:$0xff]
        %v1912 = vld [vmem:[#allocation3 + $0x420] sm:$0xff]
        %v1913 = vld [vmem:[#allocation3 + $0x428] sm:$0xff]
        %v1914 = vld [vmem:[#allocation3 + $0x430] sm:$0xff]
        %v1915 = vld [vmem:[#allocation3 + $0x438] sm:$0xff]
        %v1916 = vld [vmem:[#allocation3 + $0x440] sm:$0xff]
        %v1917 = vld [vmem:[#allocation3 + $0x448] sm:$0xff]
        %v1918 = vld [vmem:[#allocation3 + $0x450] sm:$0xff]
        %v1919 = vld [vmem:[#allocation3 + $0x458] sm:$0xff]
        %v1920 = vld [vmem:[#allocation3 + $0x460] sm:$0xff]
        %v1921 = vld [vmem:[#allocation3 + $0x468] sm:$0xff]
        %v1922 = vld [vmem:[#allocation3 + $0x470] sm:$0xff]
        %v1923 = vld [vmem:[#allocation3 + $0x478] sm:$0xff]
        %v1924 = vld [vmem:[%s2] sm:$0xff]
        %v1925 = vld [vmem:[%s2 + $0x8] sm:$0xff]
        %1927 = vset.pattern.permute.xlu0 0
        %1928 = vperm.xlu0 %1927, %v1924
        %v1929 = vpop.permute.xlu0 %1928
        %1932 = vset.pattern.permute.xlu0 0
        %1933 = vperm.xlu0 %1932, %v1925
        %v1934 = vpop.permute.xlu0 %1933
        %vm1936 = vcmask 523264
        %v1938 = vsel %vm1936, %v1774, 0
        %v1941 = vsel %vm1936, %v1779, 0
        %1943 = vmatprep.subr.mxu0 %v1781
        %1944 = vmatpush1.msra.mxu0 %v1780
        %1945 = vmatprep.subr.mxu0 %v1783
        %1946 = vmatpush1.msra.mxu0 %v1782
        %1947 = vmatprep.subr.mxu0 %v1785
        %1948 = vmatpush1.msra.mxu0 %v1784
        %1949 = vmatprep.subr.mxu0 %v1787
        %1950 = vmatpush1.msra.mxu0 %v1786
        %1951 = vmatprep.subr.mxu0 %v1789
        %1952 = vmatpush1.msra.mxu0 %v1788
        %1953 = vmatprep.subr.mxu0 %v1791
        %1954 = vmatpush1.msra.mxu0 %v1790
        %1955 = vmatprep.subr.mxu0 %v1793
        %1956 = vmatpush1.msra.mxu0 %v1792
        %1957 = vmatprep.subr.mxu0 %v1795
        %1958 = vmatpush1.msra.mxu0 %v1794
        %1959 = vmatprep.subr.mxu0 %v1797
        %1960 = vmatpush1.msra.mxu0 %v1796
        %1961 = vmatprep.subr.mxu0 %v1799
        %1962 = vmatpush1.msra.mxu0 %v1798
        %1963 = vmatprep.subr.mxu0 %v1801
        %1964 = vmatpush1.msra.mxu0 %v1800
        %1965 = vmatprep.subr.mxu0 %v1803
        %1966 = vmatpush1.msra.mxu0 %v1802
        %1967 = vmatprep.subr.mxu0 %v1805
        %1968 = vmatpush1.msra.mxu0 %v1804
        %1969 = vmatprep.subr.mxu0 %v1807
        %1970 = vmatpush1.msra.mxu0 %v1806
        %1971 = vmatprep.subr.mxu0 %v1809
        %1972 = vmatpush1.msra.mxu0 %v1808
        %1973 = vmatprep.subr.mxu0 %v1811
        %1974 = vmatpush1.msra.mxu0 %v1810
        %1975 = vmatprep.subr.mxu0 %v1813
        %1976 = vmatpush1.msra.mxu0 %v1812
        %1977 = vmatprep.subr.mxu0 %v1815
        %1978 = vmatpush1.msra.mxu0 %v1814
        %1979 = vmatprep.subr.mxu0 %v1817
        %1980 = vmatpush1.msra.mxu0 %v1816
        %1981 = vmatprep.subr.mxu0 %v1819
        %1982 = vmatpush1.msra.mxu0 %v1818
        %1983 = vmatprep.subr.mxu0 %v1821
        %1984 = vmatpush1.msra.mxu0 %v1820
        %1985 = vmatprep.subr.mxu0 %v1823
        %1986 = vmatpush1.msra.mxu0 %v1822
        %1987 = vmatprep.subr.mxu0 %v1825
        %1988 = vmatpush1.msra.mxu0 %v1824
        %1989 = vmatprep.subr.mxu0 %v1827
        %1990 = vmatpush1.msra.mxu0 %v1826
        %1991 = vmatprep.subr.mxu0 %v1829
        %1992 = vmatpush1.msra.mxu0 %v1828
        %1993 = vmatprep.subr.mxu0 %v1831
        %1994 = vmatpush1.msra.mxu0 %v1830
        %1995 = vmatprep.subr.mxu0 %v1833
        %1996 = vmatpush1.msra.mxu0 %v1832
        %1997 = vmatprep.subr.mxu0 %v1835
        %1998 = vmatpush1.msra.mxu0 %v1834
        %1999 = vmatprep.subr.mxu0 %v1837
        %2000 = vmatpush1.msra.mxu0 %v1836
        %2001 = vmatprep.subr.mxu0 %v1839
        %2002 = vmatpush1.msra.mxu0 %v1838
        %2003 = vmatprep.subr.mxu0 %v1841
        %2004 = vmatpush1.msra.mxu0 %v1840
        %2005 = vmatprep.subr.mxu0 %v1843
        %2006 = vmatpush1.msra.mxu0 %v1842
        %2007 = vmatprep.mubr.f32.mxu0 %v1771
        %2008 = vmatmul.mubr.f32.gmra.mrb[0].mxu0 %v1770
        %v2009 = vpop.f32.mrb[0].mxu0
        %v2010 = vadd.f32 %v1929, %v2009
        %v2011 = vpop.f32.mrb[0].mxu0
        %v2012 = vadd.f32 %v1929, %v2011
        %2013 = vmatprep.mubr.f32.mxu0 %v1776
        %2014 = vmatmul.mubr.f32.gmra.mrb[0].mxu0 %v1775
        %v2015 = vpop.f32.mrb[0].mxu0
        %v2016 = vadd.f32 %v1934, %v2015
        %v2017 = vpop.f32.mrb[0].mxu0
        %v2018 = vadd.f32 %v1934, %v2017
        %2019 = vdwg.mxu0
        %2020 = vmatprep.subr.mxu0 %v1845
        %2021 = vmatpush1.msra.mxu0 %v1844
        %2022 = vmatprep.subr.mxu0 %v1847
        %2023 = vmatpush1.msra.mxu0 %v1846
        %2024 = vmatprep.subr.mxu0 %v1849
        %2025 = vmatpush1.msra.mxu0 %v1848
        %2026 = vmatprep.subr.mxu0 %v1851
        %2027 = vmatpush1.msra.mxu0 %v1850
        %2028 = vmatprep.subr.mxu0 %v1853
        %2029 = vmatpush1.msra.mxu0 %v1852
        %2030 = vmatprep.subr.mxu0 %v1855
        %2031 = vmatpush1.msra.mxu0 %v1854
        %2032 = vmatprep.subr.mxu0 %v1857
        %2033 = vmatpush1.msra.mxu0 %v1856
        %2034 = vmatprep.subr.mxu0 %v1859
        %2035 = vmatpush1.msra.mxu0 %v1858
        %2036 = vmatprep.subr.mxu0 %v1861
        %2037 = vmatpush1.msra.mxu0 %v1860
        %2038 = vmatprep.subr.mxu0 %v1863
        %2039 = vmatpush1.msra.mxu0 %v1862
        %2040 = vmatprep.subr.mxu0 %v1865
        %2041 = vmatpush1.msra.mxu0 %v1864
        %2042 = vmatprep.subr.mxu0 %v1867
        %2043 = vmatpush1.msra.mxu0 %v1866
        %2044 = vmatprep.subr.mxu0 %v1869
        %2045 = vmatpush1.msra.mxu0 %v1868
        %2046 = vmatprep.subr.mxu0 %v1871
        %2047 = vmatpush1.msra.mxu0 %v1870
        %2048 = vmatprep.subr.mxu0 %v1873
        %2049 = vmatpush1.msra.mxu0 %v1872
        %2050 = vmatprep.subr.mxu0 %v1875
        %2051 = vmatpush1.msra.mxu0 %v1874
        %2052 = vmatprep.subr.mxu0 %v1877
        %2053 = vmatpush1.msra.mxu0 %v1876
        %2054 = vmatprep.subr.mxu0 %v1879
        %2055 = vmatpush1.msra.mxu0 %v1878
        %2056 = vmatprep.subr.mxu0 %v1881
        %2057 = vmatpush1.msra.mxu0 %v1880
        %2058 = vmatprep.subr.mxu0 %v1883
        %2059 = vmatpush1.msra.mxu0 %v1882
        %2060 = vmatprep.subr.mxu0 %v1885
        %2061 = vmatpush1.msra.mxu0 %v1884
        %2062 = vmatprep.subr.mxu0 %v1887
        %2063 = vmatpush1.msra.mxu0 %v1886
        %2064 = vmatprep.subr.mxu0 %v1889
        %2065 = vmatpush1.msra.mxu0 %v1888
        %2066 = vmatprep.subr.mxu0 %v1891
        %2067 = vmatpush1.msra.mxu0 %v1890
        %2068 = vmatprep.subr.mxu0 %v1893
        %2069 = vmatpush1.msra.mxu0 %v1892
        %2070 = vmatprep.subr.mxu0 %v1895
        %2071 = vmatpush1.msra.mxu0 %v1894
        %2072 = vmatprep.subr.mxu0 %v1897
        %2073 = vmatpush1.msra.mxu0 %v1896
        %2074 = vmatprep.subr.mxu0 %v1899
        %2075 = vmatpush1.msra.mxu0 %v1898
        %2076 = vmatprep.subr.mxu0 %v1901
        %2077 = vmatpush1.msra.mxu0 %v1900
        %2078 = vmatprep.subr.mxu0 %v1903
        %2079 = vmatpush1.msra.mxu0 %v1902
        %2080 = vmatprep.subr.mxu0 %v1905
        %2081 = vmatpush1.msra.mxu0 %v1904
        %2082 = vmatprep.subr.mxu0 %v1907
        %2083 = vmatpush1.msra.mxu0 %v1906
        %2084 = vmatprep.mubr.f32.mxu0 %v1773
        %2085 = vmatmul.mubr.f32.gmra.mrb[0].mxu0 %v1772
        %v2086 = vpop.f32.mrb[0].mxu0
        %v2087 = vadd.f32 %v2010, %v2086
        %v2088 = vpop.f32.mrb[0].mxu0
        %v2089 = vadd.f32 %v2012, %v2088
        %2090 = vmatprep.mubr.f32.mxu0 %v1778
        %2091 = vmatmul.mubr.f32.gmra.mrb[0].mxu0 %v1777
        %v2092 = vpop.f32.mrb[0].mxu0
        %v2093 = vadd.f32 %v2016, %v2092
        %v2094 = vpop.f32.mrb[0].mxu0
        %v2095 = vadd.f32 %v2018, %v2094
        %2096 = vdwg.mxu0
        %2097 = vmatprep.subr.mxu0 %v1909
        %2098 = vmatpush1.msra.mxu0 %v1908
        %2099 = vmatprep.subr.mxu0 %v1911
        %2100 = vmatpush1.msra.mxu0 %v1910
        %2101 = vmatprep.subr.mxu0 %v1913
        %2102 = vmatpush1.msra.mxu0 %v1912
        %2103 = vmatprep.subr.mxu0 %v1915
        %2104 = vmatpush1.msra.mxu0 %v1914
        %2105 = vmatprep.subr.mxu0 %v1917
        %2106 = vmatpush1.msra.mxu0 %v1916
        %2107 = vmatprep.subr.mxu0 %v1919
        %2108 = vmatpush1.msra.mxu0 %v1918
        %2109 = vmatprep.subr.mxu0 %v1921
        %2110 = vmatpush1.msra.mxu0 %v1920
        %2111 = vmatprep.subr.mxu0 %v1923
        %2112 = vmatpush1.msra.mxu0 %v1922
        %2113 = vmatprep.subr.mxu0 0.0
        %2114 = vmatpush1.msra.mxu0 0.0
        %2115 = vmatprep.subr.mxu0 0.0
        %2116 = vmatpush1.msra.mxu0 0.0
        %2117 = vmatprep.subr.mxu0 0.0
        %2118 = vmatpush1.msra.mxu0 0.0
        %2119 = vmatprep.subr.mxu0 0.0
        %2120 = vmatpush1.msra.mxu0 0.0
        %2121 = vmatprep.subr.mxu0 0.0
        %2122 = vmatpush1.msra.mxu0 0.0
        %2123 = vmatprep.subr.mxu0 0.0
        %2124 = vmatpush1.msra.mxu0 0.0
        %2125 = vmatprep.subr.mxu0 0.0
        %2126 = vmatpush1.msra.mxu0 0.0
        %2127 = vmatprep.subr.mxu0 0.0
        %2128 = vmatpush1.msra.mxu0 0.0
        %2129 = vmatprep.subr.mxu0 0.0
        %2130 = vmatpush1.msra.mxu0 0.0
        %2131 = vmatprep.subr.mxu0 0.0
        %2132 = vmatpush1.msra.mxu0 0.0
        %2133 = vmatprep.subr.mxu0 0.0
        %2134 = vmatpush1.msra.mxu0 0.0
        %2135 = vmatprep.subr.mxu0 0.0
        %2136 = vmatpush1.msra.mxu0 0.0
        %2137 = vmatprep.subr.mxu0 0.0
        %2138 = vmatpush1.msra.mxu0 0.0
        %2139 = vmatprep.subr.mxu0 0.0
        %2140 = vmatpush1.msra.mxu0 0.0
        %2141 = vmatprep.subr.mxu0 0.0
        %2142 = vmatpush1.msra.mxu0 0.0
        %2143 = vmatprep.subr.mxu0 0.0
        %2144 = vmatpush1.msra.mxu0 0.0
        %2145 = vmatprep.subr.mxu0 0.0
        %2146 = vmatpush1.msra.mxu0 0.0
        %2147 = vmatprep.subr.mxu0 0.0
        %2148 = vmatpush1.msra.mxu0 0.0
        %2149 = vmatprep.subr.mxu0 0.0
        %2150 = vmatpush1.msra.mxu0 0.0
        %2151 = vmatprep.subr.mxu0 0.0
        %2152 = vmatpush1.msra.mxu0 0.0
        %2153 = vmatprep.subr.mxu0 0.0
        %2154 = vmatpush1.msra.mxu0 0.0
        %2155 = vmatprep.subr.mxu0 0.0
        %2156 = vmatpush1.msra.mxu0 0.0
        %2157 = vmatprep.subr.mxu0 0.0
        %2158 = vmatpush1.msra.mxu0 0.0
        %2159 = vmatprep.subr.mxu0 0.0
        %2160 = vmatpush1.msra.mxu0 0.0
        %2161 = vmatprep.mubr.f32.mxu0 0.0
        %2162 = vmatmul.mubr.f32.gmra.mrb[0].mxu0 %v1938
        %v2163 = vpop.f32.mrb[0].mxu0
        %v2164 = vadd.f32 %v2087, %v2163
        %v2165 = vpop.f32.mrb[0].mxu0
        %v2166 = vadd.f32 %v2089, %v2165
        %2167 = vmatprep.mubr.f32.mxu0 0.0
        %2168 = vmatmul.mubr.f32.gmra.mrb[0].mxu0 %v1941
        %v2169 = vpop.f32.mrb[0].mxu0
        %v2170 = vadd.f32 %v2093, %v2169
        %v2171 = vpop.f32.mrb[0].mxu0
        %v2172 = vadd.f32 %v2095, %v2171
        %2173 = vdwg.mxu0
        %v2174 = vmax.f32 %v2164, 0.0
        %v2175 = vmax.f32 %v2166, 0.0
        %v2176 = vmax.f32 %v2170, 0.0
        %v2177 = vmax.f32 %v2172, 0.0
        %v2178 = vld [vmem:[#allocation11] sm:$0xff]
        %v2179 = vld [vmem:[#allocation11 + $0x8] sm:$0xff]
        %v2181 = vsel %vm1057, %v2178, 0
        %v2184 = vsel %vm1057, %v2179, 0
        %2186 = vmatprep.subr.mxu0 %v2175
        %2187 = vmatpush1.msra.mxu0 %v2174
        %2188 = vmatprep.subr.mxu0 %v2177
        %2189 = vmatpush1.msra.mxu0 %v2176
        %2190 = vmatprep.subr.mxu0 0.0
        %2191 = vmatpush1.msra.mxu0 0.0
        %2192 = vmatprep.subr.mxu0 0.0
        %2193 = vmatpush1.msra.mxu0 0.0
        %2194 = vmatprep.subr.mxu0 0.0
        %2195 = vmatpush1.msra.mxu0 0.0
        %2196 = vmatprep.subr.mxu0 0.0
        %2197 = vmatpush1.msra.mxu0 0.0
        %2198 = vmatprep.subr.mxu0 0.0
        %2199 = vmatpush1.msra.mxu0 0.0
        %2200 = vmatprep.subr.mxu0 0.0
        %2201 = vmatpush1.msra.mxu0 0.0
        %2202 = vmatprep.subr.mxu0 0.0
        %2203 = vmatpush1.msra.mxu0 0.0
        %2204 = vmatprep.subr.mxu0 0.0
        %2205 = vmatpush1.msra.mxu0 0.0
        %2206 = vmatprep.subr.mxu0 0.0
        %2207 = vmatpush1.msra.mxu0 0.0
        %2208 = vmatprep.subr.mxu0 0.0
        %2209 = vmatpush1.msra.mxu0 0.0
        %2210 = vmatprep.subr.mxu0 0.0
        %2211 = vmatpush1.msra.mxu0 0.0
        %2212 = vmatprep.subr.mxu0 0.0
        %2213 = vmatpush1.msra.mxu0 0.0
        %2214 = vmatprep.subr.mxu0 0.0
        %2215 = vmatpush1.msra.mxu0 0.0
        %2216 = vmatprep.subr.mxu0 0.0
        %2217 = vmatpush1.msra.mxu0 0.0
        %2218 = vmatprep.subr.mxu0 0.0
        %2219 = vmatpush1.msra.mxu0 0.0
        %2220 = vmatprep.subr.mxu0 0.0
        %2221 = vmatpush1.msra.mxu0 0.0
        %2222 = vmatprep.subr.mxu0 0.0
        %2223 = vmatpush1.msra.mxu0 0.0
        %2224 = vmatprep.subr.mxu0 0.0
        %2225 = vmatpush1.msra.mxu0 0.0
        %2226 = vmatprep.subr.mxu0 0.0
        %2227 = vmatpush1.msra.mxu0 0.0
        %2228 = vmatprep.subr.mxu0 0.0
        %2229 = vmatpush1.msra.mxu0 0.0
        %2230 = vmatprep.subr.mxu0 0.0
        %2231 = vmatpush1.msra.mxu0 0.0
        %2232 = vmatprep.subr.mxu0 0.0
        %2233 = vmatpush1.msra.mxu0 0.0
        %2234 = vmatprep.subr.mxu0 0.0
        %2235 = vmatpush1.msra.mxu0 0.0
        %2236 = vmatprep.subr.mxu0 0.0
        %2237 = vmatpush1.msra.mxu0 0.0
        %2238 = vmatprep.subr.mxu0 0.0
        %2239 = vmatpush1.msra.mxu0 0.0
        %2240 = vmatprep.subr.mxu0 0.0
        %2241 = vmatpush1.msra.mxu0 0.0
        %2242 = vmatprep.subr.mxu0 0.0
        %2243 = vmatpush1.msra.mxu0 0.0
        %2244 = vmatprep.subr.mxu0 0.0
        %2245 = vmatpush1.msra.mxu0 0.0
        %2246 = vmatprep.subr.mxu0 0.0
        %2247 = vmatpush1.msra.mxu0 0.0
        %2248 = vmatprep.subr.mxu0 0.0
        %2249 = vmatpush1.msra.mxu0 0.0
        %2250 = vmatprep.mubr.f32.mxu0 0.0
        %2251 = vmatmul.mubr.f32.gmra.mrb[0].mxu0 %v2181
        %v2252 = vpop.f32.mrb[0].mxu0
        %v2253 = vadd.f32 0.0, %v2252
        %v2254 = vpop.f32.mrb[0].mxu0
        %v2255 = vadd.f32 0.0, %v2254
        %2256 = vmatprep.mubr.f32.mxu0 0.0
        %2257 = vmatmul.mubr.f32.gmra.mrb[0].mxu0 %v2184
        %v2258 = vpop.f32.mrb[0].mxu0
        %v2259 = vadd.f32 0.0, %v2258
        %v2260 = vpop.f32.mrb[0].mxu0
        %v2261 = vadd.f32 0.0, %v2260
        %2262 = vdwg.mxu0
        %v2263 = vld [vmem:[%s4] sm:$0xff]
        %v2264 = vld [vmem:[%s4 + $0x8] sm:$0xff]
        %2266 = vset.pattern.permute.xlu0 0
        %2267 = vperm.xlu0 %2266, %v2263
        %v2268 = vpop.permute.xlu0 %2267
        %2271 = vset.pattern.permute.xlu0 0
        %2272 = vperm.xlu0 %2271, %v2264
        %v2273 = vpop.permute.xlu0 %2272
        %v2275 = vmul.f32 %v2174, %v2268
        %v2276 = vmul.f32 %v2175, %v2268
        %v2277 = vmul.f32 %v2176, %v2273
        %v2278 = vmul.f32 %v2177, %v2273
        %v2279 = vadd.f32 %v2275, %v2277
        %v2280 = vrot.slane %v2279, 4
        %v2281 = vadd.f32 %v2279, %v2280
        %v2282 = vrot.slane %v2281, 2
        %v2283 = vadd.f32 %v2281, %v2282
        %v2284 = vrot.slane %v2283, 1
        %v2285 = vadd.f32 %v2283, %v2284
        %v2286 = vadd.f32 %v2276, %v2278
        %v2287 = vrot.slane %v2286, 4
        %v2288 = vadd.f32 %v2286, %v2287
        %v2289 = vrot.slane %v2288, 2
        %v2290 = vadd.f32 %v2288, %v2289
        %v2291 = vrot.slane %v2290, 1
        %v2292 = vadd.f32 %v2290, %v2291
        %v2293 = vld [vmem:[#allocation12] sm:$0xff]
        %v2294 = vld [vmem:[#allocation12 + $0x8] sm:$0xff]
        %v2295 = vld [vmem:[%s6] sm:$0xff]
        %v2296 = vld [vmem:[%s6 + $0x8] sm:$0xff]
        %2298 = vset.pattern.permute.xlu0 0
        %2299 = vperm.xlu0 %2298, %v2295
        %v2300 = vpop.permute.xlu0 %2299
        %2303 = vset.pattern.permute.xlu0 0
        %2304 = vperm.xlu0 %2303, %v2296
        %v2305 = vpop.permute.xlu0 %2304
        %v2308 = vsel %vm1057, %v2293, 0
        %v2311 = vsel %vm1057, %v2294, 0
        %2313 = vmatprep.subr.mxu0 %v2175
        %2314 = vmatpush1.msra.mxu0 %v2174
        %2315 = vmatprep.subr.mxu0 %v2177
        %2316 = vmatpush1.msra.mxu0 %v2176
        %2317 = vmatprep.subr.mxu0 0.0
        %2318 = vmatpush1.msra.mxu0 0.0
        %2319 = vmatprep.subr.mxu0 0.0
        %2320 = vmatpush1.msra.mxu0 0.0
        %2321 = vmatprep.subr.mxu0 0.0
        %2322 = vmatpush1.msra.mxu0 0.0
        %2323 = vmatprep.subr.mxu0 0.0
        %2324 = vmatpush1.msra.mxu0 0.0
        %2325 = vmatprep.subr.mxu0 0.0
        %2326 = vmatpush1.msra.mxu0 0.0
        %2327 = vmatprep.subr.mxu0 0.0
        %2328 = vmatpush1.msra.mxu0 0.0
        %2329 = vmatprep.subr.mxu0 0.0
        %2330 = vmatpush1.msra.mxu0 0.0
        %2331 = vmatprep.subr.mxu0 0.0
        %2332 = vmatpush1.msra.mxu0 0.0
        %2333 = vmatprep.subr.mxu0 0.0
        %2334 = vmatpush1.msra.mxu0 0.0
        %2335 = vmatprep.subr.mxu0 0.0
        %2336 = vmatpush1.msra.mxu0 0.0
        %2337 = vmatprep.subr.mxu0 0.0
        %2338 = vmatpush1.msra.mxu0 0.0
        %2339 = vmatprep.subr.mxu0 0.0
        %2340 = vmatpush1.msra.mxu0 0.0
        %2341 = vmatprep.subr.mxu0 0.0
        %2342 = vmatpush1.msra.mxu0 0.0
        %2343 = vmatprep.subr.mxu0 0.0
        %2344 = vmatpush1.msra.mxu0 0.0
        %2345 = vmatprep.subr.mxu0 0.0
        %2346 = vmatpush1.msra.mxu0 0.0
        %2347 = vmatprep.subr.mxu0 0.0
        %2348 = vmatpush1.msra.mxu0 0.0
        %2349 = vmatprep.subr.mxu0 0.0
        %2350 = vmatpush1.msra.mxu0 0.0
        %2351 = vmatprep.subr.mxu0 0.0
        %2352 = vmatpush1.msra.mxu0 0.0
        %2353 = vmatprep.subr.mxu0 0.0
        %2354 = vmatpush1.msra.mxu0 0.0
        %2355 = vmatprep.subr.mxu0 0.0
        %2356 = vmatpush1.msra.mxu0 0.0
        %2357 = vmatprep.subr.mxu0 0.0
        %2358 = vmatpush1.msra.mxu0 0.0
        %2359 = vmatprep.subr.mxu0 0.0
        %2360 = vmatpush1.msra.mxu0 0.0
        %2361 = vmatprep.subr.mxu0 0.0
        %2362 = vmatpush1.msra.mxu0 0.0
        %2363 = vmatprep.subr.mxu0 0.0
        %2364 = vmatpush1.msra.mxu0 0.0
        %2365 = vmatprep.subr.mxu0 0.0
        %2366 = vmatpush1.msra.mxu0 0.0
        %2367 = vmatprep.subr.mxu0 0.0
        %2368 = vmatpush1.msra.mxu0 0.0
        %2369 = vmatprep.subr.mxu0 0.0
        %2370 = vmatpush1.msra.mxu0 0.0
        %2371 = vmatprep.subr.mxu0 0.0
        %2372 = vmatpush1.msra.mxu0 0.0
        %2373 = vmatprep.subr.mxu0 0.0
        %2374 = vmatpush1.msra.mxu0 0.0
        %2375 = vmatprep.subr.mxu0 0.0
        %2376 = vmatpush1.msra.mxu0 0.0
        %2377 = vmatprep.mubr.f32.mxu0 0.0
        %2378 = vmatmul.mubr.f32.gmra.mrb[0].mxu0 %v2308
        %v2379 = vpop.f32.mrb[0].mxu0
        %v2380 = vadd.f32 %v2300, %v2379
        %v2381 = vpop.f32.mrb[0].mxu0
        %v2382 = vadd.f32 %v2300, %v2381
        %2383 = vmatprep.mubr.f32.mxu0 0.0
        %2384 = vmatmul.mubr.f32.gmra.mrb[0].mxu0 %v2311
        %v2385 = vpop.f32.mrb[0].mxu0
        %v2386 = vadd.f32 %v2305, %v2385
        %v2387 = vpop.f32.mrb[0].mxu0
        %v2388 = vadd.f32 %v2305, %v2387
        %2389 = vdwg.mxu0
        %2390 = vst [vmem:[#allocation4] sm:$0xff] 0.0
        %2391 = vst [vmem:[#allocation4 + $0x20] sm:$0xff] 0.0
        %2392 = vst [vmem:[#allocation4 + $0x18] sm:$0xff] 0.0
        %2393 = vst [vmem:[#allocation4 + $0x38] sm:$0xff] 0.0
        %2394 = vst [vmem:[#allocation4 + $0x8] sm:$0xff] %v2174
        %2395 = vst [vmem:[#allocation4 + $0x10] sm:$0xff] %v2175
        %2396 = vst [vmem:[#allocation4 + $0x28] sm:$0xff] %v2176
        %2397 = vst [vmem:[#allocation4 + $0x30] sm:$0xff] %v2177
        %v2398 = vld [vmem:[#allocation4 + $0x8] sm:$0xff]
        %v2399 = vld [vmem:[#allocation4 + $0x28] sm:$0xff]
        %2400 = vxpose.xlu0.b32.start [1/16] %v2398, 128
        %2401 = vxpose.xlu0.b32.cont [2/16] %v2399, 128
        %2402 = vxpose.xlu0.b32.cont [3/16] 0.0, 128
        %2403 = vxpose.xlu0.b32.cont [4/16] 0.0, 128
        %2404 = vxpose.xlu0.b32.cont [5/16] 0.0, 128
        %2405 = vxpose.xlu0.b32.cont [6/16] 0.0, 128
        %2406 = vxpose.xlu0.b32.cont [7/16] 0.0, 128
        %2407 = vxpose.xlu0.b32.cont [8/16] 0.0, 128
        %2408 = vxpose.xlu0.b32.cont [9/16] 0.0, 128
        %2409 = vxpose.xlu0.b32.cont [10/16] 0.0, 128
        %2410 = vxpose.xlu0.b32.cont [11/16] 0.0, 128
        %2411 = vxpose.xlu0.b32.cont [12/16] 0.0, 128
        %2412 = vxpose.xlu0.b32.cont [13/16] 0.0, 128
        %2413 = vxpose.xlu0.b32.cont [14/16] 0.0, 128
        %2414 = vxpose.xlu0.b32.cont [15/16] 0.0, 128
        %2415 = vxpose.xlu0.b32.end [16/16] 0.0, 128
        %v2416 = vpop.trf.xlu0
        %v2417 = vpop.trf.xlu0
        %v2418 = vpop.trf.xlu0
        %v2419 = vpop.trf.xlu0
        %v2420 = vpop.trf.xlu0
        %v2421 = vpop.trf.xlu0
        %v2422 = vpop.trf.xlu0
        %v2423 = vpop.trf.xlu0
        %v2424 = vpop.trf.xlu0
        %v2425 = vpop.trf.xlu0
        %v2426 = vpop.trf.xlu0
        %v2427 = vpop.trf.xlu0
        %v2428 = vpop.trf.xlu0
        %v2429 = vpop.trf.xlu0
        %v2430 = vpop.trf.xlu0
        %v2431 = vpop.trf.xlu0
        %v2433 = vsel %vm1057, %v2416, 0
        %v2436 = vsel %vm1057, %v2417, 0
        %v2439 = vsel %vm1057, %v2418, 0
        %v2442 = vsel %vm1057, %v2419, 0
        %v2445 = vsel %vm1057, %v2420, 0
        %v2448 = vsel %vm1057, %v2421, 0
        %v2451 = vsel %vm1057, %v2422, 0
        %v2454 = vsel %vm1057, %v2423, 0
        %2456 = vmatprep.subr.mxu0 %v2255
        %2457 = vmatpush1.msra.mxu0 %v2253
        %2458 = vmatprep.subr.mxu0 %v2261
        %2459 = vmatpush1.msra.mxu0 %v2259
        %2460 = vmatprep.subr.mxu0 0.0
        %2461 = vmatpush1.msra.mxu0 0.0
        %2462 = vmatprep.subr.mxu0 0.0
        %2463 = vmatpush1.msra.mxu0 0.0
        %2464 = vmatprep.subr.mxu0 0.0
        %2465 = vmatpush1.msra.mxu0 0.0
        %2466 = vmatprep.subr.mxu0 0.0
        %2467 = vmatpush1.msra.mxu0 0.0
        %2468 = vmatprep.subr.mxu0 0.0
        %2469 = vmatpush1.msra.mxu0 0.0
        %2470 = vmatprep.subr.mxu0 0.0
        %2471 = vmatpush1.msra.mxu0 0.0
        %2472 = vmatprep.subr.mxu0 0.0
        %2473 = vmatpush1.msra.mxu0 0.0
        %2474 = vmatprep.subr.mxu0 0.0
        %2475 = vmatpush1.msra.mxu0 0.0
        %2476 = vmatprep.subr.mxu0 0.0
        %2477 = vmatpush1.msra.mxu0 0.0
        %2478 = vmatprep.subr.mxu0 0.0
        %2479 = vmatpush1.msra.mxu0 0.0
        %2480 = vmatprep.subr.mxu0 0.0
        %2481 = vmatpush1.msra.mxu0 0.0
        %2482 = vmatprep.subr.mxu0 0.0
        %2483 = vmatpush1.msra.mxu0 0.0
        %2484 = vmatprep.subr.mxu0 0.0
        %2485 = vmatpush1.msra.mxu0 0.0
        %2486 = vmatprep.subr.mxu0 0.0
        %2487 = vmatpush1.msra.mxu0 0.0
        %2488 = vmatprep.subr.mxu0 0.0
        %2489 = vmatpush1.msra.mxu0 0.0
        %2490 = vmatprep.subr.mxu0 0.0
        %2491 = vmatpush1.msra.mxu0 0.0
        %2492 = vmatprep.subr.mxu0 0.0
        %2493 = vmatpush1.msra.mxu0 0.0
        %2494 = vmatprep.subr.mxu0 0.0
        %2495 = vmatpush1.msra.mxu0 0.0
        %2496 = vmatprep.subr.mxu0 0.0
        %2497 = vmatpush1.msra.mxu0 0.0
        %2498 = vmatprep.subr.mxu0 0.0
        %2499 = vmatpush1.msra.mxu0 0.0
        %2500 = vmatprep.subr.mxu0 0.0
        %2501 = vmatpush1.msra.mxu0 0.0
        %2502 = vmatprep.subr.mxu0 0.0
        %2503 = vmatpush1.msra.mxu0 0.0
        %2504 = vmatprep.subr.mxu0 0.0
        %2505 = vmatpush1.msra.mxu0 0.0
        %2506 = vmatprep.subr.mxu0 0.0
        %2507 = vmatpush1.msra.mxu0 0.0
        %2508 = vmatprep.subr.mxu0 0.0
        %2509 = vmatpush1.msra.mxu0 0.0
        %2510 = vmatprep.subr.mxu0 0.0
        %2511 = vmatpush1.msra.mxu0 0.0
        %2512 = vmatprep.subr.mxu0 0.0
        %2513 = vmatpush1.msra.mxu0 0.0
        %2514 = vmatprep.subr.mxu0 0.0
        %2515 = vmatpush1.msra.mxu0 0.0
        %2516 = vmatprep.subr.mxu0 0.0
        %2517 = vmatpush1.msra.mxu0 0.0
        %2518 = vmatprep.subr.mxu0 0.0
        %2519 = vmatpush1.msra.mxu0 0.0
        %2520 = vmatprep.mubr.f32.mxu0 0.0
        %2521 = vmatmul.mubr.f32.gmra.mrb[0].mxu0 %v2433
        %v2522 = vpop.f32.mrb[0].mxu0
        %v2523 = vadd.f32 %v2285, %v2522
        %v2524 = vpop.f32.mrb[0].mxu0
        %v2525 = vadd.f32 %v2292, %v2524
        %2526 = vmatprep.mubr.f32.mxu0 0.0
        %2527 = vmatmul.mubr.f32.gmra.mrb[0].mxu0 %v2436
        %v2528 = vpop.f32.mrb[0].mxu0
        %v2529 = vadd.f32 %v2285, %v2528
        %v2530 = vpop.f32.mrb[0].mxu0
        %v2531 = vadd.f32 %v2292, %v2530
        %2532 = vmatprep.mubr.f32.mxu0 0.0
        %2533 = vmatmul.mubr.f32.gmra.mrb[0].mxu0 %v2439
        %v2534 = vpop.f32.mrb[0].mxu0
        %v2535 = vadd.f32 %v2285, %v2534
        %v2536 = vpop.f32.mrb[0].mxu0
        %v2537 = vadd.f32 %v2292, %v2536
        %2538 = vmatprep.mubr.f32.mxu0 0.0
        %2539 = vmatmul.mubr.f32.gmra.mrb[0].mxu0 %v2442
        %v2540 = vpop.f32.mrb[0].mxu0
        %v2541 = vadd.f32 %v2285, %v2540
        %v2542 = vpop.f32.mrb[0].mxu0
        %v2543 = vadd.f32 %v2292, %v2542
        %2544 = vmatprep.mubr.f32.mxu0 0.0
        %2545 = vmatmul.mubr.f32.gmra.mrb[0].mxu0 %v2445
        %v2546 = vpop.f32.mrb[0].mxu0
        %v2547 = vadd.f32 %v2285, %v2546
        %v2548 = vpop.f32.mrb[0].mxu0
        %v2549 = vadd.f32 %v2292, %v2548
        %2550 = vmatprep.mubr.f32.mxu0 0.0
        %2551 = vmatmul.mubr.f32.gmra.mrb[0].mxu0 %v2448
        %v2552 = vpop.f32.mrb[0].mxu0
        %v2553 = vadd.f32 %v2285, %v2552
        %v2554 = vpop.f32.mrb[0].mxu0
        %v2555 = vadd.f32 %v2292, %v2554
        %2556 = vmatprep.mubr.f32.mxu0 0.0
        %2557 = vmatmul.mubr.f32.gmra.mrb[0].mxu0 %v2451
        %v2558 = vpop.f32.mrb[0].mxu0
        %v2559 = vadd.f32 %v2285, %v2558
        %v2560 = vpop.f32.mrb[0].mxu0
        %v2561 = vadd.f32 %v2292, %v2560
        %2562 = vmatprep.mubr.f32.mxu0 0.0
        %2563 = vmatmul.mubr.f32.gmra.mrb[0].mxu0 %v2454
        %v2564 = vpop.f32.mrb[0].mxu0
        %v2565 = vadd.f32 %v2285, %v2564
        %v2566 = vpop.f32.mrb[0].mxu0
        %v2567 = vadd.f32 %v2292, %v2566
        %2568 = vdwg.mxu0
        %v2569 = vmax.f32 %v2523, %v2525
        %2570 = vmax.xlane.f32.xlu0 %v2569
        %v2571 = vpop.xlane.xlu0 %2570
        %v2572 = vmax.f32 %v2529, %v2531
        %2573 = vmax.xlane.f32.xlu0 %v2572
        %v2574 = vpop.xlane.xlu0 %2573
        %v2575 = vmax.f32 %v2535, %v2537
        %2576 = vmax.xlane.f32.xlu0 %v2575
        %v2577 = vpop.xlane.xlu0 %2576
        %v2578 = vmax.f32 %v2541, %v2543
        %2579 = vmax.xlane.f32.xlu0 %v2578
        %v2580 = vpop.xlane.xlu0 %2579
        %v2581 = vmax.f32 %v2547, %v2549
        %2582 = vmax.xlane.f32.xlu0 %v2581
        %v2583 = vpop.xlane.xlu0 %2582
        %v2584 = vmax.f32 %v2553, %v2555
        %2585 = vmax.xlane.f32.xlu0 %v2584
        %v2586 = vpop.xlane.xlu0 %2585
        %v2587 = vmax.f32 %v2559, %v2561
        %2588 = vmax.xlane.f32.xlu0 %v2587
        %v2589 = vpop.xlane.xlu0 %2588
        %v2590 = vmax.f32 %v2565, %v2567
        %2591 = vmax.xlane.f32.xlu0 %v2590
        %v2592 = vpop.xlane.xlu0 %2591
        %v2593 = vsub.f32 %v2523, %v2571
        %v2594 = vsub.f32 %v2525, %v2571
        %v2595 = vsub.f32 %v2529, %v2574
        %v2596 = vsub.f32 %v2531, %v2574
        %v2597 = vsub.f32 %v2535, %v2577
        %v2598 = vsub.f32 %v2537, %v2577
        %v2599 = vsub.f32 %v2541, %v2580
        %v2600 = vsub.f32 %v2543, %v2580
        %v2601 = vsub.f32 %v2547, %v2583
        %v2602 = vsub.f32 %v2549, %v2583
        %v2603 = vsub.f32 %v2553, %v2586
        %v2604 = vsub.f32 %v2555, %v2586
        %v2605 = vsub.f32 %v2559, %v2589
        %v2606 = vsub.f32 %v2561, %v2589
        %v2607 = vsub.f32 %v2565, %v2592
        %v2608 = vsub.f32 %v2567, %v2592
        %v2609 = vmul.f32 %v2593, 1.442695
        %v2610 = vpow.pop %v2609
        %v2611 = vmul.f32 %v2594, 1.442695
        %v2612 = vpow.pop %v2611
        %v2613 = vmul.f32 %v2595, 1.442695
        %v2614 = vpow.pop %v2613
        %v2615 = vmul.f32 %v2596, 1.442695
        %v2616 = vpow.pop %v2615
        %v2617 = vmul.f32 %v2597, 1.442695
        %v2618 = vpow.pop %v2617
        %v2619 = vmul.f32 %v2598, 1.442695
        %v2620 = vpow.pop %v2619
        %v2621 = vmul.f32 %v2599, 1.442695
        %v2622 = vpow.pop %v2621
        %v2623 = vmul.f32 %v2600, 1.442695
        %v2624 = vpow.pop %v2623
        %v2625 = vmul.f32 %v2601, 1.442695
        %v2626 = vpow.pop %v2625
        %v2627 = vmul.f32 %v2602, 1.442695
        %v2628 = vpow.pop %v2627
        %v2629 = vmul.f32 %v2603, 1.442695
        %v2630 = vpow.pop %v2629
        %v2631 = vmul.f32 %v2604, 1.442695
        %v2632 = vpow.pop %v2631
        %v2633 = vmul.f32 %v2605, 1.442695
        %v2634 = vpow.pop %v2633
        %v2635 = vmul.f32 %v2606, 1.442695
        %v2636 = vpow.pop %v2635
        %v2637 = vmul.f32 %v2607, 1.442695
        %v2638 = vpow.pop %v2637
        %v2639 = vmul.f32 %v2608, 1.442695
        %v2640 = vpow.pop %v2639
        %v2641 = vadd.f32 %v2610, %v2612
        %2642 = vadd.xlane.f32.xlu0 %v2641
        %v2643 = vpop.xlane.xlu0 %2642
        %v2644 = vadd.f32 %v2614, %v2616
        %2645 = vadd.xlane.f32.xlu0 %v2644
        %v2646 = vpop.xlane.xlu0 %2645
        %v2647 = vadd.f32 %v2618, %v2620
        %2648 = vadd.xlane.f32.xlu0 %v2647
        %v2649 = vpop.xlane.xlu0 %2648
        %v2650 = vadd.f32 %v2622, %v2624
        %2651 = vadd.xlane.f32.xlu0 %v2650
        %v2652 = vpop.xlane.xlu0 %2651
        %v2653 = vadd.f32 %v2626, %v2628
        %2654 = vadd.xlane.f32.xlu0 %v2653
        %v2655 = vpop.xlane.xlu0 %2654
        %v2656 = vadd.f32 %v2630, %v2632
        %2657 = vadd.xlane.f32.xlu0 %v2656
        %v2658 = vpop.xlane.xlu0 %2657
        %v2659 = vadd.f32 %v2634, %v2636
        %2660 = vadd.xlane.f32.xlu0 %v2659
        %v2661 = vpop.xlane.xlu0 %2660
        %v2662 = vadd.f32 %v2638, %v2640
        %2663 = vadd.xlane.f32.xlu0 %v2662
        %v2664 = vpop.xlane.xlu0 %2663
        %v2665 = vrcp.pop %v2643
        %v2666 = vmul.f32 1.0, %v2665
        %v2667 = vrcp.pop %v2646
        %v2668 = vmul.f32 1.0, %v2667
        %v2669 = vrcp.pop %v2649
        %v2670 = vmul.f32 1.0, %v2669
        %v2671 = vrcp.pop %v2652
        %v2672 = vmul.f32 1.0, %v2671
        %v2673 = vrcp.pop %v2655
        %v2674 = vmul.f32 1.0, %v2673
        %v2675 = vrcp.pop %v2658
        %v2676 = vmul.f32 1.0, %v2675
        %v2677 = vrcp.pop %v2661
        %v2678 = vmul.f32 1.0, %v2677
        %v2679 = vrcp.pop %v2664
        %v2680 = vmul.f32 1.0, %v2679
        %2681 = vmatprep.subr.mxu0 %v2612
        %2682 = vmatpush1.xpose.msra.mxu0 %v2610
        %2683 = vmatprep.subr.mxu0 %v2616
        %2684 = vmatpush1.xpose.msra.mxu0 %v2614
        %2685 = vmatprep.subr.mxu0 %v2620
        %2686 = vmatpush1.xpose.msra.mxu0 %v2618
        %2687 = vmatprep.subr.mxu0 %v2624
        %2688 = vmatpush1.xpose.msra.mxu0 %v2622
        %2689 = vmatprep.subr.mxu0 %v2628
        %2690 = vmatpush1.xpose.msra.mxu0 %v2626
        %2691 = vmatprep.subr.mxu0 %v2632
        %2692 = vmatpush1.xpose.msra.mxu0 %v2630
        %2693 = vmatprep.subr.mxu0 %v2636
        %2694 = vmatpush1.xpose.msra.mxu0 %v2634
        %2695 = vmatprep.subr.mxu0 %v2640
        %2696 = vmatpush1.xpose.msra.mxu0 %v2638
        %2697 = vmatprep.subr.mxu0 0.0
        %2698 = vmatpush1.xpose.msra.mxu0 0.0
        %2699 = vmatprep.subr.mxu0 0.0
        %2700 = vmatpush1.xpose.msra.mxu0 0.0
        %2701 = vmatprep.subr.mxu0 0.0
        %2702 = vmatpush1.xpose.msra.mxu0 0.0
        %2703 = vmatprep.subr.mxu0 0.0
        %2704 = vmatpush1.xpose.msra.mxu0 0.0
        %2705 = vmatprep.subr.mxu0 0.0
        %2706 = vmatpush1.xpose.msra.mxu0 0.0
        %2707 = vmatprep.subr.mxu0 0.0
        %2708 = vmatpush1.xpose.msra.mxu0 0.0
        %2709 = vmatprep.subr.mxu0 0.0
        %2710 = vmatpush1.xpose.msra.mxu0 0.0
        %2711 = vmatprep.subr.mxu0 0.0
        %2712 = vmatpush1.xpose.msra.mxu0 0.0
        %2713 = vmatprep.subr.mxu0 0.0
        %2714 = vmatpush1.xpose.msra.mxu0 0.0
        %2715 = vmatprep.subr.mxu0 0.0
        %2716 = vmatpush1.xpose.msra.mxu0 0.0
        %2717 = vmatprep.subr.mxu0 0.0
        %2718 = vmatpush1.xpose.msra.mxu0 0.0
        %2719 = vmatprep.subr.mxu0 0.0
        %2720 = vmatpush1.xpose.msra.mxu0 0.0
        %2721 = vmatprep.subr.mxu0 0.0
        %2722 = vmatpush1.xpose.msra.mxu0 0.0
        %2723 = vmatprep.subr.mxu0 0.0
        %2724 = vmatpush1.xpose.msra.mxu0 0.0
        %2725 = vmatprep.subr.mxu0 0.0
        %2726 = vmatpush1.xpose.msra.mxu0 0.0
        %2727 = vmatprep.subr.mxu0 0.0
        %2728 = vmatpush1.xpose.msra.mxu0 0.0
        %2729 = vmatprep.subr.mxu0 0.0
        %2730 = vmatpush1.xpose.msra.mxu0 0.0
        %2731 = vmatprep.subr.mxu0 0.0
        %2732 = vmatpush1.xpose.msra.mxu0 0.0
        %2733 = vmatprep.subr.mxu0 0.0
        %2734 = vmatpush1.xpose.msra.mxu0 0.0
        %2735 = vmatprep.subr.mxu0 0.0
        %2736 = vmatpush1.xpose.msra.mxu0 0.0
        %2737 = vmatprep.subr.mxu0 0.0
        %2738 = vmatpush1.xpose.msra.mxu0 0.0
        %2739 = vmatprep.subr.mxu0 0.0
        %2740 = vmatpush1.xpose.msra.mxu0 0.0
        %2741 = vmatprep.subr.mxu0 0.0
        %2742 = vmatpush1.xpose.msra.mxu0 0.0
        %2743 = vmatprep.subr.mxu0 0.0
        %2744 = vmatpush1.xpose.msra.mxu0 0.0
        %2745 = vmatprep.mubr.f32.mxu0 %v2382
        %2746 = vmatmul.mubr.f32.gmra.mrb[0].mxu0 %v2380
        %v2747 = vpop.f32.mrb[0].mxu0
        %v2748 = vadd.f32 0.0, %v2747
        %v2749 = vpop.f32.mrb[0].mxu0
        %2750 = vmatprep.mubr.f32.mxu0 %v2388
        %2751 = vmatmul.mubr.f32.gmra.mrb[0].mxu0 %v2386
        %v2752 = vpop.f32.mrb[0].mxu0
        %v2753 = vadd.f32 0.0, %v2752
        %v2754 = vpop.f32.mrb[0].mxu0
        %2755 = vdwg.mxu0
        %2756 = vxpose.xlu0.b32.start [1/16] %v2666, 128
        %2757 = vxpose.xlu0.b32.cont [2/16] %v2668, 128
        %2758 = vxpose.xlu0.b32.cont [3/16] %v2670, 128
        %2759 = vxpose.xlu0.b32.cont [4/16] %v2672, 128
        %2760 = vxpose.xlu0.b32.cont [5/16] %v2674, 128
        %2761 = vxpose.xlu0.b32.cont [6/16] %v2676, 128
        %2762 = vxpose.xlu0.b32.cont [7/16] %v2678, 128
        %2763 = vxpose.xlu0.b32.cont [8/16] %v2680, 128
        %2764 = vxpose.xlu0.b32.cont [9/16] 0.0, 128
        %2765 = vxpose.xlu0.b32.cont [10/16] 0.0, 128
        %2766 = vxpose.xlu0.b32.cont [11/16] 0.0, 128
        %2767 = vxpose.xlu0.b32.cont [12/16] 0.0, 128
        %2768 = vxpose.xlu0.b32.cont [13/16] 0.0, 128
        %2769 = vxpose.xlu0.b32.cont [14/16] 0.0, 128
        %2770 = vxpose.xlu0.b32.cont [15/16] 0.0, 128
        %2771 = vxpose.xlu0.b32.end [16/16] 0.0, 128
        %v2772 = vpop.trf.xlu0
        %v2773 = vpop.trf.xlu0
        %v2774 = vpop.trf.xlu0
        %v2775 = vpop.trf.xlu0
        %v2776 = vpop.trf.xlu0
        %v2777 = vpop.trf.xlu0
        %v2778 = vpop.trf.xlu0
        %v2779 = vpop.trf.xlu0
        %v2780 = vpop.trf.xlu0
        %v2781 = vpop.trf.xlu0
        %v2782 = vpop.trf.xlu0
        %v2783 = vpop.trf.xlu0
        %v2784 = vpop.trf.xlu0
        %v2785 = vpop.trf.xlu0
        %v2786 = vpop.trf.xlu0
        %v2787 = vpop.trf.xlu0
        %v2788 = vlaneseq
        %v2789 = vshrl.u32 %v2788, 7
        %v2790 = vsub.s32 0, %v2789
        %v2791 = vrot.slane %v2772, %v2790
        %v2792 = vmul.f32 %v2748, %v2791
        %v2793 = vmul.f32 %v2753, %v2791
        %v2794 = vadd.f32 %v2792, %v2398
        %v2795 = vadd.f32 %v2793, %v2399
        %2796 = vst.msk [vmem:[#allocation4 + $0x8] sm:$0xff] %vm1936, %v2794
        %2797 = vst.msk [vmem:[#allocation4 + $0x28] sm:$0xff] %vm1936, %v2795
        %v2798 = vld [vmem:[#allocation4 + $0x8] sm:$0xff]
        %v2799 = vld [vmem:[#allocation4 + $0x28] sm:$0xff]
        %2802 = vrot.lane.b32.xlu0 %v2798, 64
        %v2803 = vpop.permute.xlu0 %2802
        %2804 = vrot.lane.b32.xlu0 %v2799, 64
        %v2805 = vpop.permute.xlu0 %2804
        %2808 = vxpose.xlu0.b32.start [1/16] %v2803, 128
        %2809 = vxpose.xlu0.b32.cont [2/16] %v2805, 128
        %2810 = vxpose.xlu0.b32.cont [3/16] 0.0, 128
        %2811 = vxpose.xlu0.b32.cont [4/16] 0.0, 128
        %2812 = vxpose.xlu0.b32.cont [5/16] 0.0, 128
        %2813 = vxpose.xlu0.b32.cont [6/16] 0.0, 128
        %2814 = vxpose.xlu0.b32.cont [7/16] 0.0, 128
        %2815 = vxpose.xlu0.b32.cont [8/16] 0.0, 128
        %2816 = vxpose.xlu0.b32.cont [9/16] 0.0, 128
        %2817 = vxpose.xlu0.b32.cont [10/16] 0.0, 128
        %2818 = vxpose.xlu0.b32.cont [11/16] 0.0, 128
        %2819 = vxpose.xlu0.b32.cont [12/16] 0.0, 128
        %2820 = vxpose.xlu0.b32.cont [13/16] 0.0, 128
        %2821 = vxpose.xlu0.b32.cont [14/16] 0.0, 128
        %2822 = vxpose.xlu0.b32.cont [15/16] 0.0, 128
        %2823 = vxpose.xlu0.b32.end [16/16] 0.0, 128
        %v2824 = vpop.trf.xlu0
        %v2825 = vpop.trf.xlu0
        %v2826 = vpop.trf.xlu0
        %v2827 = vpop.trf.xlu0
        %v2828 = vpop.trf.xlu0
        %v2829 = vpop.trf.xlu0
        %v2830 = vpop.trf.xlu0
        %v2831 = vpop.trf.xlu0
        %v2832 = vpop.trf.xlu0
        %v2833 = vpop.trf.xlu0
        %v2834 = vpop.trf.xlu0
        %v2835 = vpop.trf.xlu0
        %v2836 = vpop.trf.xlu0
        %v2837 = vpop.trf.xlu0
        %v2838 = vpop.trf.xlu0
        %v2839 = vpop.trf.xlu0
        %v2841 = vsel %vm1057, %v2824, 0
        %v2844 = vsel %vm1057, %v2825, 0
        %v2847 = vsel %vm1057, %v2826, 0
        %v2850 = vsel %vm1057, %v2827, 0
        %v2853 = vsel %vm1057, %v2828, 0
        %v2856 = vsel %vm1057, %v2829, 0
        %v2859 = vsel %vm1057, %v2830, 0
        %v2862 = vsel %vm1057, %v2831, 0
        %2864 = vmatprep.subr.mxu0 %v2255
        %2865 = vmatpush1.msra.mxu0 %v2253
        %2866 = vmatprep.subr.mxu0 %v2261
        %2867 = vmatpush1.msra.mxu0 %v2259
        %2868 = vmatprep.subr.mxu0 0.0
        %2869 = vmatpush1.msra.mxu0 0.0
        %2870 = vmatprep.subr.mxu0 0.0
        %2871 = vmatpush1.msra.mxu0 0.0
        %2872 = vmatprep.subr.mxu0 0.0
        %2873 = vmatpush1.msra.mxu0 0.0
        %2874 = vmatprep.subr.mxu0 0.0
        %2875 = vmatpush1.msra.mxu0 0.0
        %2876 = vmatprep.subr.mxu0 0.0
        %2877 = vmatpush1.msra.mxu0 0.0
        %2878 = vmatprep.subr.mxu0 0.0
        %2879 = vmatpush1.msra.mxu0 0.0
        %2880 = vmatprep.subr.mxu0 0.0
        %2881 = vmatpush1.msra.mxu0 0.0
        %2882 = vmatprep.subr.mxu0 0.0
        %2883 = vmatpush1.msra.mxu0 0.0
        %2884 = vmatprep.subr.mxu0 0.0
        %2885 = vmatpush1.msra.mxu0 0.0
        %2886 = vmatprep.subr.mxu0 0.0
        %2887 = vmatpush1.msra.mxu0 0.0
        %2888 = vmatprep.subr.mxu0 0.0
        %2889 = vmatpush1.msra.mxu0 0.0
        %2890 = vmatprep.subr.mxu0 0.0
        %2891 = vmatpush1.msra.mxu0 0.0
        %2892 = vmatprep.subr.mxu0 0.0
        %2893 = vmatpush1.msra.mxu0 0.0
        %2894 = vmatprep.subr.mxu0 0.0
        %2895 = vmatpush1.msra.mxu0 0.0
        %2896 = vmatprep.subr.mxu0 0.0
        %2897 = vmatpush1.msra.mxu0 0.0
        %2898 = vmatprep.subr.mxu0 0.0
        %2899 = vmatpush1.msra.mxu0 0.0
        %2900 = vmatprep.subr.mxu0 0.0
        %2901 = vmatpush1.msra.mxu0 0.0
        %2902 = vmatprep.subr.mxu0 0.0
        %2903 = vmatpush1.msra.mxu0 0.0
        %2904 = vmatprep.subr.mxu0 0.0
        %2905 = vmatpush1.msra.mxu0 0.0
        %2906 = vmatprep.subr.mxu0 0.0
        %2907 = vmatpush1.msra.mxu0 0.0
        %2908 = vmatprep.subr.mxu0 0.0
        %2909 = vmatpush1.msra.mxu0 0.0
        %2910 = vmatprep.subr.mxu0 0.0
        %2911 = vmatpush1.msra.mxu0 0.0
        %2912 = vmatprep.subr.mxu0 0.0
        %2913 = vmatpush1.msra.mxu0 0.0
        %2914 = vmatprep.subr.mxu0 0.0
        %2915 = vmatpush1.msra.mxu0 0.0
        %2916 = vmatprep.subr.mxu0 0.0
        %2917 = vmatpush1.msra.mxu0 0.0
        %2918 = vmatprep.subr.mxu0 0.0
        %2919 = vmatpush1.msra.mxu0 0.0
        %2920 = vmatprep.subr.mxu0 0.0
        %2921 = vmatpush1.msra.mxu0 0.0
        %2922 = vmatprep.subr.mxu0 0.0
        %2923 = vmatpush1.msra.mxu0 0.0
        %2924 = vmatprep.subr.mxu0 0.0
        %2925 = vmatpush1.msra.mxu0 0.0
        %2926 = vmatprep.subr.mxu0 0.0
        %2927 = vmatpush1.msra.mxu0 0.0
        %2928 = vmatprep.mubr.f32.mxu0 0.0
        %2929 = vmatmul.mubr.f32.gmra.mrb[0].mxu0 %v2841
        %v2930 = vpop.f32.mrb[0].mxu0
        %v2931 = vadd.f32 %v2285, %v2930
        %v2932 = vpop.f32.mrb[0].mxu0
        %v2933 = vadd.f32 %v2292, %v2932
        %2934 = vmatprep.mubr.f32.mxu0 0.0
        %2935 = vmatmul.mubr.f32.gmra.mrb[0].mxu0 %v2844
        %v2936 = vpop.f32.mrb[0].mxu0
        %v2937 = vadd.f32 %v2285, %v2936
        %v2938 = vpop.f32.mrb[0].mxu0
        %v2939 = vadd.f32 %v2292, %v2938
        %2940 = vmatprep.mubr.f32.mxu0 0.0
        %2941 = vmatmul.mubr.f32.gmra.mrb[0].mxu0 %v2847
        %v2942 = vpop.f32.mrb[0].mxu0
        %v2943 = vadd.f32 %v2285, %v2942
        %v2944 = vpop.f32.mrb[0].mxu0
        %v2945 = vadd.f32 %v2292, %v2944
        %2946 = vmatprep.mubr.f32.mxu0 0.0
        %2947 = vmatmul.mubr.f32.gmra.mrb[0].mxu0 %v2850
        %v2948 = vpop.f32.mrb[0].mxu0
        %v2949 = vadd.f32 %v2285, %v2948
        %v2950 = vpop.f32.mrb[0].mxu0
        %v2951 = vadd.f32 %v2292, %v2950
        %2952 = vmatprep.mubr.f32.mxu0 0.0
        %2953 = vmatmul.mubr.f32.gmra.mrb[0].mxu0 %v2853
        %v2954 = vpop.f32.mrb[0].mxu0
        %v2955 = vadd.f32 %v2285, %v2954
        %v2956 = vpop.f32.mrb[0].mxu0
        %v2957 = vadd.f32 %v2292, %v2956
        %2958 = vmatprep.mubr.f32.mxu0 0.0
        %2959 = vmatmul.mubr.f32.gmra.mrb[0].mxu0 %v2856
        %v2960 = vpop.f32.mrb[0].mxu0
        %v2961 = vadd.f32 %v2285, %v2960
        %v2962 = vpop.f32.mrb[0].mxu0
        %v2963 = vadd.f32 %v2292, %v2962
        %2964 = vmatprep.mubr.f32.mxu0 0.0
        %2965 = vmatmul.mubr.f32.gmra.mrb[0].mxu0 %v2859
        %v2966 = vpop.f32.mrb[0].mxu0
        %v2967 = vadd.f32 %v2285, %v2966
        %v2968 = vpop.f32.mrb[0].mxu0
        %v2969 = vadd.f32 %v2292, %v2968
        %2970 = vmatprep.mubr.f32.mxu0 0.0
        %2971 = vmatmul.mubr.f32.gmra.mrb[0].mxu0 %v2862
        %v2972 = vpop.f32.mrb[0].mxu0
        %v2973 = vadd.f32 %v2285, %v2972
        %v2974 = vpop.f32.mrb[0].mxu0
        %v2975 = vadd.f32 %v2292, %v2974
        %2976 = vdwg.mxu0
        %v2977 = vmax.f32 %v2931, %v2933
        %2978 = vmax.xlane.f32.xlu0 %v2977
        %v2979 = vpop.xlane.xlu0 %2978
        %v2980 = vmax.f32 %v2937, %v2939
        %2981 = vmax.xlane.f32.xlu0 %v2980
        %v2982 = vpop.xlane.xlu0 %2981
        %v2983 = vmax.f32 %v2943, %v2945
        %2984 = vmax.xlane.f32.xlu0 %v2983
        %v2985 = vpop.xlane.xlu0 %2984
        %v2986 = vmax.f32 %v2949, %v2951
        %2987 = vmax.xlane.f32.xlu0 %v2986
        %v2988 = vpop.xlane.xlu0 %2987
        %v2989 = vmax.f32 %v2955, %v2957
        %2990 = vmax.xlane.f32.xlu0 %v2989
        %v2991 = vpop.xlane.xlu0 %2990
        %v2992 = vmax.f32 %v2961, %v2963
        %2993 = vmax.xlane.f32.xlu0 %v2992
        %v2994 = vpop.xlane.xlu0 %2993
        %v2995 = vmax.f32 %v2967, %v2969
        %2996 = vmax.xlane.f32.xlu0 %v2995
        %v2997 = vpop.xlane.xlu0 %2996
        %v2998 = vmax.f32 %v2973, %v2975
        %2999 = vmax.xlane.f32.xlu0 %v2998
        %v3000 = vpop.xlane.xlu0 %2999
        %v3001 = vsub.f32 %v2931, %v2979
        %v3002 = vsub.f32 %v2933, %v2979
        %v3003 = vsub.f32 %v2937, %v2982
        %v3004 = vsub.f32 %v2939, %v2982
        %v3005 = vsub.f32 %v2943, %v2985
        %v3006 = vsub.f32 %v2945, %v2985
        %v3007 = vsub.f32 %v2949, %v2988
        %v3008 = vsub.f32 %v2951, %v2988
        %v3009 = vsub.f32 %v2955, %v2991
        %v3010 = vsub.f32 %v2957, %v2991
        %v3011 = vsub.f32 %v2961, %v2994
        %v3012 = vsub.f32 %v2963, %v2994
        %v3013 = vsub.f32 %v2967, %v2997
        %v3014 = vsub.f32 %v2969, %v2997
        %v3015 = vsub.f32 %v2973, %v3000
        %v3016 = vsub.f32 %v2975, %v3000
        %v3017 = vmul.f32 %v3001, 1.442695
        %v3018 = vpow.pop %v3017
        %v3019 = vmul.f32 %v3002, 1.442695
        %v3020 = vpow.pop %v3019
        %v3021 = vmul.f32 %v3003, 1.442695
        %v3022 = vpow.pop %v3021
        %v3023 = vmul.f32 %v3004, 1.442695
        %v3024 = vpow.pop %v3023
        %v3025 = vmul.f32 %v3005, 1.442695
        %v3026 = vpow.pop %v3025
        %v3027 = vmul.f32 %v3006, 1.442695
        %v3028 = vpow.pop %v3027
        %v3029 = vmul.f32 %v3007, 1.442695
        %v3030 = vpow.pop %v3029
        %v3031 = vmul.f32 %v3008, 1.442695
        %v3032 = vpow.pop %v3031
        %v3033 = vmul.f32 %v3009, 1.442695
        %v3034 = vpow.pop %v3033
        %v3035 = vmul.f32 %v3010, 1.442695
        %v3036 = vpow.pop %v3035
        %v3037 = vmul.f32 %v3011, 1.442695
        %v3038 = vpow.pop %v3037
        %v3039 = vmul.f32 %v3012, 1.442695
        %v3040 = vpow.pop %v3039
        %v3041 = vmul.f32 %v3013, 1.442695
        %v3042 = vpow.pop %v3041
        %v3043 = vmul.f32 %v3014, 1.442695
        %v3044 = vpow.pop %v3043
        %v3045 = vmul.f32 %v3015, 1.442695
        %v3046 = vpow.pop %v3045
        %v3047 = vmul.f32 %v3016, 1.442695
        %v3048 = vpow.pop %v3047
        %v3049 = vadd.f32 %v3018, %v3020
        %3050 = vadd.xlane.f32.xlu0 %v3049
        %v3051 = vpop.xlane.xlu0 %3050
        %v3052 = vadd.f32 %v3022, %v3024
        %3053 = vadd.xlane.f32.xlu0 %v3052
        %v3054 = vpop.xlane.xlu0 %3053
        %v3055 = vadd.f32 %v3026, %v3028
        %3056 = vadd.xlane.f32.xlu0 %v3055
        %v3057 = vpop.xlane.xlu0 %3056
        %v3058 = vadd.f32 %v3030, %v3032
        %3059 = vadd.xlane.f32.xlu0 %v3058
        %v3060 = vpop.xlane.xlu0 %3059
        %v3061 = vadd.f32 %v3034, %v3036
        %3062 = vadd.xlane.f32.xlu0 %v3061
        %v3063 = vpop.xlane.xlu0 %3062
        %v3064 = vadd.f32 %v3038, %v3040
        %3065 = vadd.xlane.f32.xlu0 %v3064
        %v3066 = vpop.xlane.xlu0 %3065
        %v3067 = vadd.f32 %v3042, %v3044
        %3068 = vadd.xlane.f32.xlu0 %v3067
        %v3069 = vpop.xlane.xlu0 %3068
        %v3070 = vadd.f32 %v3046, %v3048
        %3071 = vadd.xlane.f32.xlu0 %v3070
        %v3072 = vpop.xlane.xlu0 %3071
        %v3073 = vrcp.pop %v3051
        %v3074 = vmul.f32 1.0, %v3073
        %v3075 = vrcp.pop %v3054
        %v3076 = vmul.f32 1.0, %v3075
        %v3077 = vrcp.pop %v3057
        %v3078 = vmul.f32 1.0, %v3077
        %v3079 = vrcp.pop %v3060
        %v3080 = vmul.f32 1.0, %v3079
        %v3081 = vrcp.pop %v3063
        %v3082 = vmul.f32 1.0, %v3081
        %v3083 = vrcp.pop %v3066
        %v3084 = vmul.f32 1.0, %v3083
        %v3085 = vrcp.pop %v3069
        %v3086 = vmul.f32 1.0, %v3085
        %v3087 = vrcp.pop %v3072
        %v3088 = vmul.f32 1.0, %v3087
        %3089 = vmatprep.subr.mxu0 %v3020
        %3090 = vmatpush1.xpose.msra.mxu0 %v3018
        %3091 = vmatprep.subr.mxu0 %v3024
        %3092 = vmatpush1.xpose.msra.mxu0 %v3022
        %3093 = vmatprep.subr.mxu0 %v3028
        %3094 = vmatpush1.xpose.msra.mxu0 %v3026
        %3095 = vmatprep.subr.mxu0 %v3032
        %3096 = vmatpush1.xpose.msra.mxu0 %v3030
        %3097 = vmatprep.subr.mxu0 %v3036
        %3098 = vmatpush1.xpose.msra.mxu0 %v3034
        %3099 = vmatprep.subr.mxu0 %v3040
        %3100 = vmatpush1.xpose.msra.mxu0 %v3038
        %3101 = vmatprep.subr.mxu0 %v3044
        %3102 = vmatpush1.xpose.msra.mxu0 %v3042
        %3103 = vmatprep.subr.mxu0 %v3048
        %3104 = vmatpush1.xpose.msra.mxu0 %v3046
        %3105 = vmatprep.subr.mxu0 0.0
        %3106 = vmatpush1.xpose.msra.mxu0 0.0
        %3107 = vmatprep.subr.mxu0 0.0
        %3108 = vmatpush1.xpose.msra.mxu0 0.0
        %3109 = vmatprep.subr.mxu0 0.0
        %3110 = vmatpush1.xpose.msra.mxu0 0.0
        %3111 = vmatprep.subr.mxu0 0.0
        %3112 = vmatpush1.xpose.msra.mxu0 0.0
        %3113 = vmatprep.subr.mxu0 0.0
        %3114 = vmatpush1.xpose.msra.mxu0 0.0
        %3115 = vmatprep.subr.mxu0 0.0
        %3116 = vmatpush1.xpose.msra.mxu0 0.0
        %3117 = vmatprep.subr.mxu0 0.0
        %3118 = vmatpush1.xpose.msra.mxu0 0.0
        %3119 = vmatprep.subr.mxu0 0.0
        %3120 = vmatpush1.xpose.msra.mxu0 0.0
        %3121 = vmatprep.subr.mxu0 0.0
        %3122 = vmatpush1.xpose.msra.mxu0 0.0
        %3123 = vmatprep.subr.mxu0 0.0
        %3124 = vmatpush1.xpose.msra.mxu0 0.0
        %3125 = vmatprep.subr.mxu0 0.0
        %3126 = vmatpush1.xpose.msra.mxu0 0.0
        %3127 = vmatprep.subr.mxu0 0.0
        %3128 = vmatpush1.xpose.msra.mxu0 0.0
        %3129 = vmatprep.subr.mxu0 0.0
        %3130 = vmatpush1.xpose.msra.mxu0 0.0
        %3131 = vmatprep.subr.mxu0 0.0
        %3132 = vmatpush1.xpose.msra.mxu0 0.0
        %3133 = vmatprep.subr.mxu0 0.0
        %3134 = vmatpush1.xpose.msra.mxu0 0.0
        %3135 = vmatprep.subr.mxu0 0.0
        %3136 = vmatpush1.xpose.msra.mxu0 0.0
        %3137 = vmatprep.subr.mxu0 0.0
        %3138 = vmatpush1.xpose.msra.mxu0 0.0
        %3139 = vmatprep.subr.mxu0 0.0
        %3140 = vmatpush1.xpose.msra.mxu0 0.0
        %3141 = vmatprep.subr.mxu0 0.0
        %3142 = vmatpush1.xpose.msra.mxu0 0.0
        %3143 = vmatprep.subr.mxu0 0.0
        %3144 = vmatpush1.xpose.msra.mxu0 0.0
        %3145 = vmatprep.subr.mxu0 0.0
        %3146 = vmatpush1.xpose.msra.mxu0 0.0
        %3147 = vmatprep.subr.mxu0 0.0
        %3148 = vmatpush1.xpose.msra.mxu0 0.0
        %3149 = vmatprep.subr.mxu0 0.0
        %3150 = vmatpush1.xpose.msra.mxu0 0.0
        %3151 = vmatprep.subr.mxu0 0.0
        %3152 = vmatpush1.xpose.msra.mxu0 0.0
        %3153 = vmatprep.mubr.f32.mxu0 %v2382
        %3154 = vmatmul.mubr.f32.gmra.mrb[0].mxu0 %v2380
        %v3155 = vpop.f32.mrb[0].mxu0
        %v3156 = vadd.f32 0.0, %v3155
        %v3157 = vpop.f32.mrb[0].mxu0
        %3158 = vmatprep.mubr.f32.mxu0 %v2388
        %3159 = vmatmul.mubr.f32.gmra.mrb[0].mxu0 %v2386
        %v3160 = vpop.f32.mrb[0].mxu0
        %v3161 = vadd.f32 0.0, %v3160
        %v3162 = vpop.f32.mrb[0].mxu0
        %3163 = vdwg.mxu0
        %3164 = vxpose.xlu0.b32.start [1/16] %v3074, 128
        %3165 = vxpose.xlu0.b32.cont [2/16] %v3076, 128
        %3166 = vxpose.xlu0.b32.cont [3/16] %v3078, 128
        %3167 = vxpose.xlu0.b32.cont [4/16] %v3080, 128
        %3168 = vxpose.xlu0.b32.cont [5/16] %v3082, 128
        %3169 = vxpose.xlu0.b32.cont [6/16] %v3084, 128
        %3170 = vxpose.xlu0.b32.cont [7/16] %v3086, 128
        %3171 = vxpose.xlu0.b32.cont [8/16] %v3088, 128
        %3172 = vxpose.xlu0.b32.cont [9/16] 0.0, 128
        %3173 = vxpose.xlu0.b32.cont [10/16] 0.0, 128
        %3174 = vxpose.xlu0.b32.cont [11/16] 0.0, 128
        %3175 = vxpose.xlu0.b32.cont [12/16] 0.0, 128
        %3176 = vxpose.xlu0.b32.cont [13/16] 0.0, 128
        %3177 = vxpose.xlu0.b32.cont [14/16] 0.0, 128
        %3178 = vxpose.xlu0.b32.cont [15/16] 0.0, 128
        %3179 = vxpose.xlu0.b32.end [16/16] 0.0, 128
        %v3180 = vpop.trf.xlu0
        %v3181 = vpop.trf.xlu0
        %v3182 = vpop.trf.xlu0
        %v3183 = vpop.trf.xlu0
        %v3184 = vpop.trf.xlu0
        %v3185 = vpop.trf.xlu0
        %v3186 = vpop.trf.xlu0
        %v3187 = vpop.trf.xlu0
        %v3188 = vpop.trf.xlu0
        %v3189 = vpop.trf.xlu0
        %v3190 = vpop.trf.xlu0
        %v3191 = vpop.trf.xlu0
        %v3192 = vpop.trf.xlu0
        %v3193 = vpop.trf.xlu0
        %v3194 = vpop.trf.xlu0
        %v3195 = vpop.trf.xlu0
        %v3196 = vlaneseq
        %v3197 = vshrl.u32 %v3196, 7
        %v3198 = vsub.s32 0, %v3197
        %v3199 = vrot.slane %v3180, %v3198
        %v3200 = vmul.f32 %v3156, %v3199
        %v3201 = vmul.f32 %v3161, %v3199
        %v3202 = vadd.f32 %v3200, %v2803
        %v3203 = vadd.f32 %v3201, %v2805
        %3206 = vrot.lane.b32.xlu0 %v3202, 64
        %v3207 = vpop.permute.xlu0 %3206
        %3208 = vrot.lane.b32.xlu0 %v3203, 64
        %v3209 = vpop.permute.xlu0 %3208
        %vm3212 = vcmask 1048064
        %3213 = vst.msk [vmem:[#allocation4 + $0x8] sm:$0xff] %vm3212, %v3207
        %3214 = vst.msk [vmem:[#allocation4 + $0x28] sm:$0xff] %vm3212, %v3209
        %v3215 = vld [vmem:[#allocation4 + $0x10] sm:$0xff]
        %v3216 = vld [vmem:[#allocation4 + $0x30] sm:$0xff]
        %3217 = vxpose.xlu0.b32.start [1/16] %v3215, 128
        %3218 = vxpose.xlu0.b32.cont [2/16] %v3216, 128
        %3219 = vxpose.xlu0.b32.cont [3/16] 0.0, 128
        %3220 = vxpose.xlu0.b32.cont [4/16] 0.0, 128
        %3221 = vxpose.xlu0.b32.cont [5/16] 0.0, 128
        %3222 = vxpose.xlu0.b32.cont [6/16] 0.0, 128
        %3223 = vxpose.xlu0.b32.cont [7/16] 0.0, 128
        %3224 = vxpose.xlu0.b32.cont [8/16] 0.0, 128
        %3225 = vxpose.xlu0.b32.cont [9/16] 0.0, 128
        %3226 = vxpose.xlu0.b32.cont [10/16] 0.0, 128
        %3227 = vxpose.xlu0.b32.cont [11/16] 0.0, 128
        %3228 = vxpose.xlu0.b32.cont [12/16] 0.0, 128
        %3229 = vxpose.xlu0.b32.cont [13/16] 0.0, 128
        %3230 = vxpose.xlu0.b32.cont [14/16] 0.0, 128
        %3231 = vxpose.xlu0.b32.cont [15/16] 0.0, 128
        %3232 = vxpose.xlu0.b32.end [16/16] 0.0, 128
        %v3233 = vpop.trf.xlu0
        %v3234 = vpop.trf.xlu0
        %v3235 = vpop.trf.xlu0
        %v3236 = vpop.trf.xlu0
        %v3237 = vpop.trf.xlu0
        %v3238 = vpop.trf.xlu0
        %v3239 = vpop.trf.xlu0
        %v3240 = vpop.trf.xlu0
        %v3241 = vpop.trf.xlu0
        %v3242 = vpop.trf.xlu0
        %v3243 = vpop.trf.xlu0
        %v3244 = vpop.trf.xlu0
        %v3245 = vpop.trf.xlu0
        %v3246 = vpop.trf.xlu0
        %v3247 = vpop.trf.xlu0
        %v3248 = vpop.trf.xlu0
        %v3250 = vsel %vm1057, %v3233, 0
        %v3253 = vsel %vm1057, %v3234, 0
        %v3256 = vsel %vm1057, %v3235, 0
        %v3259 = vsel %vm1057, %v3236, 0
        %v3262 = vsel %vm1057, %v3237, 0
        %v3265 = vsel %vm1057, %v3238, 0
        %v3268 = vsel %vm1057, %v3239, 0
        %v3271 = vsel %vm1057, %v3240, 0
        %3273 = vmatprep.subr.mxu0 %v2255
        %3274 = vmatpush1.msra.mxu0 %v2253
        %3275 = vmatprep.subr.mxu0 %v2261
        %3276 = vmatpush1.msra.mxu0 %v2259
        %3277 = vmatprep.subr.mxu0 0.0
        %3278 = vmatpush1.msra.mxu0 0.0
        %3279 = vmatprep.subr.mxu0 0.0
        %3280 = vmatpush1.msra.mxu0 0.0
        %3281 = vmatprep.subr.mxu0 0.0
        %3282 = vmatpush1.msra.mxu0 0.0
        %3283 = vmatprep.subr.mxu0 0.0
        %3284 = vmatpush1.msra.mxu0 0.0
        %3285 = vmatprep.subr.mxu0 0.0
        %3286 = vmatpush1.msra.mxu0 0.0
        %3287 = vmatprep.subr.mxu0 0.0
        %3288 = vmatpush1.msra.mxu0 0.0
        %3289 = vmatprep.subr.mxu0 0.0
        %3290 = vmatpush1.msra.mxu0 0.0
        %3291 = vmatprep.subr.mxu0 0.0
        %3292 = vmatpush1.msra.mxu0 0.0
        %3293 = vmatprep.subr.mxu0 0.0
        %3294 = vmatpush1.msra.mxu0 0.0
        %3295 = vmatprep.subr.mxu0 0.0
        %3296 = vmatpush1.msra.mxu0 0.0
        %3297 = vmatprep.subr.mxu0 0.0
        %3298 = vmatpush1.msra.mxu0 0.0
        %3299 = vmatprep.subr.mxu0 0.0
        %3300 = vmatpush1.msra.mxu0 0.0
        %3301 = vmatprep.subr.mxu0 0.0
        %3302 = vmatpush1.msra.mxu0 0.0
        %3303 = vmatprep.subr.mxu0 0.0
        %3304 = vmatpush1.msra.mxu0 0.0
        %3305 = vmatprep.subr.mxu0 0.0
        %3306 = vmatpush1.msra.mxu0 0.0
        %3307 = vmatprep.subr.mxu0 0.0
        %3308 = vmatpush1.msra.mxu0 0.0
        %3309 = vmatprep.subr.mxu0 0.0
        %3310 = vmatpush1.msra.mxu0 0.0
        %3311 = vmatprep.subr.mxu0 0.0
        %3312 = vmatpush1.msra.mxu0 0.0
        %3313 = vmatprep.subr.mxu0 0.0
        %3314 = vmatpush1.msra.mxu0 0.0
        %3315 = vmatprep.subr.mxu0 0.0
        %3316 = vmatpush1.msra.mxu0 0.0
        %3317 = vmatprep.subr.mxu0 0.0
        %3318 = vmatpush1.msra.mxu0 0.0
        %3319 = vmatprep.subr.mxu0 0.0
        %3320 = vmatpush1.msra.mxu0 0.0
        %3321 = vmatprep.subr.mxu0 0.0
        %3322 = vmatpush1.msra.mxu0 0.0
        %3323 = vmatprep.subr.mxu0 0.0
        %3324 = vmatpush1.msra.mxu0 0.0
        %3325 = vmatprep.subr.mxu0 0.0
        %3326 = vmatpush1.msra.mxu0 0.0
        %3327 = vmatprep.subr.mxu0 0.0
        %3328 = vmatpush1.msra.mxu0 0.0
        %3329 = vmatprep.subr.mxu0 0.0
        %3330 = vmatpush1.msra.mxu0 0.0
        %3331 = vmatprep.subr.mxu0 0.0
        %3332 = vmatpush1.msra.mxu0 0.0
        %3333 = vmatprep.subr.mxu0 0.0
        %3334 = vmatpush1.msra.mxu0 0.0
        %3335 = vmatprep.subr.mxu0 0.0
        %3336 = vmatpush1.msra.mxu0 0.0
        %3337 = vmatprep.mubr.f32.mxu0 0.0
        %3338 = vmatmul.mubr.f32.gmra.mrb[0].mxu0 %v3250
        %v3339 = vpop.f32.mrb[0].mxu0
        %v3340 = vadd.f32 %v2285, %v3339
        %v3341 = vpop.f32.mrb[0].mxu0
        %v3342 = vadd.f32 %v2292, %v3341
        %3343 = vmatprep.mubr.f32.mxu0 0.0
        %3344 = vmatmul.mubr.f32.gmra.mrb[0].mxu0 %v3253
        %v3345 = vpop.f32.mrb[0].mxu0
        %v3346 = vadd.f32 %v2285, %v3345
        %v3347 = vpop.f32.mrb[0].mxu0
        %v3348 = vadd.f32 %v2292, %v3347
        %3349 = vmatprep.mubr.f32.mxu0 0.0
        %3350 = vmatmul.mubr.f32.gmra.mrb[0].mxu0 %v3256
        %v3351 = vpop.f32.mrb[0].mxu0
        %v3352 = vadd.f32 %v2285, %v3351
        %v3353 = vpop.f32.mrb[0].mxu0
        %v3354 = vadd.f32 %v2292, %v3353
        %3355 = vmatprep.mubr.f32.mxu0 0.0
        %3356 = vmatmul.mubr.f32.gmra.mrb[0].mxu0 %v3259
        %v3357 = vpop.f32.mrb[0].mxu0
        %v3358 = vadd.f32 %v2285, %v3357
        %v3359 = vpop.f32.mrb[0].mxu0
        %v3360 = vadd.f32 %v2292, %v3359
        %3361 = vmatprep.mubr.f32.mxu0 0.0
        %3362 = vmatmul.mubr.f32.gmra.mrb[0].mxu0 %v3262
        %v3363 = vpop.f32.mrb[0].mxu0
        %v3364 = vadd.f32 %v2285, %v3363
        %v3365 = vpop.f32.mrb[0].mxu0
        %v3366 = vadd.f32 %v2292, %v3365
        %3367 = vmatprep.mubr.f32.mxu0 0.0
        %3368 = vmatmul.mubr.f32.gmra.mrb[0].mxu0 %v3265
        %v3369 = vpop.f32.mrb[0].mxu0
        %v3370 = vadd.f32 %v2285, %v3369
        %v3371 = vpop.f32.mrb[0].mxu0
        %v3372 = vadd.f32 %v2292, %v3371
        %3373 = vmatprep.mubr.f32.mxu0 0.0
        %3374 = vmatmul.mubr.f32.gmra.mrb[0].mxu0 %v3268
        %v3375 = vpop.f32.mrb[0].mxu0
        %v3376 = vadd.f32 %v2285, %v3375
        %v3377 = vpop.f32.mrb[0].mxu0
        %v3378 = vadd.f32 %v2292, %v3377
        %3379 = vmatprep.mubr.f32.mxu0 0.0
        %3380 = vmatmul.mubr.f32.gmra.mrb[0].mxu0 %v3271
        %v3381 = vpop.f32.mrb[0].mxu0
        %v3382 = vadd.f32 %v2285, %v3381
        %v3383 = vpop.f32.mrb[0].mxu0
        %v3384 = vadd.f32 %v2292, %v3383
        %3385 = vdwg.mxu0
        %v3386 = vmax.f32 %v3340, %v3342
        %3387 = vmax.xlane.f32.xlu0 %v3386
        %v3388 = vpop.xlane.xlu0 %3387
        %v3389 = vmax.f32 %v3346, %v3348
        %3390 = vmax.xlane.f32.xlu0 %v3389
        %v3391 = vpop.xlane.xlu0 %3390
        %v3392 = vmax.f32 %v3352, %v3354
        %3393 = vmax.xlane.f32.xlu0 %v3392
        %v3394 = vpop.xlane.xlu0 %3393
        %v3395 = vmax.f32 %v3358, %v3360
        %3396 = vmax.xlane.f32.xlu0 %v3395
        %v3397 = vpop.xlane.xlu0 %3396
        %v3398 = vmax.f32 %v3364, %v3366
        %3399 = vmax.xlane.f32.xlu0 %v3398
        %v3400 = vpop.xlane.xlu0 %3399
        %v3401 = vmax.f32 %v3370, %v3372
        %3402 = vmax.xlane.f32.xlu0 %v3401
        %v3403 = vpop.xlane.xlu0 %3402
        %v3404 = vmax.f32 %v3376, %v3378
        %3405 = vmax.xlane.f32.xlu0 %v3404
        %v3406 = vpop.xlane.xlu0 %3405
        %v3407 = vmax.f32 %v3382, %v3384
        %3408 = vmax.xlane.f32.xlu0 %v3407
        %v3409 = vpop.xlane.xlu0 %3408
        %v3410 = vsub.f32 %v3340, %v3388
        %v3411 = vsub.f32 %v3342, %v3388
        %v3412 = vsub.f32 %v3346, %v3391
        %v3413 = vsub.f32 %v3348, %v3391
        %v3414 = vsub.f32 %v3352, %v3394
        %v3415 = vsub.f32 %v3354, %v3394
        %v3416 = vsub.f32 %v3358, %v3397
        %v3417 = vsub.f32 %v3360, %v3397
        %v3418 = vsub.f32 %v3364, %v3400
        %v3419 = vsub.f32 %v3366, %v3400
        %v3420 = vsub.f32 %v3370, %v3403
        %v3421 = vsub.f32 %v3372, %v3403
        %v3422 = vsub.f32 %v3376, %v3406
        %v3423 = vsub.f32 %v3378, %v3406
        %v3424 = vsub.f32 %v3382, %v3409
        %v3425 = vsub.f32 %v3384, %v3409
        %v3426 = vmul.f32 %v3410, 1.442695
        %v3427 = vpow.pop %v3426
        %v3428 = vmul.f32 %v3411, 1.442695
        %v3429 = vpow.pop %v3428
        %v3430 = vmul.f32 %v3412, 1.442695
        %v3431 = vpow.pop %v3430
        %v3432 = vmul.f32 %v3413, 1.442695
        %v3433 = vpow.pop %v3432
        %v3434 = vmul.f32 %v3414, 1.442695
        %v3435 = vpow.pop %v3434
        %v3436 = vmul.f32 %v3415, 1.442695
        %v3437 = vpow.pop %v3436
        %v3438 = vmul.f32 %v3416, 1.442695
        %v3439 = vpow.pop %v3438
        %v3440 = vmul.f32 %v3417, 1.442695
        %v3441 = vpow.pop %v3440
        %v3442 = vmul.f32 %v3418, 1.442695
        %v3443 = vpow.pop %v3442
        %v3444 = vmul.f32 %v3419, 1.442695
        %v3445 = vpow.pop %v3444
        %v3446 = vmul.f32 %v3420, 1.442695
        %v3447 = vpow.pop %v3446
        %v3448 = vmul.f32 %v3421, 1.442695
        %v3449 = vpow.pop %v3448
        %v3450 = vmul.f32 %v3422, 1.442695
        %v3451 = vpow.pop %v3450
        %v3452 = vmul.f32 %v3423, 1.442695
        %v3453 = vpow.pop %v3452
        %v3454 = vmul.f32 %v3424, 1.442695
        %v3455 = vpow.pop %v3454
        %v3456 = vmul.f32 %v3425, 1.442695
        %v3457 = vpow.pop %v3456
        %v3458 = vadd.f32 %v3427, %v3429
        %3459 = vadd.xlane.f32.xlu0 %v3458
        %v3460 = vpop.xlane.xlu0 %3459
        %v3461 = vadd.f32 %v3431, %v3433
        %3462 = vadd.xlane.f32.xlu0 %v3461
        %v3463 = vpop.xlane.xlu0 %3462
        %v3464 = vadd.f32 %v3435, %v3437
        %3465 = vadd.xlane.f32.xlu0 %v3464
        %v3466 = vpop.xlane.xlu0 %3465
        %v3467 = vadd.f32 %v3439, %v3441
        %3468 = vadd.xlane.f32.xlu0 %v3467
        %v3469 = vpop.xlane.xlu0 %3468
        %v3470 = vadd.f32 %v3443, %v3445
        %3471 = vadd.xlane.f32.xlu0 %v3470
        %v3472 = vpop.xlane.xlu0 %3471
        %v3473 = vadd.f32 %v3447, %v3449
        %3474 = vadd.xlane.f32.xlu0 %v3473
        %v3475 = vpop.xlane.xlu0 %3474
        %v3476 = vadd.f32 %v3451, %v3453
        %3477 = vadd.xlane.f32.xlu0 %v3476
        %v3478 = vpop.xlane.xlu0 %3477
        %v3479 = vadd.f32 %v3455, %v3457
        %3480 = vadd.xlane.f32.xlu0 %v3479
        %v3481 = vpop.xlane.xlu0 %3480
        %v3482 = vrcp.pop %v3460
        %v3483 = vmul.f32 1.0, %v3482
        %v3484 = vrcp.pop %v3463
        %v3485 = vmul.f32 1.0, %v3484
        %v3486 = vrcp.pop %v3466
        %v3487 = vmul.f32 1.0, %v3486
        %v3488 = vrcp.pop %v3469
        %v3489 = vmul.f32 1.0, %v3488
        %v3490 = vrcp.pop %v3472
        %v3491 = vmul.f32 1.0, %v3490
        %v3492 = vrcp.pop %v3475
        %v3493 = vmul.f32 1.0, %v3492
        %v3494 = vrcp.pop %v3478
        %v3495 = vmul.f32 1.0, %v3494
        %v3496 = vrcp.pop %v3481
        %v3497 = vmul.f32 1.0, %v3496
        %3498 = vmatprep.subr.mxu0 %v3429
        %3499 = vmatpush1.xpose.msra.mxu0 %v3427
        %3500 = vmatprep.subr.mxu0 %v3433
        %3501 = vmatpush1.xpose.msra.mxu0 %v3431
        %3502 = vmatprep.subr.mxu0 %v3437
        %3503 = vmatpush1.xpose.msra.mxu0 %v3435
        %3504 = vmatprep.subr.mxu0 %v3441
        %3505 = vmatpush1.xpose.msra.mxu0 %v3439
        %3506 = vmatprep.subr.mxu0 %v3445
        %3507 = vmatpush1.xpose.msra.mxu0 %v3443
        %3508 = vmatprep.subr.mxu0 %v3449
        %3509 = vmatpush1.xpose.msra.mxu0 %v3447
        %3510 = vmatprep.subr.mxu0 %v3453
        %3511 = vmatpush1.xpose.msra.mxu0 %v3451
        %3512 = vmatprep.subr.mxu0 %v3457
        %3513 = vmatpush1.xpose.msra.mxu0 %v3455
        %3514 = vmatprep.subr.mxu0 0.0
        %3515 = vmatpush1.xpose.msra.mxu0 0.0
        %3516 = vmatprep.subr.mxu0 0.0
        %3517 = vmatpush1.xpose.msra.mxu0 0.0
        %3518 = vmatprep.subr.mxu0 0.0
        %3519 = vmatpush1.xpose.msra.mxu0 0.0
        %3520 = vmatprep.subr.mxu0 0.0
        %3521 = vmatpush1.xpose.msra.mxu0 0.0
        %3522 = vmatprep.subr.mxu0 0.0
        %3523 = vmatpush1.xpose.msra.mxu0 0.0
        %3524 = vmatprep.subr.mxu0 0.0
        %3525 = vmatpush1.xpose.msra.mxu0 0.0
        %3526 = vmatprep.subr.mxu0 0.0
        %3527 = vmatpush1.xpose.msra.mxu0 0.0
        %3528 = vmatprep.subr.mxu0 0.0
        %3529 = vmatpush1.xpose.msra.mxu0 0.0
        %3530 = vmatprep.subr.mxu0 0.0
        %3531 = vmatpush1.xpose.msra.mxu0 0.0
        %3532 = vmatprep.subr.mxu0 0.0
        %3533 = vmatpush1.xpose.msra.mxu0 0.0
        %3534 = vmatprep.subr.mxu0 0.0
        %3535 = vmatpush1.xpose.msra.mxu0 0.0
        %3536 = vmatprep.subr.mxu0 0.0
        %3537 = vmatpush1.xpose.msra.mxu0 0.0
        %3538 = vmatprep.subr.mxu0 0.0
        %3539 = vmatpush1.xpose.msra.mxu0 0.0
        %3540 = vmatprep.subr.mxu0 0.0
        %3541 = vmatpush1.xpose.msra.mxu0 0.0
        %3542 = vmatprep.subr.mxu0 0.0
        %3543 = vmatpush1.xpose.msra.mxu0 0.0
        %3544 = vmatprep.subr.mxu0 0.0
        %3545 = vmatpush1.xpose.msra.mxu0 0.0
        %3546 = vmatprep.subr.mxu0 0.0
        %3547 = vmatpush1.xpose.msra.mxu0 0.0
        %3548 = vmatprep.subr.mxu0 0.0
        %3549 = vmatpush1.xpose.msra.mxu0 0.0
        %3550 = vmatprep.subr.mxu0 0.0
        %3551 = vmatpush1.xpose.msra.mxu0 0.0
        %3552 = vmatprep.subr.mxu0 0.0
        %3553 = vmatpush1.xpose.msra.mxu0 0.0
        %3554 = vmatprep.subr.mxu0 0.0
        %3555 = vmatpush1.xpose.msra.mxu0 0.0
        %3556 = vmatprep.subr.mxu0 0.0
        %3557 = vmatpush1.xpose.msra.mxu0 0.0
        %3558 = vmatprep.subr.mxu0 0.0
        %3559 = vmatpush1.xpose.msra.mxu0 0.0
        %3560 = vmatprep.subr.mxu0 0.0
        %3561 = vmatpush1.xpose.msra.mxu0 0.0
        %3562 = vmatprep.mubr.f32.mxu0 %v2382
        %3563 = vmatmul.mubr.f32.gmra.mrb[0].mxu0 %v2380
        %v3564 = vpop.f32.mrb[0].mxu0
        %v3565 = vadd.f32 0.0, %v3564
        %v3566 = vpop.f32.mrb[0].mxu0
        %3567 = vmatprep.mubr.f32.mxu0 %v2388
        %3568 = vmatmul.mubr.f32.gmra.mrb[0].mxu0 %v2386
        %v3569 = vpop.f32.mrb[0].mxu0
        %v3570 = vadd.f32 0.0, %v3569
        %v3571 = vpop.f32.mrb[0].mxu0
        %3572 = vdwg.mxu0
        %3573 = vxpose.xlu0.b32.start [1/16] %v3483, 128
        %3574 = vxpose.xlu0.b32.cont [2/16] %v3485, 128
        %3575 = vxpose.xlu0.b32.cont [3/16] %v3487, 128
        %3576 = vxpose.xlu0.b32.cont [4/16] %v3489, 128
        %3577 = vxpose.xlu0.b32.cont [5/16] %v3491, 128
        %3578 = vxpose.xlu0.b32.cont [6/16] %v3493, 128
        %3579 = vxpose.xlu0.b32.cont [7/16] %v3495, 128
        %3580 = vxpose.xlu0.b32.cont [8/16] %v3497, 128
        %3581 = vxpose.xlu0.b32.cont [9/16] 0.0, 128
        %3582 = vxpose.xlu0.b32.cont [10/16] 0.0, 128
        %3583 = vxpose.xlu0.b32.cont [11/16] 0.0, 128
        %3584 = vxpose.xlu0.b32.cont [12/16] 0.0, 128
        %3585 = vxpose.xlu0.b32.cont [13/16] 0.0, 128
        %3586 = vxpose.xlu0.b32.cont [14/16] 0.0, 128
        %3587 = vxpose.xlu0.b32.cont [15/16] 0.0, 128
        %3588 = vxpose.xlu0.b32.end [16/16] 0.0, 128
        %v3589 = vpop.trf.xlu0
        %v3590 = vpop.trf.xlu0
        %v3591 = vpop.trf.xlu0
        %v3592 = vpop.trf.xlu0
        %v3593 = vpop.trf.xlu0
        %v3594 = vpop.trf.xlu0
        %v3595 = vpop.trf.xlu0
        %v3596 = vpop.trf.xlu0
        %v3597 = vpop.trf.xlu0
        %v3598 = vpop.trf.xlu0
        %v3599 = vpop.trf.xlu0
        %v3600 = vpop.trf.xlu0
        %v3601 = vpop.trf.xlu0
        %v3602 = vpop.trf.xlu0
        %v3603 = vpop.trf.xlu0
        %v3604 = vpop.trf.xlu0
        %v3605 = vlaneseq
        %v3606 = vshrl.u32 %v3605, 7
        %v3607 = vsub.s32 0, %v3606
        %v3608 = vrot.slane %v3589, %v3607
        %v3609 = vmul.f32 %v3565, %v3608
        %v3610 = vmul.f32 %v3570, %v3608
        %v3611 = vadd.f32 %v3609, %v3215
        %v3612 = vadd.f32 %v3610, %v3216
        %3613 = vst.msk [vmem:[#allocation4 + $0x10] sm:$0xff] %vm1936, %v3611
        %3614 = vst.msk [vmem:[#allocation4 + $0x30] sm:$0xff] %vm1936, %v3612
        %v3615 = vld [vmem:[#allocation4 + $0x10] sm:$0xff]
        %v3616 = vld [vmem:[#allocation4 + $0x30] sm:$0xff]
        %3619 = vrot.lane.b32.xlu0 %v3615, 64
        %v3620 = vpop.permute.xlu0 %3619
        %3621 = vrot.lane.b32.xlu0 %v3616, 64
        %v3622 = vpop.permute.xlu0 %3621
        %3625 = vxpose.xlu0.b32.start [1/16] %v3620, 128
        %3626 = vxpose.xlu0.b32.cont [2/16] %v3622, 128
        %3627 = vxpose.xlu0.b32.cont [3/16] 0.0, 128
        %3628 = vxpose.xlu0.b32.cont [4/16] 0.0, 128
        %3629 = vxpose.xlu0.b32.cont [5/16] 0.0, 128
        %3630 = vxpose.xlu0.b32.cont [6/16] 0.0, 128
        %3631 = vxpose.xlu0.b32.cont [7/16] 0.0, 128
        %3632 = vxpose.xlu0.b32.cont [8/16] 0.0, 128
        %3633 = vxpose.xlu0.b32.cont [9/16] 0.0, 128
        %3634 = vxpose.xlu0.b32.cont [10/16] 0.0, 128
        %3635 = vxpose.xlu0.b32.cont [11/16] 0.0, 128
        %3636 = vxpose.xlu0.b32.cont [12/16] 0.0, 128
        %3637 = vxpose.xlu0.b32.cont [13/16] 0.0, 128
        %3638 = vxpose.xlu0.b32.cont [14/16] 0.0, 128
        %3639 = vxpose.xlu0.b32.cont [15/16] 0.0, 128
        %3640 = vxpose.xlu0.b32.end [16/16] 0.0, 128
        %v3641 = vpop.trf.xlu0
        %v3642 = vpop.trf.xlu0
        %v3643 = vpop.trf.xlu0
        %v3644 = vpop.trf.xlu0
        %v3645 = vpop.trf.xlu0
        %v3646 = vpop.trf.xlu0
        %v3647 = vpop.trf.xlu0
        %v3648 = vpop.trf.xlu0
        %v3649 = vpop.trf.xlu0
        %v3650 = vpop.trf.xlu0
        %v3651 = vpop.trf.xlu0
        %v3652 = vpop.trf.xlu0
        %v3653 = vpop.trf.xlu0
        %v3654 = vpop.trf.xlu0
        %v3655 = vpop.trf.xlu0
        %v3656 = vpop.trf.xlu0
        %v3658 = vsel %vm1057, %v3641, 0
        %v3661 = vsel %vm1057, %v3642, 0
        %v3664 = vsel %vm1057, %v3643, 0
        %v3667 = vsel %vm1057, %v3644, 0
        %v3670 = vsel %vm1057, %v3645, 0
        %v3673 = vsel %vm1057, %v3646, 0
        %v3676 = vsel %vm1057, %v3647, 0
        %v3679 = vsel %vm1057, %v3648, 0
        %3681 = vmatprep.subr.mxu0 %v2255
        %3682 = vmatpush1.msra.mxu0 %v2253
        %3683 = vmatprep.subr.mxu0 %v2261
        %3684 = vmatpush1.msra.mxu0 %v2259
        %3685 = vmatprep.subr.mxu0 0.0
        %3686 = vmatpush1.msra.mxu0 0.0
        %3687 = vmatprep.subr.mxu0 0.0
        %3688 = vmatpush1.msra.mxu0 0.0
        %3689 = vmatprep.subr.mxu0 0.0
        %3690 = vmatpush1.msra.mxu0 0.0
        %3691 = vmatprep.subr.mxu0 0.0
        %3692 = vmatpush1.msra.mxu0 0.0
        %3693 = vmatprep.subr.mxu0 0.0
        %3694 = vmatpush1.msra.mxu0 0.0
        %3695 = vmatprep.subr.mxu0 0.0
        %3696 = vmatpush1.msra.mxu0 0.0
        %3697 = vmatprep.subr.mxu0 0.0
        %3698 = vmatpush1.msra.mxu0 0.0
        %3699 = vmatprep.subr.mxu0 0.0
        %3700 = vmatpush1.msra.mxu0 0.0
        %3701 = vmatprep.subr.mxu0 0.0
        %3702 = vmatpush1.msra.mxu0 0.0
        %3703 = vmatprep.subr.mxu0 0.0
        %3704 = vmatpush1.msra.mxu0 0.0
        %3705 = vmatprep.subr.mxu0 0.0
        %3706 = vmatpush1.msra.mxu0 0.0
        %3707 = vmatprep.subr.mxu0 0.0
        %3708 = vmatpush1.msra.mxu0 0.0
        %3709 = vmatprep.subr.mxu0 0.0
        %3710 = vmatpush1.msra.mxu0 0.0
        %3711 = vmatprep.subr.mxu0 0.0
        %3712 = vmatpush1.msra.mxu0 0.0
        %3713 = vmatprep.subr.mxu0 0.0
        %3714 = vmatpush1.msra.mxu0 0.0
        %3715 = vmatprep.subr.mxu0 0.0
        %3716 = vmatpush1.msra.mxu0 0.0
        %3717 = vmatprep.subr.mxu0 0.0
        %3718 = vmatpush1.msra.mxu0 0.0
        %3719 = vmatprep.subr.mxu0 0.0
        %3720 = vmatpush1.msra.mxu0 0.0
        %3721 = vmatprep.subr.mxu0 0.0
        %3722 = vmatpush1.msra.mxu0 0.0
        %3723 = vmatprep.subr.mxu0 0.0
        %3724 = vmatpush1.msra.mxu0 0.0
        %3725 = vmatprep.subr.mxu0 0.0
        %3726 = vmatpush1.msra.mxu0 0.0
        %3727 = vmatprep.subr.mxu0 0.0
        %3728 = vmatpush1.msra.mxu0 0.0
        %3729 = vmatprep.subr.mxu0 0.0
        %3730 = vmatpush1.msra.mxu0 0.0
        %3731 = vmatprep.subr.mxu0 0.0
        %3732 = vmatpush1.msra.mxu0 0.0
        %3733 = vmatprep.subr.mxu0 0.0
        %3734 = vmatpush1.msra.mxu0 0.0
        %3735 = vmatprep.subr.mxu0 0.0
        %3736 = vmatpush1.msra.mxu0 0.0
        %3737 = vmatprep.subr.mxu0 0.0
        %3738 = vmatpush1.msra.mxu0 0.0
        %3739 = vmatprep.subr.mxu0 0.0
        %3740 = vmatpush1.msra.mxu0 0.0
        %3741 = vmatprep.subr.mxu0 0.0
        %3742 = vmatpush1.msra.mxu0 0.0
        %3743 = vmatprep.subr.mxu0 0.0
        %3744 = vmatpush1.msra.mxu0 0.0
        %3745 = vmatprep.mubr.f32.mxu0 0.0
        %3746 = vmatmul.mubr.f32.gmra.mrb[0].mxu0 %v3658
        %v3747 = vpop.f32.mrb[0].mxu0
        %v3748 = vadd.f32 %v2285, %v3747
        %v3749 = vpop.f32.mrb[0].mxu0
        %v3750 = vadd.f32 %v2292, %v3749
        %3751 = vmatprep.mubr.f32.mxu0 0.0
        %3752 = vmatmul.mubr.f32.gmra.mrb[0].mxu0 %v3661
        %v3753 = vpop.f32.mrb[0].mxu0
        %v3754 = vadd.f32 %v2285, %v3753
        %v3755 = vpop.f32.mrb[0].mxu0
        %v3756 = vadd.f32 %v2292, %v3755
        %3757 = vmatprep.mubr.f32.mxu0 0.0
        %3758 = vmatmul.mubr.f32.gmra.mrb[0].mxu0 %v3664
        %v3759 = vpop.f32.mrb[0].mxu0
        %v3760 = vadd.f32 %v2285, %v3759
        %v3761 = vpop.f32.mrb[0].mxu0
        %v3762 = vadd.f32 %v2292, %v3761
        %3763 = vmatprep.mubr.f32.mxu0 0.0
        %3764 = vmatmul.mubr.f32.gmra.mrb[0].mxu0 %v3667
        %v3765 = vpop.f32.mrb[0].mxu0
        %v3766 = vadd.f32 %v2285, %v3765
        %v3767 = vpop.f32.mrb[0].mxu0
        %v3768 = vadd.f32 %v2292, %v3767
        %3769 = vmatprep.mubr.f32.mxu0 0.0
        %3770 = vmatmul.mubr.f32.gmra.mrb[0].mxu0 %v3670
        %v3771 = vpop.f32.mrb[0].mxu0
        %v3772 = vadd.f32 %v2285, %v3771
        %v3773 = vpop.f32.mrb[0].mxu0
        %v3774 = vadd.f32 %v2292, %v3773
        %3775 = vmatprep.mubr.f32.mxu0 0.0
        %3776 = vmatmul.mubr.f32.gmra.mrb[0].mxu0 %v3673
        %v3777 = vpop.f32.mrb[0].mxu0
        %v3778 = vadd.f32 %v2285, %v3777
        %v3779 = vpop.f32.mrb[0].mxu0
        %v3780 = vadd.f32 %v2292, %v3779
        %3781 = vmatprep.mubr.f32.mxu0 0.0
        %3782 = vmatmul.mubr.f32.gmra.mrb[0].mxu0 %v3676
        %v3783 = vpop.f32.mrb[0].mxu0
        %v3784 = vadd.f32 %v2285, %v3783
        %v3785 = vpop.f32.mrb[0].mxu0
        %v3786 = vadd.f32 %v2292, %v3785
        %3787 = vmatprep.mubr.f32.mxu0 0.0
        %3788 = vmatmul.mubr.f32.gmra.mrb[0].mxu0 %v3679
        %v3789 = vpop.f32.mrb[0].mxu0
        %v3790 = vadd.f32 %v2285, %v3789
        %v3791 = vpop.f32.mrb[0].mxu0
        %v3792 = vadd.f32 %v2292, %v3791
        %3793 = vdwg.mxu0
        %v3794 = vmax.f32 %v3748, %v3750
        %3795 = vmax.xlane.f32.xlu0 %v3794
        %v3796 = vpop.xlane.xlu0 %3795
        %v3797 = vmax.f32 %v3754, %v3756
        %3798 = vmax.xlane.f32.xlu0 %v3797
        %v3799 = vpop.xlane.xlu0 %3798
        %v3800 = vmax.f32 %v3760, %v3762
        %3801 = vmax.xlane.f32.xlu0 %v3800
        %v3802 = vpop.xlane.xlu0 %3801
        %v3803 = vmax.f32 %v3766, %v3768
        %3804 = vmax.xlane.f32.xlu0 %v3803
        %v3805 = vpop.xlane.xlu0 %3804
        %v3806 = vmax.f32 %v3772, %v3774
        %3807 = vmax.xlane.f32.xlu0 %v3806
        %v3808 = vpop.xlane.xlu0 %3807
        %v3809 = vmax.f32 %v3778, %v3780
        %3810 = vmax.xlane.f32.xlu0 %v3809
        %v3811 = vpop.xlane.xlu0 %3810
        %v3812 = vmax.f32 %v3784, %v3786
        %3813 = vmax.xlane.f32.xlu0 %v3812
        %v3814 = vpop.xlane.xlu0 %3813
        %v3815 = vmax.f32 %v3790, %v3792
        %3816 = vmax.xlane.f32.xlu0 %v3815
        %v3817 = vpop.xlane.xlu0 %3816
        %v3818 = vsub.f32 %v3748, %v3796
        %v3819 = vsub.f32 %v3750, %v3796
        %v3820 = vsub.f32 %v3754, %v3799
        %v3821 = vsub.f32 %v3756, %v3799
        %v3822 = vsub.f32 %v3760, %v3802
        %v3823 = vsub.f32 %v3762, %v3802
        %v3824 = vsub.f32 %v3766, %v3805
        %v3825 = vsub.f32 %v3768, %v3805
        %v3826 = vsub.f32 %v3772, %v3808
        %v3827 = vsub.f32 %v3774, %v3808
        %v3828 = vsub.f32 %v3778, %v3811
        %v3829 = vsub.f32 %v3780, %v3811
        %v3830 = vsub.f32 %v3784, %v3814
        %v3831 = vsub.f32 %v3786, %v3814
        %v3832 = vsub.f32 %v3790, %v3817
        %v3833 = vsub.f32 %v3792, %v3817
        %v3834 = vmul.f32 %v3818, 1.442695
        %v3835 = vpow.pop %v3834
        %v3836 = vmul.f32 %v3819, 1.442695
        %v3837 = vpow.pop %v3836
        %v3838 = vmul.f32 %v3820, 1.442695
        %v3839 = vpow.pop %v3838
        %v3840 = vmul.f32 %v3821, 1.442695
        %v3841 = vpow.pop %v3840
        %v3842 = vmul.f32 %v3822, 1.442695
        %v3843 = vpow.pop %v3842
        %v3844 = vmul.f32 %v3823, 1.442695
        %v3845 = vpow.pop %v3844
        %v3846 = vmul.f32 %v3824, 1.442695
        %v3847 = vpow.pop %v3846
        %v3848 = vmul.f32 %v3825, 1.442695
        %v3849 = vpow.pop %v3848
        %v3850 = vmul.f32 %v3826, 1.442695
        %v3851 = vpow.pop %v3850
        %v3852 = vmul.f32 %v3827, 1.442695
        %v3853 = vpow.pop %v3852
        %v3854 = vmul.f32 %v3828, 1.442695
        %v3855 = vpow.pop %v3854
        %v3856 = vmul.f32 %v3829, 1.442695
        %v3857 = vpow.pop %v3856
        %v3858 = vmul.f32 %v3830, 1.442695
        %v3859 = vpow.pop %v3858
        %v3860 = vmul.f32 %v3831, 1.442695
        %v3861 = vpow.pop %v3860
        %v3862 = vmul.f32 %v3832, 1.442695
        %v3863 = vpow.pop %v3862
        %v3864 = vmul.f32 %v3833, 1.442695
        %v3865 = vpow.pop %v3864
        %v3866 = vadd.f32 %v3835, %v3837
        %3867 = vadd.xlane.f32.xlu0 %v3866
        %v3868 = vpop.xlane.xlu0 %3867
        %v3869 = vadd.f32 %v3839, %v3841
        %3870 = vadd.xlane.f32.xlu0 %v3869
        %v3871 = vpop.xlane.xlu0 %3870
        %v3872 = vadd.f32 %v3843, %v3845
        %3873 = vadd.xlane.f32.xlu0 %v3872
        %v3874 = vpop.xlane.xlu0 %3873
        %v3875 = vadd.f32 %v3847, %v3849
        %3876 = vadd.xlane.f32.xlu0 %v3875
        %v3877 = vpop.xlane.xlu0 %3876
        %v3878 = vadd.f32 %v3851, %v3853
        %3879 = vadd.xlane.f32.xlu0 %v3878
        %v3880 = vpop.xlane.xlu0 %3879
        %v3881 = vadd.f32 %v3855, %v3857
        %3882 = vadd.xlane.f32.xlu0 %v3881
        %v3883 = vpop.xlane.xlu0 %3882
        %v3884 = vadd.f32 %v3859, %v3861
        %3885 = vadd.xlane.f32.xlu0 %v3884
        %v3886 = vpop.xlane.xlu0 %3885
        %v3887 = vadd.f32 %v3863, %v3865
        %3888 = vadd.xlane.f32.xlu0 %v3887
        %v3889 = vpop.xlane.xlu0 %3888
        %v3890 = vrcp.pop %v3868
        %v3891 = vmul.f32 1.0, %v3890
        %v3892 = vrcp.pop %v3871
        %v3893 = vmul.f32 1.0, %v3892
        %v3894 = vrcp.pop %v3874
        %v3895 = vmul.f32 1.0, %v3894
        %v3896 = vrcp.pop %v3877
        %v3897 = vmul.f32 1.0, %v3896
        %v3898 = vrcp.pop %v3880
        %v3899 = vmul.f32 1.0, %v3898
        %v3900 = vrcp.pop %v3883
        %v3901 = vmul.f32 1.0, %v3900
        %v3902 = vrcp.pop %v3886
        %v3903 = vmul.f32 1.0, %v3902
        %v3904 = vrcp.pop %v3889
        %v3905 = vmul.f32 1.0, %v3904
        %3906 = vmatprep.subr.mxu0 %v3837
        %3907 = vmatpush1.xpose.msra.mxu0 %v3835
        %3908 = vmatprep.subr.mxu0 %v3841
        %3909 = vmatpush1.xpose.msra.mxu0 %v3839
        %3910 = vmatprep.subr.mxu0 %v3845
        %3911 = vmatpush1.xpose.msra.mxu0 %v3843
        %3912 = vmatprep.subr.mxu0 %v3849
        %3913 = vmatpush1.xpose.msra.mxu0 %v3847
        %3914 = vmatprep.subr.mxu0 %v3853
        %3915 = vmatpush1.xpose.msra.mxu0 %v3851
        %3916 = vmatprep.subr.mxu0 %v3857
        %3917 = vmatpush1.xpose.msra.mxu0 %v3855
        %3918 = vmatprep.subr.mxu0 %v3861
        %3919 = vmatpush1.xpose.msra.mxu0 %v3859
        %3920 = vmatprep.subr.mxu0 %v3865
        %3921 = vmatpush1.xpose.msra.mxu0 %v3863
        %3922 = vmatprep.subr.mxu0 0.0
        %3923 = vmatpush1.xpose.msra.mxu0 0.0
        %3924 = vmatprep.subr.mxu0 0.0
        %3925 = vmatpush1.xpose.msra.mxu0 0.0
        %3926 = vmatprep.subr.mxu0 0.0
        %3927 = vmatpush1.xpose.msra.mxu0 0.0
        %3928 = vmatprep.subr.mxu0 0.0
        %3929 = vmatpush1.xpose.msra.mxu0 0.0
        %3930 = vmatprep.subr.mxu0 0.0
        %3931 = vmatpush1.xpose.msra.mxu0 0.0
        %3932 = vmatprep.subr.mxu0 0.0
        %3933 = vmatpush1.xpose.msra.mxu0 0.0
        %3934 = vmatprep.subr.mxu0 0.0
        %3935 = vmatpush1.xpose.msra.mxu0 0.0
        %3936 = vmatprep.subr.mxu0 0.0
        %3937 = vmatpush1.xpose.msra.mxu0 0.0
        %3938 = vmatprep.subr.mxu0 0.0
        %3939 = vmatpush1.xpose.msra.mxu0 0.0
        %3940 = vmatprep.subr.mxu0 0.0
        %3941 = vmatpush1.xpose.msra.mxu0 0.0
        %3942 = vmatprep.subr.mxu0 0.0
        %3943 = vmatpush1.xpose.msra.mxu0 0.0
        %3944 = vmatprep.subr.mxu0 0.0
        %3945 = vmatpush1.xpose.msra.mxu0 0.0
        %3946 = vmatprep.subr.mxu0 0.0
        %3947 = vmatpush1.xpose.msra.mxu0 0.0
        %3948 = vmatprep.subr.mxu0 0.0
        %3949 = vmatpush1.xpose.msra.mxu0 0.0
        %3950 = vmatprep.subr.mxu0 0.0
        %3951 = vmatpush1.xpose.msra.mxu0 0.0
        %3952 = vmatprep.subr.mxu0 0.0
        %3953 = vmatpush1.xpose.msra.mxu0 0.0
        %3954 = vmatprep.subr.mxu0 0.0
        %3955 = vmatpush1.xpose.msra.mxu0 0.0
        %3956 = vmatprep.subr.mxu0 0.0
        %3957 = vmatpush1.xpose.msra.mxu0 0.0
        %3958 = vmatprep.subr.mxu0 0.0
        %3959 = vmatpush1.xpose.msra.mxu0 0.0
        %3960 = vmatprep.subr.mxu0 0.0
        %3961 = vmatpush1.xpose.msra.mxu0 0.0
        %3962 = vmatprep.subr.mxu0 0.0
        %3963 = vmatpush1.xpose.msra.mxu0 0.0
        %3964 = vmatprep.subr.mxu0 0.0
        %3965 = vmatpush1.xpose.msra.mxu0 0.0
        %3966 = vmatprep.subr.mxu0 0.0
        %3967 = vmatpush1.xpose.msra.mxu0 0.0
        %3968 = vmatprep.subr.mxu0 0.0
        %3969 = vmatpush1.xpose.msra.mxu0 0.0
        %3970 = vmatprep.mubr.f32.mxu0 %v2382
        %3971 = vmatmul.mubr.f32.gmra.mrb[0].mxu0 %v2380
        %v3972 = vpop.f32.mrb[0].mxu0
        %v3973 = vadd.f32 0.0, %v3972
        %v3974 = vpop.f32.mrb[0].mxu0
        %3975 = vmatprep.mubr.f32.mxu0 %v2388
        %3976 = vmatmul.mubr.f32.gmra.mrb[0].mxu0 %v2386
        %v3977 = vpop.f32.mrb[0].mxu0
        %v3978 = vadd.f32 0.0, %v3977
        %v3979 = vpop.f32.mrb[0].mxu0
        %3980 = vdwg.mxu0
        %3981 = vxpose.xlu0.b32.start [1/16] %v3891, 128
        %3982 = vxpose.xlu0.b32.cont [2/16] %v3893, 128
        %3983 = vxpose.xlu0.b32.cont [3/16] %v3895, 128
        %3984 = vxpose.xlu0.b32.cont [4/16] %v3897, 128
        %3985 = vxpose.xlu0.b32.cont [5/16] %v3899, 128
        %3986 = vxpose.xlu0.b32.cont [6/16] %v3901, 128
        %3987 = vxpose.xlu0.b32.cont [7/16] %v3903, 128
        %3988 = vxpose.xlu0.b32.cont [8/16] %v3905, 128
        %3989 = vxpose.xlu0.b32.cont [9/16] 0.0, 128
        %3990 = vxpose.xlu0.b32.cont [10/16] 0.0, 128
        %3991 = vxpose.xlu0.b32.cont [11/16] 0.0, 128
        %3992 = vxpose.xlu0.b32.cont [12/16] 0.0, 128
        %3993 = vxpose.xlu0.b32.cont [13/16] 0.0, 128
        %3994 = vxpose.xlu0.b32.cont [14/16] 0.0, 128
        %3995 = vxpose.xlu0.b32.cont [15/16] 0.0, 128
        %3996 = vxpose.xlu0.b32.end [16/16] 0.0, 128
        %v3997 = vpop.trf.xlu0
        %v3998 = vpop.trf.xlu0
        %v3999 = vpop.trf.xlu0
        %v4000 = vpop.trf.xlu0
        %v4001 = vpop.trf.xlu0
        %v4002 = vpop.trf.xlu0
        %v4003 = vpop.trf.xlu0
        %v4004 = vpop.trf.xlu0
        %v4005 = vpop.trf.xlu0
        %v4006 = vpop.trf.xlu0
        %v4007 = vpop.trf.xlu0
        %v4008 = vpop.trf.xlu0
        %v4009 = vpop.trf.xlu0
        %v4010 = vpop.trf.xlu0
        %v4011 = vpop.trf.xlu0
        %v4012 = vpop.trf.xlu0
        %v4013 = vlaneseq
        %v4014 = vshrl.u32 %v4013, 7
        %v4015 = vsub.s32 0, %v4014
        %v4016 = vrot.slane %v3997, %v4015
        %v4017 = vmul.f32 %v3973, %v4016
        %v4018 = vmul.f32 %v3978, %v4016
        %v4019 = vadd.f32 %v4017, %v3620
        %v4020 = vadd.f32 %v4018, %v3622
        %4023 = vrot.lane.b32.xlu0 %v4019, 64
        %v4024 = vpop.permute.xlu0 %4023
        %4025 = vrot.lane.b32.xlu0 %v4020, 64
        %v4026 = vpop.permute.xlu0 %4025
        %4029 = vst.msk [vmem:[#allocation4 + $0x10] sm:$0xff] %vm3212, %v4024
        %4030 = vst.msk [vmem:[#allocation4 + $0x30] sm:$0xff] %vm3212, %v4026
        %v4031 = vld [vmem:[#allocation4] sm:$0xff]
        %v4032 = vld [vmem:[#allocation4 + $0x8] sm:$0xff]
        %v4033 = vld [vmem:[#allocation4 + $0x10] sm:$0xff]
        %v4034 = vld [vmem:[#allocation4 + $0x20] sm:$0xff]
        %v4035 = vld [vmem:[#allocation4 + $0x28] sm:$0xff]
        %v4036 = vld [vmem:[#allocation4 + $0x30] sm:$0xff]
        %4043 = vrot.lane.b32.xlu0 %v4031, 17
        %v4044 = vpop.permute.xlu0 %4043
        %4045 = vrot.lane.b32.xlu0 %v4032, 17
        %v4046 = vpop.permute.xlu0 %4045
        %4047 = vrot.lane.b32.xlu0 %v4033, 17
        %v4048 = vpop.permute.xlu0 %4047
        %4049 = vrot.lane.b32.xlu0 %v4034, 17
        %v4050 = vpop.permute.xlu0 %4049
        %4051 = vrot.lane.b32.xlu0 %v4035, 17
        %v4052 = vpop.permute.xlu0 %4051
        %4053 = vrot.lane.b32.xlu0 %v4036, 17
        %v4054 = vpop.permute.xlu0 %4053
        %v4055 = vsel %vm574, %v4044, %v4046
        %v4056 = vsel %vm574, %v4046, %v4048
        %v4057 = vsel %vm574, %v4050, %v4052
        %v4058 = vsel %vm574, %v4052, %v4054
        %v4063 = vsel %vm500, %v4055, 0.0
        %v4064 = vsel %vm501, %v4056, 0.0
        %v4065 = vsel %vm500, %v4057, 0.0
        %v4066 = vsel %vm501, %v4058, 0.0
        %4067 = vst [vmem:[#allocation5] sm:$0xff] %v4063
        %4068 = vst [vmem:[#allocation5 + $0x8] sm:$0xff] %v4064
        %4069 = vst [vmem:[#allocation5 + $0x10] sm:$0xff] %v4065
        %4070 = vst [vmem:[#allocation5 + $0x18] sm:$0xff] %v4066
        %v4071 = vld [vmem:[#allocation4] sm:$0xff]
        %v4072 = vld [vmem:[#allocation4 + $0x8] sm:$0xff]
        %v4073 = vld [vmem:[#allocation4 + $0x10] sm:$0xff]
        %v4074 = vld [vmem:[#allocation4 + $0x20] sm:$0xff]
        %v4075 = vld [vmem:[#allocation4 + $0x28] sm:$0xff]
        %v4076 = vld [vmem:[#allocation4 + $0x30] sm:$0xff]
        %4083 = vrot.lane.b32.xlu0 %v4071, 1
        %v4084 = vpop.permute.xlu0 %4083
        %4085 = vrot.lane.b32.xlu0 %v4072, 1
        %v4086 = vpop.permute.xlu0 %4085
        %4087 = vrot.lane.b32.xlu0 %v4073, 1
        %v4088 = vpop.permute.xlu0 %4087
        %4089 = vrot.lane.b32.xlu0 %v4074, 1
        %v4090 = vpop.permute.xlu0 %4089
        %4091 = vrot.lane.b32.xlu0 %v4075, 1
        %v4092 = vpop.permute.xlu0 %4091
        %4093 = vrot.lane.b32.xlu0 %v4076, 1
        %v4094 = vpop.permute.xlu0 %4093
        %v4095 = vsel %vm735, %v4084, %v4086
        %v4096 = vsel %vm735, %v4086, %v4088
        %v4097 = vsel %vm735, %v4090, %v4092
        %v4098 = vsel %vm735, %v4092, %v4094
        %v4103 = vsel %vm500, %v4095, 0.0
        %v4104 = vsel %vm501, %v4096, 0.0
        %v4105 = vsel %vm500, %v4097, 0.0
        %v4106 = vsel %vm501, %v4098, 0.0
        %4107 = vst [vmem:[#allocation5 + $0x60] sm:$0xff] %v4103
        %4108 = vst [vmem:[#allocation5 + $0x68] sm:$0xff] %v4104
        %4109 = vst [vmem:[#allocation5 + $0x70] sm:$0xff] %v4105
        %4110 = vst [vmem:[#allocation5 + $0x78] sm:$0xff] %v4106
        %v4111 = vld [vmem:[#allocation4 + $0x8] sm:$0xff]
        %v4112 = vld [vmem:[#allocation4 + $0x10] sm:$0xff]
        %v4113 = vld [vmem:[#allocation4 + $0x18] sm:$0xff]
        %v4114 = vld [vmem:[#allocation4 + $0x28] sm:$0xff]
        %v4115 = vld [vmem:[#allocation4 + $0x30] sm:$0xff]
        %v4116 = vld [vmem:[#allocation4 + $0x38] sm:$0xff]
        %4123 = vrot.lane.b32.xlu0 %v4111, 113
        %v4124 = vpop.permute.xlu0 %4123
        %4125 = vrot.lane.b32.xlu0 %v4112, 113
        %v4126 = vpop.permute.xlu0 %4125
        %4127 = vrot.lane.b32.xlu0 %v4113, 113
        %v4128 = vpop.permute.xlu0 %4127
        %4129 = vrot.lane.b32.xlu0 %v4114, 113
        %v4130 = vpop.permute.xlu0 %4129
        %4131 = vrot.lane.b32.xlu0 %v4115, 113
        %v4132 = vpop.permute.xlu0 %4131
        %4133 = vrot.lane.b32.xlu0 %v4116, 113
        %v4134 = vpop.permute.xlu0 %4133
        %v4135 = vsel %vm896, %v4124, %v4126
        %v4136 = vsel %vm896, %v4126, %v4128
        %v4137 = vsel %vm896, %v4130, %v4132
        %v4138 = vsel %vm896, %v4132, %v4134
        %v4143 = vsel %vm500, %v4135, 0.0
        %v4144 = vsel %vm501, %v4136, 0.0
        %v4145 = vsel %vm500, %v4137, 0.0
        %v4146 = vsel %vm501, %v4138, 0.0
        %4147 = vst [vmem:[#allocation5 + $0xc0] sm:$0xff] %v4143
        %4148 = vst [vmem:[#allocation5 + $0xc8] sm:$0xff] %v4144
        %4149 = vst [vmem:[#allocation5 + $0xd0] sm:$0xff] %v4145
        %4150 = vst [vmem:[#allocation5 + $0xd8] sm:$0xff] %v4146
        %v4151 = vld [vmem:[#allocation4] sm:$0xff]
        %v4152 = vld [vmem:[#allocation4 + $0x8] sm:$0xff]
        %v4153 = vld [vmem:[#allocation4 + $0x10] sm:$0xff]
        %v4154 = vld [vmem:[#allocation4 + $0x20] sm:$0xff]
        %v4155 = vld [vmem:[#allocation4 + $0x28] sm:$0xff]
        %v4156 = vld [vmem:[#allocation4 + $0x30] sm:$0xff]
        %4163 = vrot.lane.b32.xlu0 %v4151, 16
        %v4164 = vpop.permute.xlu0 %4163
        %4165 = vrot.lane.b32.xlu0 %v4152, 16
        %v4166 = vpop.permute.xlu0 %4165
        %4167 = vrot.lane.b32.xlu0 %v4153, 16
        %v4168 = vpop.permute.xlu0 %4167
        %4169 = vrot.lane.b32.xlu0 %v4154, 16
        %v4170 = vpop.permute.xlu0 %4169
        %4171 = vrot.lane.b32.xlu0 %v4155, 16
        %v4172 = vpop.permute.xlu0 %4171
        %4173 = vrot.lane.b32.xlu0 %v4156, 16
        %v4174 = vpop.permute.xlu0 %4173
        %v4175 = vsel %vm1057, %v4164, %v4166
        %v4176 = vsel %vm1057, %v4166, %v4168
        %v4177 = vsel %vm1057, %v4170, %v4172
        %v4178 = vsel %vm1057, %v4172, %v4174
        %4183 = vst [vmem:[#allocation5 + $0x20] sm:$0xff] %v4175
        %4184 = vst [vmem:[#allocation5 + $0x28] sm:$0xff] %v4176
        %4185 = vst [vmem:[#allocation5 + $0x30] sm:$0xff] %v4177
        %4186 = vst [vmem:[#allocation5 + $0x38] sm:$0xff] %v4178
        %v4187 = vld [vmem:[#allocation4 + $0x8] sm:$0xff]
        %v4188 = vld [vmem:[#allocation4 + $0x10] sm:$0xff]
        %v4189 = vld [vmem:[#allocation4 + $0x28] sm:$0xff]
        %v4190 = vld [vmem:[#allocation4 + $0x30] sm:$0xff]
        %4191 = vst [vmem:[#allocation5 + $0x80] sm:$0xff] %v4187
        %4192 = vst [vmem:[#allocation5 + $0x88] sm:$0xff] %v4188
        %4193 = vst [vmem:[#allocation5 + $0x90] sm:$0xff] %v4189
        %4194 = vst [vmem:[#allocation5 + $0x98] sm:$0xff] %v4190
        %v4195 = vld [vmem:[#allocation4 + $0x8] sm:$0xff]
        %v4196 = vld [vmem:[#allocation4 + $0x10] sm:$0xff]
        %v4197 = vld [vmem:[#allocation4 + $0x18] sm:$0xff]
        %v4198 = vld [vmem:[#allocation4 + $0x28] sm:$0xff]
        %v4199 = vld [vmem:[#allocation4 + $0x30] sm:$0xff]
        %v4200 = vld [vmem:[#allocation4 + $0x38] sm:$0xff]
        %4207 = vrot.lane.b32.xlu0 %v4195, 112
        %v4208 = vpop.permute.xlu0 %4207
        %4209 = vrot.lane.b32.xlu0 %v4196, 112
        %v4210 = vpop.permute.xlu0 %4209
        %4211 = vrot.lane.b32.xlu0 %v4197, 112
        %v4212 = vpop.permute.xlu0 %4211
        %4213 = vrot.lane.b32.xlu0 %v4198, 112
        %v4214 = vpop.permute.xlu0 %4213
        %4215 = vrot.lane.b32.xlu0 %v4199, 112
        %v4216 = vpop.permute.xlu0 %4215
        %4217 = vrot.lane.b32.xlu0 %v4200, 112
        %v4218 = vpop.permute.xlu0 %4217
        %v4219 = vsel %vm1234, %v4208, %v4210
        %v4220 = vsel %vm1234, %v4210, %v4212
        %v4221 = vsel %vm1234, %v4214, %v4216
        %v4222 = vsel %vm1234, %v4216, %v4218
        %4227 = vst [vmem:[#allocation5 + $0xe0] sm:$0xff] %v4219
        %4228 = vst [vmem:[#allocation5 + $0xe8] sm:$0xff] %v4220
        %4229 = vst [vmem:[#allocation5 + $0xf0] sm:$0xff] %v4221
        %4230 = vst [vmem:[#allocation5 + $0xf8] sm:$0xff] %v4222
        %v4231 = vld [vmem:[#allocation4] sm:$0xff]
        %v4232 = vld [vmem:[#allocation4 + $0x8] sm:$0xff]
        %v4233 = vld [vmem:[#allocation4 + $0x10] sm:$0xff]
        %v4234 = vld [vmem:[#allocation4 + $0x20] sm:$0xff]
        %v4235 = vld [vmem:[#allocation4 + $0x28] sm:$0xff]
        %v4236 = vld [vmem:[#allocation4 + $0x30] sm:$0xff]
        %4243 = vrot.lane.b32.xlu0 %v4231, 15
        %v4244 = vpop.permute.xlu0 %4243
        %4245 = vrot.lane.b32.xlu0 %v4232, 15
        %v4246 = vpop.permute.xlu0 %4245
        %4247 = vrot.lane.b32.xlu0 %v4233, 15
        %v4248 = vpop.permute.xlu0 %4247
        %4249 = vrot.lane.b32.xlu0 %v4234, 15
        %v4250 = vpop.permute.xlu0 %4249
        %4251 = vrot.lane.b32.xlu0 %v4235, 15
        %v4252 = vpop.permute.xlu0 %4251
        %4253 = vrot.lane.b32.xlu0 %v4236, 15
        %v4254 = vpop.permute.xlu0 %4253
        %v4255 = vsel %vm1383, %v4244, %v4246
        %v4256 = vsel %vm1383, %v4246, %v4248
        %v4257 = vsel %vm1383, %v4250, %v4252
        %v4258 = vsel %vm1383, %v4252, %v4254
        %v4263 = vsel %vm1309, %v4255, 0.0
        %v4264 = vsel %vm1310, %v4256, 0.0
        %v4265 = vsel %vm1309, %v4257, 0.0
        %v4266 = vsel %vm1310, %v4258, 0.0
        %4267 = vst [vmem:[#allocation5 + $0x40] sm:$0xff] %v4263
        %4268 = vst [vmem:[#allocation5 + $0x48] sm:$0xff] %v4264
        %4269 = vst [vmem:[#allocation5 + $0x50] sm:$0xff] %v4265
        %4270 = vst [vmem:[#allocation5 + $0x58] sm:$0xff] %v4266
        %v4271 = vld [vmem:[#allocation4 + $0x8] sm:$0xff]
        %v4272 = vld [vmem:[#allocation4 + $0x10] sm:$0xff]
        %v4273 = vld [vmem:[#allocation4 + $0x18] sm:$0xff]
        %v4274 = vld [vmem:[#allocation4 + $0x28] sm:$0xff]
        %v4275 = vld [vmem:[#allocation4 + $0x30] sm:$0xff]
        %v4276 = vld [vmem:[#allocation4 + $0x38] sm:$0xff]
        %4283 = vrot.lane.b32.xlu0 %v4271, 127
        %v4284 = vpop.permute.xlu0 %4283
        %4285 = vrot.lane.b32.xlu0 %v4272, 127
        %v4286 = vpop.permute.xlu0 %4285
        %4287 = vrot.lane.b32.xlu0 %v4273, 127
        %v4288 = vpop.permute.xlu0 %4287
        %4289 = vrot.lane.b32.xlu0 %v4274, 127
        %v4290 = vpop.permute.xlu0 %4289
        %4291 = vrot.lane.b32.xlu0 %v4275, 127
        %v4292 = vpop.permute.xlu0 %4291
        %4293 = vrot.lane.b32.xlu0 %v4276, 127
        %v4294 = vpop.permute.xlu0 %4293
        %v4295 = vsel %vm1544, %v4284, %v4286
        %v4296 = vsel %vm1544, %v4286, %v4288
        %v4297 = vsel %vm1544, %v4290, %v4292
        %v4298 = vsel %vm1544, %v4292, %v4294
        %v4303 = vsel %vm1309, %v4295, 0.0
        %v4304 = vsel %vm1310, %v4296, 0.0
        %v4305 = vsel %vm1309, %v4297, 0.0
        %v4306 = vsel %vm1310, %v4298, 0.0
        %4307 = vst [vmem:[#allocation5 + $0xa0] sm:$0xff] %v4303
        %4308 = vst [vmem:[#allocation5 + $0xa8] sm:$0xff] %v4304
        %4309 = vst [vmem:[#allocation5 + $0xb0] sm:$0xff] %v4305
        %4310 = vst [vmem:[#allocation5 + $0xb8] sm:$0xff] %v4306
        %v4311 = vld [vmem:[#allocation4 + $0x8] sm:$0xff]
        %v4312 = vld [vmem:[#allocation4 + $0x10] sm:$0xff]
        %v4313 = vld [vmem:[#allocation4 + $0x18] sm:$0xff]
        %v4314 = vld [vmem:[#allocation4 + $0x28] sm:$0xff]
        %v4315 = vld [vmem:[#allocation4 + $0x30] sm:$0xff]
        %v4316 = vld [vmem:[#allocation4 + $0x38] sm:$0xff]
        %4323 = vrot.lane.b32.xlu0 %v4311, 111
        %v4324 = vpop.permute.xlu0 %4323
        %4325 = vrot.lane.b32.xlu0 %v4312, 111
        %v4326 = vpop.permute.xlu0 %4325
        %4327 = vrot.lane.b32.xlu0 %v4313, 111
        %v4328 = vpop.permute.xlu0 %4327
        %4329 = vrot.lane.b32.xlu0 %v4314, 111
        %v4330 = vpop.permute.xlu0 %4329
        %4331 = vrot.lane.b32.xlu0 %v4315, 111
        %v4332 = vpop.permute.xlu0 %4331
        %4333 = vrot.lane.b32.xlu0 %v4316, 111
        %v4334 = vpop.permute.xlu0 %4333
        %v4335 = vsel %vm1705, %v4324, %v4326
        %v4336 = vsel %vm1705, %v4326, %v4328
        %v4337 = vsel %vm1705, %v4330, %v4332
        %v4338 = vsel %vm1705, %v4332, %v4334
        %v4343 = vsel %vm1309, %v4335, 0.0
        %v4344 = vsel %vm1310, %v4336, 0.0
        %v4345 = vsel %vm1309, %v4337, 0.0
        %v4346 = vsel %vm1310, %v4338, 0.0
        %4347 = vst [vmem:[#allocation5 + $0x100] sm:$0xff] %v4343
        %4348 = vst [vmem:[#allocation5 + $0x108] sm:$0xff] %v4344
        %4349 = vst [vmem:[#allocation5 + $0x110] sm:$0xff] %v4345
        %4350 = vst [vmem:[#allocation5 + $0x118] sm:$0xff] %v4346
        %v4351 = vld [vmem:[%s7] sm:$0xff]
        %v4352 = vld [vmem:[%s7 + $0x8] sm:$0xff]
        %v4353 = vld [vmem:[%s7 + $0x10] sm:$0xff]
        %v4354 = vld [vmem:[%s7 + $0x18] sm:$0xff]
        %v4355 = vld [vmem:[%s7 + $0x20] sm:$0xff]
        %v4356 = vld [vmem:[%s7 + $0x28] sm:$0xff]
        %v4357 = vld [vmem:[%s7 + $0x30] sm:$0xff]
        %v4358 = vld [vmem:[%s7 + $0x38] sm:$0xff]
        %v4359 = vld [vmem:[%s7 + $0x40] sm:$0xff]
        %v4360 = vld [vmem:[%s7 + $0x48] sm:$0xff]
        %v4361 = vld [vmem:[%s7 + $0x50] sm:$0xff]
        %v4362 = vld [vmem:[%s7 + $0x58] sm:$0xff]
        %v4363 = vld [vmem:[%s7 + $0x60] sm:$0xff]
        %v4364 = vld [vmem:[%s7 + $0x68] sm:$0xff]
        %v4365 = vld [vmem:[%s7 + $0x70] sm:$0xff]
        %v4366 = vld [vmem:[%s7 + $0x78] sm:$0xff]
        %v4367 = vld [vmem:[#allocation5] sm:$0xff]
        %v4368 = vld [vmem:[#allocation5 + $0x8] sm:$0xff]
        %v4369 = vld [vmem:[#allocation5 + $0x10] sm:$0xff]
        %v4370 = vld [vmem:[#allocation5 + $0x18] sm:$0xff]
        %v4371 = vld [vmem:[#allocation5 + $0x20] sm:$0xff]
        %v4372 = vld [vmem:[#allocation5 + $0x28] sm:$0xff]
        %v4373 = vld [vmem:[#allocation5 + $0x30] sm:$0xff]
        %v4374 = vld [vmem:[#allocation5 + $0x38] sm:$0xff]
        %v4375 = vld [vmem:[#allocation5 + $0x40] sm:$0xff]
        %v4376 = vld [vmem:[#allocation5 + $0x48] sm:$0xff]
        %v4377 = vld [vmem:[#allocation5 + $0x50] sm:$0xff]
        %v4378 = vld [vmem:[#allocation5 + $0x58] sm:$0xff]
        %v4379 = vld [vmem:[#allocation5 + $0x60] sm:$0xff]
        %v4380 = vld [vmem:[#allocation5 + $0x68] sm:$0xff]
        %v4381 = vld [vmem:[#allocation5 + $0x70] sm:$0xff]
        %v4382 = vld [vmem:[#allocation5 + $0x78] sm:$0xff]
        %v4383 = vld [vmem:[#allocation5 + $0x80] sm:$0xff]
        %v4384 = vld [vmem:[#allocation5 + $0x88] sm:$0xff]
        %v4385 = vld [vmem:[#allocation5 + $0x90] sm:$0xff]
        %v4386 = vld [vmem:[#allocation5 + $0x98] sm:$0xff]
        %v4387 = vld [vmem:[#allocation5 + $0xa0] sm:$0xff]
        %v4388 = vld [vmem:[#allocation5 + $0xa8] sm:$0xff]
        %v4389 = vld [vmem:[#allocation5 + $0xb0] sm:$0xff]
        %v4390 = vld [vmem:[#allocation5 + $0xb8] sm:$0xff]
        %v4391 = vld [vmem:[#allocation5 + $0xc0] sm:$0xff]
        %v4392 = vld [vmem:[#allocation5 + $0xc8] sm:$0xff]
        %v4393 = vld [vmem:[#allocation5 + $0xd0] sm:$0xff]
        %v4394 = vld [vmem:[#allocation5 + $0xd8] sm:$0xff]
        %v4395 = vld [vmem:[#allocation5 + $0xe0] sm:$0xff]
        %v4396 = vld [vmem:[#allocation5 + $0xe8] sm:$0xff]
        %v4397 = vld [vmem:[#allocation5 + $0xf0] sm:$0xff]
        %v4398 = vld [vmem:[#allocation5 + $0xf8] sm:$0xff]
        %v4399 = vld [vmem:[#allocation5 + $0x100] sm:$0xff]
        %v4400 = vld [vmem:[#allocation5 + $0x108] sm:$0xff]
        %v4401 = vld [vmem:[#allocation5 + $0x110] sm:$0xff]
        %v4402 = vld [vmem:[#allocation5 + $0x118] sm:$0xff]
        %v4403 = vld [vmem:[%s8] sm:$0xff]
        %v4404 = vld [vmem:[%s8 + $0x8] sm:$0xff]
        %v4405 = vld [vmem:[%s8 + $0x10] sm:$0xff]
        %v4406 = vld [vmem:[%s8 + $0x18] sm:$0xff]
        %v4407 = vld [vmem:[%s8 + $0x20] sm:$0xff]
        %v4408 = vld [vmem:[%s8 + $0x28] sm:$0xff]
        %v4409 = vld [vmem:[%s8 + $0x30] sm:$0xff]
        %v4410 = vld [vmem:[%s8 + $0x38] sm:$0xff]
        %4412 = vset.pattern.permute.xlu0 0
        %4413 = vperm.xlu0 %4412, %v4403
        %v4414 = vpop.permute.xlu0 %4413
        %4417 = vset.pattern.permute.xlu0 0
        %4418 = vperm.xlu0 %4417, %v4404
        %v4419 = vpop.permute.xlu0 %4418
        %4422 = vset.pattern.permute.xlu0 0
        %4423 = vperm.xlu0 %4422, %v4405
        %v4424 = vpop.permute.xlu0 %4423
        %4427 = vset.pattern.permute.xlu0 0
        %4428 = vperm.xlu0 %4427, %v4406
        %v4429 = vpop.permute.xlu0 %4428
        %4432 = vset.pattern.permute.xlu0 0
        %4433 = vperm.xlu0 %4432, %v4407
        %v4434 = vpop.permute.xlu0 %4433
        %4437 = vset.pattern.permute.xlu0 0
        %4438 = vperm.xlu0 %4437, %v4408
        %v4439 = vpop.permute.xlu0 %4438
        %4442 = vset.pattern.permute.xlu0 0
        %4443 = vperm.xlu0 %4442, %v4409
        %v4444 = vpop.permute.xlu0 %4443
        %4447 = vset.pattern.permute.xlu0 0
        %4448 = vperm.xlu0 %4447, %v4410
        %v4449 = vpop.permute.xlu0 %4448
        %v4452 = vsel %vm1057, %v4352, 0
        %v4455 = vsel %vm1057, %v4354, 0
        %v4458 = vsel %vm1057, %v4356, 0
        %v4461 = vsel %vm1057, %v4358, 0
        %v4464 = vsel %vm1057, %v4360, 0
        %v4467 = vsel %vm1057, %v4362, 0
        %v4470 = vsel %vm1057, %v4364, 0
        %v4473 = vsel %vm1057, %v4366, 0
        %4475 = vmatprep.subr.mxu0 %v4368
        %4476 = vmatpush1.msra.mxu0 %v4367
        %4477 = vmatprep.subr.mxu0 %v4370
        %4478 = vmatpush1.msra.mxu0 %v4369
        %4479 = vmatprep.subr.mxu0 %v4372
        %4480 = vmatpush1.msra.mxu0 %v4371
        %4481 = vmatprep.subr.mxu0 %v4374
        %4482 = vmatpush1.msra.mxu0 %v4373
        %4483 = vmatprep.subr.mxu0 %v4376
        %4484 = vmatpush1.msra.mxu0 %v4375
        %4485 = vmatprep.subr.mxu0 %v4378
        %4486 = vmatpush1.msra.mxu0 %v4377
        %4487 = vmatprep.subr.mxu0 %v4380
        %4488 = vmatpush1.msra.mxu0 %v4379
        %4489 = vmatprep.subr.mxu0 %v4382
        %4490 = vmatpush1.msra.mxu0 %v4381
        %4491 = vmatprep.subr.mxu0 %v4384
        %4492 = vmatpush1.msra.mxu0 %v4383
        %4493 = vmatprep.subr.mxu0 %v4386
        %4494 = vmatpush1.msra.mxu0 %v4385
        %4495 = vmatprep.subr.mxu0 %v4388
        %4496 = vmatpush1.msra.mxu0 %v4387
        %4497 = vmatprep.subr.mxu0 %v4390
        %4498 = vmatpush1.msra.mxu0 %v4389
        %4499 = vmatprep.subr.mxu0 %v4392
        %4500 = vmatpush1.msra.mxu0 %v4391
        %4501 = vmatprep.subr.mxu0 %v4394
        %4502 = vmatpush1.msra.mxu0 %v4393
        %4503 = vmatprep.subr.mxu0 %v4396
        %4504 = vmatpush1.msra.mxu0 %v4395
        %4505 = vmatprep.subr.mxu0 %v4398
        %4506 = vmatpush1.msra.mxu0 %v4397
        %4507 = vmatprep.subr.mxu0 %v4400
        %4508 = vmatpush1.msra.mxu0 %v4399
        %4509 = vmatprep.subr.mxu0 %v4402
        %4510 = vmatpush1.msra.mxu0 %v4401
        %4511 = vmatprep.subr.mxu0 0.0
        %4512 = vmatpush1.msra.mxu0 0.0
        %4513 = vmatprep.subr.mxu0 0.0
        %4514 = vmatpush1.msra.mxu0 0.0
        %4515 = vmatprep.subr.mxu0 0.0
        %4516 = vmatpush1.msra.mxu0 0.0
        %4517 = vmatprep.subr.mxu0 0.0
        %4518 = vmatpush1.msra.mxu0 0.0
        %4519 = vmatprep.subr.mxu0 0.0
        %4520 = vmatpush1.msra.mxu0 0.0
        %4521 = vmatprep.subr.mxu0 0.0
        %4522 = vmatpush1.msra.mxu0 0.0
        %4523 = vmatprep.subr.mxu0 0.0
        %4524 = vmatpush1.msra.mxu0 0.0
        %4525 = vmatprep.subr.mxu0 0.0
        %4526 = vmatpush1.msra.mxu0 0.0
        %4527 = vmatprep.subr.mxu0 0.0
        %4528 = vmatpush1.msra.mxu0 0.0
        %4529 = vmatprep.subr.mxu0 0.0
        %4530 = vmatpush1.msra.mxu0 0.0
        %4531 = vmatprep.subr.mxu0 0.0
        %4532 = vmatpush1.msra.mxu0 0.0
        %4533 = vmatprep.subr.mxu0 0.0
        %4534 = vmatpush1.msra.mxu0 0.0
        %4535 = vmatprep.subr.mxu0 0.0
        %4536 = vmatpush1.msra.mxu0 0.0
        %4537 = vmatprep.subr.mxu0 0.0
        %4538 = vmatpush1.msra.mxu0 0.0
        %4539 = vmatprep.mubr.f32.mxu0 %v4452
        %4540 = vmatmul.mubr.f32.gmra.mrb[0].mxu0 %v4351
        %v4541 = vpop.f32.mrb[0].mxu0
        %v4542 = vadd.f32 %v4414, %v4541
        %v4543 = vpop.f32.mrb[0].mxu0
        %v4544 = vadd.f32 %v4414, %v4543
        %4545 = vmatprep.mubr.f32.mxu0 %v4455
        %4546 = vmatmul.mubr.f32.gmra.mrb[0].mxu0 %v4353
        %v4547 = vpop.f32.mrb[0].mxu0
        %v4548 = vadd.f32 %v4419, %v4547
        %v4549 = vpop.f32.mrb[0].mxu0
        %v4550 = vadd.f32 %v4419, %v4549
        %4551 = vmatprep.mubr.f32.mxu0 %v4458
        %4552 = vmatmul.mubr.f32.gmra.mrb[0].mxu0 %v4355
        %v4553 = vpop.f32.mrb[0].mxu0
        %v4554 = vadd.f32 %v4424, %v4553
        %v4555 = vpop.f32.mrb[0].mxu0
        %v4556 = vadd.f32 %v4424, %v4555
        %4557 = vmatprep.mubr.f32.mxu0 %v4461
        %4558 = vmatmul.mubr.f32.gmra.mrb[0].mxu0 %v4357
        %v4559 = vpop.f32.mrb[0].mxu0
        %v4560 = vadd.f32 %v4429, %v4559
        %v4561 = vpop.f32.mrb[0].mxu0
        %v4562 = vadd.f32 %v4429, %v4561
        %4563 = vmatprep.mubr.f32.mxu0 %v4464
        %4564 = vmatmul.mubr.f32.gmra.mrb[0].mxu0 %v4359
        %v4565 = vpop.f32.mrb[0].mxu0
        %v4566 = vadd.f32 %v4434, %v4565
        %v4567 = vpop.f32.mrb[0].mxu0
        %v4568 = vadd.f32 %v4434, %v4567
        %4569 = vmatprep.mubr.f32.mxu0 %v4467
        %4570 = vmatmul.mubr.f32.gmra.mrb[0].mxu0 %v4361
        %v4571 = vpop.f32.mrb[0].mxu0
        %v4572 = vadd.f32 %v4439, %v4571
        %v4573 = vpop.f32.mrb[0].mxu0
        %v4574 = vadd.f32 %v4439, %v4573
        %4575 = vmatprep.mubr.f32.mxu0 %v4470
        %4576 = vmatmul.mubr.f32.gmra.mrb[0].mxu0 %v4363
        %v4577 = vpop.f32.mrb[0].mxu0
        %v4578 = vadd.f32 %v4444, %v4577
        %v4579 = vpop.f32.mrb[0].mxu0
        %v4580 = vadd.f32 %v4444, %v4579
        %4581 = vmatprep.mubr.f32.mxu0 %v4473
        %4582 = vmatmul.mubr.f32.gmra.mrb[0].mxu0 %v4365
        %v4583 = vpop.f32.mrb[0].mxu0
        %v4584 = vadd.f32 %v4449, %v4583
        %v4585 = vpop.f32.mrb[0].mxu0
        %v4586 = vadd.f32 %v4449, %v4585
        %4587 = vdwg.mxu0
        %v4588 = vmax.f32 %v4542, 0.0
        %v4589 = vmax.f32 %v4544, 0.0
        %v4590 = vmax.f32 %v4548, 0.0
        %v4591 = vmax.f32 %v4550, 0.0
        %v4592 = vmax.f32 %v4554, 0.0
        %v4593 = vmax.f32 %v4556, 0.0
        %v4594 = vmax.f32 %v4560, 0.0
        %v4595 = vmax.f32 %v4562, 0.0
        %v4596 = vmax.f32 %v4566, 0.0
        %v4597 = vmax.f32 %v4568, 0.0
        %v4598 = vmax.f32 %v4572, 0.0
        %v4599 = vmax.f32 %v4574, 0.0
        %v4600 = vmax.f32 %v4578, 0.0
        %v4601 = vmax.f32 %v4580, 0.0
        %v4602 = vmax.f32 %v4584, 0.0
        %v4603 = vmax.f32 %v4586, 0.0
        %4604 = vst [vmem:[%s394] sm:$0xff] %v4588
        %4605 = vst [vmem:[%s394 + $0x8] sm:$0xff] %v4589
        %4606 = vst [vmem:[%s394 + $0x10] sm:$0xff] %v4590
        %4607 = vst [vmem:[%s394 + $0x18] sm:$0xff] %v4591
        %4608 = vst [vmem:[%s394 + $0x20] sm:$0xff] %v4592
        %4609 = vst [vmem:[%s394 + $0x28] sm:$0xff] %v4593
        %4610 = vst [vmem:[%s394 + $0x30] sm:$0xff] %v4594
        %4611 = vst [vmem:[%s394 + $0x38] sm:$0xff] %v4595
        %4612 = vst [vmem:[%s394 + $0x40] sm:$0xff] %v4596
        %4613 = vst [vmem:[%s394 + $0x48] sm:$0xff] %v4597
        %4614 = vst [vmem:[%s394 + $0x50] sm:$0xff] %v4598
        %4615 = vst [vmem:[%s394 + $0x58] sm:$0xff] %v4599
        %4616 = vst [vmem:[%s394 + $0x60] sm:$0xff] %v4600
        %4617 = vst [vmem:[%s394 + $0x68] sm:$0xff] %v4601
        %4618 = vst [vmem:[%s394 + $0x70] sm:$0xff] %v4602
        %4619 = vst [vmem:[%s394 + $0x78] sm:$0xff] %v4603
        %s4620 = sand.u32 %s230, 1
        %s4621 = scalar_lea.sflag [#allocation8], %s4620
        %s4622 = sand.u32 %s230, 1
        %s4623 = smul.addr %s4622, 128
        %s4624 = scalar_lea.vmem [#allocation14], %s4623
        // Predicated region
        $region73: #{tpu_custom_call.1} parent=55 // pred_check
          %p4625 = pneg %p240
        $region74: #{tpu_custom_call.1} parent=55 // pred_check_branch
          %4627 = sbr.rel (%p4625) target = $region76
        $region75: #{tpu_custom_call.1} parent=55 // pred_region
          %s4629 = ssub.s32 2048, 2048
          %4630 = vsyncadd %s4621, %s4629
          %s4631 = smul.addr %s28, 16
          %s4632 = smul.addr %s4631, 128
          %s4633 = scalar_lea.hbm %s9, %s4632
          %s4634 = sshll.u32 %s4624, 4
          %s4635 = int_to_ptr.vmem [resolvable:$true] %s4634
          %4640 = dma.vmem_to_hbm [thread:$0]  %s4635, 2048, %s4633, %s4621, 256, 256, 16
        $region76: #{tpu_custom_call.1} parent=55 // pred_fallthru
          _
      $region56: #{tpu_custom_call.1} parent=5 // pred_fallthru
        _
      %p4641 = scmp.le.s32.totalorder 2, %s23
      // Predicated region
      $region77: #{tpu_custom_call.1} parent=5 // pred_check
        %p4642 = pneg %p4641
      $region78: #{tpu_custom_call.1} parent=5 // pred_check_branch
        %4644 = sbr.rel (%p4642) target = $region80
      $region79: #{tpu_custom_call.1} parent=5 // pred_region
        %s4645 = ssub.s32 %s23, 2
        // Predicated region
        $region81: #{tpu_custom_call.1} parent=79 // pred_check
          %p4646 = pneg %p246
        $region82: #{tpu_custom_call.1} parent=79 // pred_check_branch
          %4648 = sbr.rel (%p4646) target = $region84
        $region83: #{tpu_custom_call.1} parent=79 // pred_region
          %s4649 = sand.u32 %s231, 1
          %s4650 = scalar_lea.sflag [#allocation8], %s4649
          %s4651 = sand.u32 %s231, 1
          %s4652 = smul.addr %s4651, 128
          %s4653 = scalar_lea.vmem [#allocation14], %s4652
          %4654 = dma.done %s4650, 2048
        $region84: #{tpu_custom_call.1} parent=79 // pred_fallthru
          _
      $region80: #{tpu_custom_call.1} parent=5 // pred_fallthru
        _
    $region6: #{tpu_custom_call.1} parent=1 // loop_footer
      %s27 = sadd.s32 1, %s23
    $region7: #{tpu_custom_call.1} parent=1 // loop_footer_branch
      %22 = sbr.rel target = $region3
    $region8: #{tpu_custom_call.1} parent=1 // loop_exit
      _
    %4655 = vsyncpa [#allocation7], 1
    %s4656 = scalar_lea.sflag [#allocation7], 1
    %4657 = vsyncpa %s4656, 1
    %4658 = vsyncpa [#allocation10], 1
    %4659 = vsyncpa [#allocation13], 1
    %4660 = vsyncpa [#allocation8], 1
    %s4661 = scalar_lea.sflag [#allocation8], 1
    %4662 = vsyncpa %s4661, 1

</llo_original>
